<compile_context>
chip_gen: v5e
topology: v5e:2x2
jax: 0.10.0
libtpu: 0.0.40
codegen_flags: <defaults>
</compile_context>

<pallas_src>
import jax
import jax.numpy as jnp
from jax.experimental import pallas as pl
from jax.experimental.pallas import tpu as pltpu


# ----------------------------------------------------------------------------
# Fused forward kernel
# ----------------------------------------------------------------------------
def _fused_forward_kernel(
    scene_ref,                                     # (T*N, 4) f32, time-major
    nh_wihf_ref, nh_whhf_ref, nh_bf_ref,           # node-hist fwd  (f32, bf16, f32)
    nh_wihb_ref, nh_whhb_ref, nh_bb_ref,           # node-hist bwd
    ee_wihf_ref, ee_whhf_ref, ee_bf_ref,           # edge fwd
    ee_wihb_ref, ee_whhb_ref, ee_bb_ref,           # edge bwd
    de_wih_ref, de_whhf_ref, de_whhb_ref, de_b_ref,  # decoder: (2H,8Ep) bf16, (Ep,4Ep) bf16 x2, (1,8Ep) f32
    hp_w_ref, hp_b_ref,                            # pose head: (Td*2, Ep, out) bf16, (1, out) f32
    out_ref,                                       # (N, out) f32
    gxf_scr, gxb_scr,                              # (T*N, 4H) f32 scratch (node-hist input proj)
    enclo_scr, enchi_scr,                          # (Td*N, H) f32 scratch (decoder inputs)
):
    N, _target = out_ref.shape
    TN = scene_ref.shape[0]
    T = TN // N
    Td = T + 1
    H = nh_whhf_ref.shape[0]
    Ep = de_whhf_ref.shape[0]
    f32 = jnp.float32
    bf16 = jnp.bfloat16

    def lstm_step(gx, h, c, whh_bf):
        """One LSTM cell. gx = x @ W_ih + b (precomputed, f32). Gate order i,f,g,o.
        Recurrent matmul uses bf16 operands, fp32 accumulation."""
        hh = whh_bf.shape[0]
        gates = gx + jnp.dot(h.astype(bf16), whh_bf, preferred_element_type=f32)
        sg = jax.nn.sigmoid(gates)     # full-width activations (EUP), slice afterwards
        th = jnp.tanh(gates)
        i = sg[:, 0 * hh:1 * hh]
        f = sg[:, 1 * hh:2 * hh]
        g = th[:, 2 * hh:3 * hh]
        o = sg[:, 3 * hh:4 * hh]
        c_new = f * c + i * g
        h_new = o * jnp.tanh(c_new)
        return h_new, c_new

    def xproj4(x, wih):
        """x @ wih for tiny Din (=4) as VPU broadcast-MACs (no K=4 matmul)."""
        acc = x[:, 0:1] * wih[0:1, :]
        for d in range(1, wih.shape[0]):
            acc = acc + x[:, d:d + 1] * wih[d:d + 1, :]
        return acc

    # ---- batched node-history input projections (all T steps, both dirs) ----
    scene = scene_ref[...]                                   # (T*N, 4)
    gxf_scr[...] = xproj4(scene, nh_wihf_ref[...]) + nh_bf_ref[...]
    gxb_scr[...] = xproj4(scene, nh_wihb_ref[...]) + nh_bb_ref[...]

    # Edge encoder operates on deltas[i, j] = current[j] - current[i]; only
    # distruction[:, -1, :] is consumed, so fwd keeps just the final state and
    # bwd is exactly one cell step.  (c_j - c_i) @ W_ih = cW[j] - cW[i].
    current = scene[(T - 1) * N:T * N, :]                    # (N, 4) last observed
    cw_f = xproj4(current, ee_wihf_ref[...])                 # (N, 4H)
    ee_bf = ee_bf_ref[...]

    nh_whhf = nh_whhf_ref[...]
    nh_whhb = nh_whhb_ref[...]
    ee_whhf = ee_whhf_ref[...]

    zeros_h = jnp.zeros((N, H), f32)
    hf, cf = zeros_h, zeros_h
    hb, cb = zeros_h, zeros_h
    he, ce = zeros_h, zeros_h

    # ---- interleaved encoder recurrences (3 independent chains / iter) ------
    for s in range(max(T, N)):
        if s < T:                              # node-history fwd + bwd
            tb = T - 1 - s
            hf, cf = lstm_step(gxf_scr[s * N:(s + 1) * N, :], hf, cf, nh_whhf)
            hb, cb = lstm_step(gxb_scr[tb * N:(tb + 1) * N, :], hb, cb, nh_whhb)
            enclo_scr[s * N:(s + 1) * N, :] = hf
            enchi_scr[tb * N:(tb + 1) * N, :] = hb
        if s < N:                              # edge encoder fwd over neighbors
            gx_e = (cw_f[s:s + 1, :] - cw_f) + ee_bf
            he, ce = lstm_step(gx_e, he, ce, ee_whhf)

    # edge-encoder backward: one cell step on deltas[:, N-1, :] from zeros
    cw_b = xproj4(current, ee_wihb_ref[...])
    gx_last = (cw_b[N - 1:N, :] - cw_b) + ee_bb_ref[...]
    he_b, _ = lstm_step(gx_last, zeros_h, zeros_h, ee_whhb_ref[...])

    enclo_scr[T * N:(T + 1) * N, :] = he       # edge token appended at t = T
    enchi_scr[T * N:(T + 1) * N, :] = he_b

    # ---- decoder input projection: both directions in one lane-stacked W ----
    enc_lo = enclo_scr[...].astype(bf16)                     # (Td*N, H)
    enc_hi = enchi_scr[...].astype(bf16)
    gxd = (jnp.dot(enc_lo, de_wih_ref[0:H, :], preferred_element_type=f32)
           + jnp.dot(enc_hi, de_wih_ref[H:2 * H, :], preferred_element_type=f32)
           + de_b_ref[...])                                  # (Td*N, 8*Ep)
    G = 4 * Ep
    gxd_f = gxd[:, 0:G]
    gxd_b = gxd[:, G:2 * G]

    de_whhf = de_whhf_ref[...]
    de_whhb = de_whhb_ref[...]

    zeros_e = jnp.zeros((N, Ep), f32)
    hdf, cdf = zeros_e, zeros_e
    hdb, cdb = zeros_e, zeros_e

    # ---- decoder recurrence fused with hidden2pose + residual ---------------
    acc = hp_b_ref[...] + current[:, 0:2]      # residual on last observed (x, y)
    for t in range(Td):
        tb = Td - 1 - t
        hdf, cdf = lstm_step(gxd_f[t * N:(t + 1) * N, :], hdf, cdf, de_whhf)
        hdb, cdb = lstm_step(gxd_b[tb * N:(tb + 1) * N, :], hdb, cdb, de_whhb)
        acc = (acc
               + jnp.dot(hdf.astype(bf16), hp_w_ref[2 * t],
                         preferred_element_type=f32)
               + jnp.dot(hdb.astype(bf16), hp_w_ref[2 * tb + 1],
                         preferred_element_type=f32))
    out_ref[...] = acc


# ----------------------------------------------------------------------------
# Deterministic parameter construction (PyTorch-style uniform init ranges)
# ----------------------------------------------------------------------------
def _init_lstm_params(key, input_size, hidden_size):
    bound = 1.0 / jnp.sqrt(hidden_size)
    ks = jax.random.split(key, 8)

    def u(k, shape):
        return jax.random.uniform(k, shape, jnp.float32, -bound, bound)

    # Weights stored pre-transposed for x @ W layouts; PyTorch b_ih + b_hh folded.
    wih_f = u(ks[0], (input_size, 4 * hidden_size))
    whh_f = u(ks[1], (hidden_size, 4 * hidden_size))
    b_f = u(ks[2], (1, 4 * hidden_size)) + u(ks[3], (1, 4 * hidden_size))
    wih_b = u(ks[4], (input_size, 4 * hidden_size))
    whh_b = u(ks[5], (hidden_size, 4 * hidden_size))
    b_b = u(ks[6], (1, 4 * hidden_size)) + u(ks[7], (1, 4 * hidden_size))
    return (wih_f, whh_f, b_f, wih_b, whh_b, b_b)


def _init_linear_params(key, in_features, out_features):
    bound = 1.0 / jnp.sqrt(in_features)
    k1, k2 = jax.random.split(key)
    w = jax.random.uniform(k1, (in_features, out_features), jnp.float32, -bound, bound)
    b = jax.random.uniform(k2, (1, out_features), jnp.float32, -bound, bound)
    return w, b


def init_model_params(key, lstm_hidden_dim, target_size, embedding_dim):
    k1, k2, k3, k4 = jax.random.split(key, 4)
    dir_number = 2  # bidir=True
    # note: node_vel_hist_encoder exists in the PyTorch module but is unused in forward.
    return {
        "node_hist_encoder": _init_lstm_params(k1, 4, lstm_hidden_dim),
        "edge_encoder": _init_lstm_params(k2, 4, lstm_hidden_dim),
        "decoder": _init_lstm_params(k3, dir_number * lstm_hidden_dim, embedding_dim),
        "hidden2pose": _init_linear_params(k4, 9 * dir_number * embedding_dim, target_size),
    }


# ----------------------------------------------------------------------------
# Forward pass (mirrors LstmEncDeltaStackedVel.forward) — single fused kernel
# ----------------------------------------------------------------------------
def _pad_gate_cols(w, hsz, hpad):
    """(..., 4*hsz) -> (..., 4*hpad): zero-pad each i/f/g/o gate block."""
    lead = w.shape[:-1]
    w4 = w.reshape(lead + (4, hsz))
    w4 = jnp.pad(w4, [(0, 0)] * len(lead) + [(0, 0), (0, hpad - hsz)])
    return w4.reshape(lead + (4 * hpad,))


@jax.jit
def forward(params, scene):
    # scene: (num_peds, history_size, 4)
    N, T, Din = scene.shape
    Td = T + 1
    nh = params["node_hist_encoder"]
    ee = params["edge_encoder"]
    de = params["decoder"]
    hp_w, hp_b = params["hidden2pose"]
    H = nh[1].shape[0]
    E = de[1].shape[0]
    target = hp_w.shape[1]

    # hidden2pose in_features is hard-wired to 9 * 2 * E in the module ⇒ T must be 8.
    assert Td * 2 * E == hp_w.shape[0], (
        "history_size must satisfy (T+1)*2*embedding_dim == hidden2pose.in_features")

    bf16 = jnp.bfloat16
    Ep = max(32, ((E + 31) // 32) * 32)            # tile-aligned decoder hidden width

    # Time-major contiguous layout: each timestep is one (N, 4) sublane slice.
    scene_flat = jnp.transpose(scene, (1, 0, 2)).reshape(T * N, Din)

    nh_wihf, nh_whhf, nh_bf, nh_wihb, nh_whhb, nh_bb = nh
    ee_wihf, ee_whhf, ee_bf, ee_wihb, ee_whhb, ee_bb = ee
    de_wihf, de_whhf, de_bf, de_wihb, de_whhb, de_bb = de

    # Decoder params zero-padded E -> Ep; padded hidden lanes stay exactly zero.
    de_wihf_p = _pad_gate_cols(de_wihf, E, Ep)                       # (2H, 4Ep)
    de_wihb_p = _pad_gate_cols(de_wihb, E, Ep)
    de_whhf_p = jnp.pad(_pad_gate_cols(de_whhf, E, Ep), ((0, Ep - E), (0, 0)))
    de_whhb_p = jnp.pad(_pad_gate_cols(de_whhb, E, Ep), ((0, Ep - E), (0, 0)))
    de_bf_p = _pad_gate_cols(de_bf, E, Ep)
    de_bb_p = _pad_gate_cols(de_bb, E, Ep)
    de_wih_both = jnp.concatenate([de_wihf_p, de_wihb_p], axis=1).astype(bf16)   # (2H, 8Ep)
    de_b_both = jnp.concatenate([de_bf_p, de_bb_p], axis=1)                      # (1, 8Ep)

    # hidden2pose slabs: dec_reshaped is timestep-major with [fwd|bwd] per step
    # (edge-encoder token last, t = T), so reshape to (Td, 2, E, out), pad E,
    # and flatten the (step, dir) axes for simple 1st-axis indexing in-kernel.
    hp_w3 = hp_w.reshape(Td, 2, E, target)
    hp_w3 = jnp.pad(hp_w3, ((0, 0), (0, 0), (0, Ep - E), (0, 0)))
    hp_w3 = hp_w3.reshape(Td * 2, Ep, target).astype(bf16)

    out = pl.pallas_call(
        _fused_forward_kernel,
        out_shape=jax.ShapeDtypeStruct((N, target), jnp.float32),
        scratch_shapes=[
            pltpu.VMEM((T * N, 4 * H), jnp.float32),    # node-hist fwd input proj
            pltpu.VMEM((T * N, 4 * H), jnp.float32),    # node-hist bwd input proj
            pltpu.VMEM((Td * N, H), jnp.float32),       # decoder input, fwd half
            pltpu.VMEM((Td * N, H), jnp.float32),       # decoder input, bwd half
        ],
    )(
        scene_flat,
        nh_wihf, nh_whhf.astype(bf16), nh_bf,
        nh_wihb, nh_whhb.astype(bf16), nh_bb,
        ee_wihf, ee_whhf.astype(bf16), ee_bf,
        ee_wihb, ee_whhb.astype(bf16), ee_bb,
        de_wih_both, de_whhf_p.astype(bf16), de_whhb_p.astype(bf16), de_b_both,
        hp_w3, hp_b,
    )

    return out[:, None, :]                                           # (N, 1, target)


if __name__ == "__main__":
    # Shapes implied by the module: history_size = 8 (so 9*dir*emb matches),
    # data_dim = 4, target_size = 2 (residual add onto (x, y)).
    num_peds = 8
    history_size = 8
    data_dim = 4
    lstm_hidden_dim = 32
    embedding_dim = 10
    target_size = 2

    key = jax.random.PRNGKey(0)
    k_param, k_data = jax.random.split(key)

    params = init_model_params(k_param, lstm_hidden_dim, target_size, embedding_dim)
    scene = jax.random.normal(k_data, (num_peds, history_size, data_dim),
                              dtype=jnp.float32)

    out = forward(params, scene)
    out = jax.block_until_ready(out)
    assert out.shape == (num_peds, 1, target_size), out.shape
    assert bool(jnp.all(jnp.isfinite(out)))
    print("KERNEL_OK")
</pallas_src>

<mosaic_0001>
module attributes {stable_mosaic.version = 11 : i64} {
  func.func @_fused_forward_kernel(%arg0: memref<64x4xf32, #tpu.memory_space<vmem>>, %arg1: memref<4x128xf32, #tpu.memory_space<vmem>>, %arg2: memref<32x128xbf16, #tpu.memory_space<vmem>>, %arg3: memref<1x128xf32, #tpu.memory_space<vmem>>, %arg4: memref<4x128xf32, #tpu.memory_space<vmem>>, %arg5: memref<32x128xbf16, #tpu.memory_space<vmem>>, %arg6: memref<1x128xf32, #tpu.memory_space<vmem>>, %arg7: memref<4x128xf32, #tpu.memory_space<vmem>>, %arg8: memref<32x128xbf16, #tpu.memory_space<vmem>>, %arg9: memref<1x128xf32, #tpu.memory_space<vmem>>, %arg10: memref<4x128xf32, #tpu.memory_space<vmem>>, %arg11: memref<32x128xbf16, #tpu.memory_space<vmem>>, %arg12: memref<1x128xf32, #tpu.memory_space<vmem>>, %arg13: memref<64x256xbf16, #tpu.memory_space<vmem>>, %arg14: memref<32x128xbf16, #tpu.memory_space<vmem>>, %arg15: memref<32x128xbf16, #tpu.memory_space<vmem>>, %arg16: memref<1x256xf32, #tpu.memory_space<vmem>>, %arg17: memref<18x32x2xbf16, #tpu.memory_space<vmem>>, %arg18: memref<1x2xf32, #tpu.memory_space<vmem>>, %arg19: memref<8x2xf32, #tpu.memory_space<vmem>>, %arg20: memref<64x128xf32, #tpu.memory_space<vmem>>, %arg21: memref<64x128xf32, #tpu.memory_space<vmem>>, %arg22: memref<72x32xf32, #tpu.memory_space<vmem>>, %arg23: memref<72x32xf32, #tpu.memory_space<vmem>>) attributes {dimension_semantics = [], scalar_prefetch = 0 : i64, scratch_operands = 4 : i64, tpu.core_type = #tpu.core_type<tc>} {
    %c0 = arith.constant 0 : index
    %c0_0 = arith.constant 0 : index
    %0 = vector.load %arg0[%c0, %c0_0] : memref<64x4xf32, #tpu.memory_space<vmem>>, vector<64x4xf32>
    %c0_1 = arith.constant 0 : index
    %c0_2 = arith.constant 0 : index
    %1 = vector.load %arg1[%c0_1, %c0_2] : memref<4x128xf32, #tpu.memory_space<vmem>>, vector<4x128xf32>
    %2 = vector.extract_strided_slice %0 {offsets = [0, 0], sizes = [64, 1], strides = [1, 1]} : vector<64x4xf32> to vector<64x1xf32>
    %3 = vector.extract_strided_slice %1 {offsets = [0, 0], sizes = [1, 128], strides = [1, 1]} : vector<4x128xf32> to vector<1x128xf32>
    %4 = vector.broadcast %2 : vector<64x1xf32> to vector<64x128xf32>
    %5 = vector.broadcast %3 : vector<1x128xf32> to vector<64x128xf32>
    %6 = arith.mulf %4, %5 : vector<64x128xf32>
    %7 = vector.extract_strided_slice %0 {offsets = [0, 1], sizes = [64, 1], strides = [1, 1]} : vector<64x4xf32> to vector<64x1xf32>
    %8 = vector.extract_strided_slice %1 {offsets = [1, 0], sizes = [1, 128], strides = [1, 1]} : vector<4x128xf32> to vector<1x128xf32>
    %9 = vector.broadcast %7 : vector<64x1xf32> to vector<64x128xf32>
    %10 = vector.broadcast %8 : vector<1x128xf32> to vector<64x128xf32>
    %11 = arith.mulf %9, %10 : vector<64x128xf32>
    %12 = arith.addf %6, %11 : vector<64x128xf32>
    %13 = vector.extract_strided_slice %0 {offsets = [0, 2], sizes = [64, 1], strides = [1, 1]} : vector<64x4xf32> to vector<64x1xf32>
    %14 = vector.extract_strided_slice %1 {offsets = [2, 0], sizes = [1, 128], strides = [1, 1]} : vector<4x128xf32> to vector<1x128xf32>
    %15 = vector.broadcast %13 : vector<64x1xf32> to vector<64x128xf32>
    %16 = vector.broadcast %14 : vector<1x128xf32> to vector<64x128xf32>
    %17 = arith.mulf %15, %16 : vector<64x128xf32>
    %18 = arith.addf %12, %17 : vector<64x128xf32>
    %19 = vector.extract_strided_slice %0 {offsets = [0, 3], sizes = [64, 1], strides = [1, 1]} : vector<64x4xf32> to vector<64x1xf32>
    %20 = vector.extract_strided_slice %1 {offsets = [3, 0], sizes = [1, 128], strides = [1, 1]} : vector<4x128xf32> to vector<1x128xf32>
    %21 = vector.broadcast %19 : vector<64x1xf32> to vector<64x128xf32>
    %22 = vector.broadcast %20 : vector<1x128xf32> to vector<64x128xf32>
    %23 = arith.mulf %21, %22 : vector<64x128xf32>
    %24 = arith.addf %18, %23 : vector<64x128xf32>
    %c0_3 = arith.constant 0 : index
    %c0_4 = arith.constant 0 : index
    %25 = vector.load %arg3[%c0_3, %c0_4] : memref<1x128xf32, #tpu.memory_space<vmem>>, vector<1x128xf32>
    %26 = vector.broadcast %25 : vector<1x128xf32> to vector<64x128xf32>
    %27 = arith.addf %24, %26 : vector<64x128xf32>
    %c0_5 = arith.constant 0 : index
    %c0_6 = arith.constant 0 : index
    %28 = vector.load %arg20[%c0_5, %c0_6] : memref<64x128xf32, #tpu.memory_space<vmem>>, vector<64x128xf32>
    tpu.vector_store %arg20[%c0_5, %c0_6], %27 {strides = array<i32>} : memref<64x128xf32, #tpu.memory_space<vmem>>, vector<64x128xf32>,
    %c0_7 = arith.constant 0 : index
    %c0_8 = arith.constant 0 : index
    %29 = vector.load %arg4[%c0_7, %c0_8] : memref<4x128xf32, #tpu.memory_space<vmem>>, vector<4x128xf32>
    %30 = vector.extract_strided_slice %0 {offsets = [0, 0], sizes = [64, 1], strides = [1, 1]} : vector<64x4xf32> to vector<64x1xf32>
    %31 = vector.extract_strided_slice %29 {offsets = [0, 0], sizes = [1, 128], strides = [1, 1]} : vector<4x128xf32> to vector<1x128xf32>
    %32 = vector.broadcast %30 : vector<64x1xf32> to vector<64x128xf32>
    %33 = vector.broadcast %31 : vector<1x128xf32> to vector<64x128xf32>
    %34 = arith.mulf %32, %33 : vector<64x128xf32>
    %35 = vector.extract_strided_slice %0 {offsets = [0, 1], sizes = [64, 1], strides = [1, 1]} : vector<64x4xf32> to vector<64x1xf32>
    %36 = vector.extract_strided_slice %29 {offsets = [1, 0], sizes = [1, 128], strides = [1, 1]} : vector<4x128xf32> to vector<1x128xf32>
    %37 = vector.broadcast %35 : vector<64x1xf32> to vector<64x128xf32>
    %38 = vector.broadcast %36 : vector<1x128xf32> to vector<64x128xf32>
    %39 = arith.mulf %37, %38 : vector<64x128xf32>
    %40 = arith.addf %34, %39 : vector<64x128xf32>
    %41 = vector.extract_strided_slice %0 {offsets = [0, 2], sizes = [64, 1], strides = [1, 1]} : vector<64x4xf32> to vector<64x1xf32>
    %42 = vector.extract_strided_slice %29 {offsets = [2, 0], sizes = [1, 128], strides = [1, 1]} : vector<4x128xf32> to vector<1x128xf32>
    %43 = vector.broadcast %41 : vector<64x1xf32> to vector<64x128xf32>
    %44 = vector.broadcast %42 : vector<1x128xf32> to vector<64x128xf32>
    %45 = arith.mulf %43, %44 : vector<64x128xf32>
    %46 = arith.addf %40, %45 : vector<64x128xf32>
    %47 = vector.extract_strided_slice %0 {offsets = [0, 3], sizes = [64, 1], strides = [1, 1]} : vector<64x4xf32> to vector<64x1xf32>
    %48 = vector.extract_strided_slice %29 {offsets = [3, 0], sizes = [1, 128], strides = [1, 1]} : vector<4x128xf32> to vector<1x128xf32>
    %49 = vector.broadcast %47 : vector<64x1xf32> to vector<64x128xf32>
    %50 = vector.broadcast %48 : vector<1x128xf32> to vector<64x128xf32>
    %51 = arith.mulf %49, %50 : vector<64x128xf32>
    %52 = arith.addf %46, %51 : vector<64x128xf32>
    %c0_9 = arith.constant 0 : index
    %c0_10 = arith.constant 0 : index
    %53 = vector.load %arg6[%c0_9, %c0_10] : memref<1x128xf32, #tpu.memory_space<vmem>>, vector<1x128xf32>
    %54 = vector.broadcast %53 : vector<1x128xf32> to vector<64x128xf32>
    %55 = arith.addf %52, %54 : vector<64x128xf32>
    %c0_11 = arith.constant 0 : index
    %c0_12 = arith.constant 0 : index
    %56 = vector.load %arg21[%c0_11, %c0_12] : memref<64x128xf32, #tpu.memory_space<vmem>>, vector<64x128xf32>
    tpu.vector_store %arg21[%c0_11, %c0_12], %55 {strides = array<i32>} : memref<64x128xf32, #tpu.memory_space<vmem>>, vector<64x128xf32>,
    %57 = vector.extract_strided_slice %0 {offsets = [56, 0], sizes = [8, 4], strides = [1, 1]} : vector<64x4xf32> to vector<8x4xf32>
    %c0_13 = arith.constant 0 : index
    %c0_14 = arith.constant 0 : index
    %58 = vector.load %arg7[%c0_13, %c0_14] : memref<4x128xf32, #tpu.memory_space<vmem>>, vector<4x128xf32>
    %59 = vector.extract_strided_slice %57 {offsets = [0, 0], sizes = [8, 1], strides = [1, 1]} : vector<8x4xf32> to vector<8x1xf32>
    %60 = vector.extract_strided_slice %58 {offsets = [0, 0], sizes = [1, 128], strides = [1, 1]} : vector<4x128xf32> to vector<1x128xf32>
    %61 = vector.broadcast %59 : vector<8x1xf32> to vector<8x128xf32>
    %62 = vector.broadcast %60 : vector<1x128xf32> to vector<8x128xf32>
    %63 = arith.mulf %61, %62 : vector<8x128xf32>
    %64 = vector.extract_strided_slice %57 {offsets = [0, 1], sizes = [8, 1], strides = [1, 1]} : vector<8x4xf32> to vector<8x1xf32>
    %65 = vector.extract_strided_slice %58 {offsets = [1, 0], sizes = [1, 128], strides = [1, 1]} : vector<4x128xf32> to vector<1x128xf32>
    %66 = vector.broadcast %64 : vector<8x1xf32> to vector<8x128xf32>
    %67 = vector.broadcast %65 : vector<1x128xf32> to vector<8x128xf32>
    %68 = arith.mulf %66, %67 : vector<8x128xf32>
    %69 = arith.addf %63, %68 : vector<8x128xf32>
    %70 = vector.extract_strided_slice %57 {offsets = [0, 2], sizes = [8, 1], strides = [1, 1]} : vector<8x4xf32> to vector<8x1xf32>
    %71 = vector.extract_strided_slice %58 {offsets = [2, 0], sizes = [1, 128], strides = [1, 1]} : vector<4x128xf32> to vector<1x128xf32>
    %72 = vector.broadcast %70 : vector<8x1xf32> to vector<8x128xf32>
    %73 = vector.broadcast %71 : vector<1x128xf32> to vector<8x128xf32>
    %74 = arith.mulf %72, %73 : vector<8x128xf32>
    %75 = arith.addf %69, %74 : vector<8x128xf32>
    %76 = vector.extract_strided_slice %57 {offsets = [0, 3], sizes = [8, 1], strides = [1, 1]} : vector<8x4xf32> to vector<8x1xf32>
    %77 = vector.extract_strided_slice %58 {offsets = [3, 0], sizes = [1, 128], strides = [1, 1]} : vector<4x128xf32> to vector<1x128xf32>
    %78 = vector.broadcast %76 : vector<8x1xf32> to vector<8x128xf32>
    %79 = vector.broadcast %77 : vector<1x128xf32> to vector<8x128xf32>
    %80 = arith.mulf %78, %79 : vector<8x128xf32>
    %81 = arith.addf %75, %80 : vector<8x128xf32>
    %c0_15 = arith.constant 0 : index
    %c0_16 = arith.constant 0 : index
    %82 = vector.load %arg9[%c0_15, %c0_16] : memref<1x128xf32, #tpu.memory_space<vmem>>, vector<1x128xf32>
    %c0_17 = arith.constant 0 : index
    %c0_18 = arith.constant 0 : index
    %83 = vector.load %arg2[%c0_17, %c0_18] : memref<32x128xbf16, #tpu.memory_space<vmem>>, vector<32x128xbf16>
    %c0_19 = arith.constant 0 : index
    %c0_20 = arith.constant 0 : index
    %84 = vector.load %arg5[%c0_19, %c0_20] : memref<32x128xbf16, #tpu.memory_space<vmem>>, vector<32x128xbf16>
    %c0_21 = arith.constant 0 : index
    %c0_22 = arith.constant 0 : index
    %85 = vector.load %arg8[%c0_21, %c0_22] : memref<32x128xbf16, #tpu.memory_space<vmem>>, vector<32x128xbf16>
    %cst = arith.constant 0.000000e+00 : f32
    %86 = vector.broadcast %cst : f32 to vector<8x32xf32>
    %c0_23 = arith.constant 0 : index
    %c0_24 = arith.constant 0 : index
    %87 = vector.load %arg20[%c0_23, %c0_24] : memref<64x128xf32, #tpu.memory_space<vmem>>, vector<8x128xf32>
    %88 = arith.truncf %86 : vector<8x32xf32> to vector<8x32xbf16>
    %cst_25 = arith.constant dense<0.000000e+00> : vector<8x128xf32>
    %89 = tpu.matmul %88, %83, %cst_25 {dimension_numbers = #tpu.dot_dimension_numbers<[1], [0], [0], [1], [0, 0, 1, 1], [], []>} : vector<8x32xbf16>, vector<32x128xbf16>, vector<8x128xf32> -> vector<8x128xf32>
    %90 = arith.addf %87, %89 : vector<8x128xf32>
    %91 = arith.negf %90 : vector<8x128xf32>
    %92 = math.exp %91 : vector<8x128xf32>
    %cst_26 = arith.constant 1.000000e+00 : f32
    %93 = vector.broadcast %cst_26 : f32 to vector<8x128xf32>
    %94 = arith.addf %93, %92 : vector<8x128xf32>
    %95 = arith.divf %93, %94 : vector<8x128xf32>
    %96 = math.tanh %90 : vector<8x128xf32>
    %97 = vector.extract_strided_slice %95 {offsets = [0, 0], sizes = [8, 32], strides = [1, 1]} : vector<8x128xf32> to vector<8x32xf32>
    %98 = vector.extract_strided_slice %95 {offsets = [0, 32], sizes = [8, 32], strides = [1, 1]} : vector<8x128xf32> to vector<8x32xf32>
    %99 = vector.extract_strided_slice %96 {offsets = [0, 64], sizes = [8, 32], strides = [1, 1]} : vector<8x128xf32> to vector<8x32xf32>
    %100 = vector.extract_strided_slice %95 {offsets = [0, 96], sizes = [8, 32], strides = [1, 1]} : vector<8x128xf32> to vector<8x32xf32>
    %101 = arith.mulf %98, %86 : vector<8x32xf32>
    %102 = arith.mulf %97, %99 : vector<8x32xf32>
    %103 = arith.addf %101, %102 : vector<8x32xf32>
    %104 = math.tanh %103 : vector<8x32xf32>
    %105 = arith.mulf %100, %104 : vector<8x32xf32>
    %c56 = arith.constant 56 : index
    %c0_27 = arith.constant 0 : index
    %106 = vector.load %arg21[%c56, %c0_27] : memref<64x128xf32, #tpu.memory_space<vmem>>, vector<8x128xf32>
    %107 = arith.truncf %86 : vector<8x32xf32> to vector<8x32xbf16>
    %cst_28 = arith.constant dense<0.000000e+00> : vector<8x128xf32>
    %108 = tpu.matmul %107, %84, %cst_28 {dimension_numbers = #tpu.dot_dimension_numbers<[1], [0], [0], [1], [0, 0, 1, 1], [], []>} : vector<8x32xbf16>, vector<32x128xbf16>, vector<8x128xf32> -> vector<8x128xf32>
    %109 = arith.addf %106, %108 : vector<8x128xf32>
    %110 = arith.negf %109 : vector<8x128xf32>
    %111 = math.exp %110 : vector<8x128xf32>
    %cst_29 = arith.constant 1.000000e+00 : f32
    %112 = vector.broadcast %cst_29 : f32 to vector<8x128xf32>
    %113 = arith.addf %112, %111 : vector<8x128xf32>
    %114 = arith.divf %112, %113 : vector<8x128xf32>
    %115 = math.tanh %109 : vector<8x128xf32>
    %116 = vector.extract_strided_slice %114 {offsets = [0, 0], sizes = [8, 32], strides = [1, 1]} : vector<8x128xf32> to vector<8x32xf32>
    %117 = vector.extract_strided_slice %114 {offsets = [0, 32], sizes = [8, 32], strides = [1, 1]} : vector<8x128xf32> to vector<8x32xf32>
    %118 = vector.extract_strided_slice %115 {offsets = [0, 64], sizes = [8, 32], strides = [1, 1]} : vector<8x128xf32> to vector<8x32xf32>
    %119 = vector.extract_strided_slice %114 {offsets = [0, 96], sizes = [8, 32], strides = [1, 1]} : vector<8x128xf32> to vector<8x32xf32>
    %120 = arith.mulf %117, %86 : vector<8x32xf32>
    %121 = arith.mulf %116, %118 : vector<8x32xf32>
    %122 = arith.addf %120, %121 : vector<8x32xf32>
    %123 = math.tanh %122 : vector<8x32xf32>
    %124 = arith.mulf %119, %123 : vector<8x32xf32>
    %c0_30 = arith.constant 0 : index
    %c0_31 = arith.constant 0 : index
    %125 = vector.load %arg22[%c0_30, %c0_31] : memref<72x32xf32, #tpu.memory_space<vmem>>, vector<8x32xf32>
    tpu.vector_store %arg22[%c0_30, %c0_31], %105 {strides = array<i32>} : memref<72x32xf32, #tpu.memory_space<vmem>>, vector<8x32xf32>,
    %c56_32 = arith.constant 56 : index
    %c0_33 = arith.constant 0 : index
    %126 = vector.load %arg23[%c56_32, %c0_33] : memref<72x32xf32, #tpu.memory_space<vmem>>, vector<8x32xf32>
    tpu.vector_store %arg23[%c56_32, %c0_33], %124 {strides = array<i32>} : memref<72x32xf32, #tpu.memory_space<vmem>>, vector<8x32xf32>,
    %127 = vector.extract_strided_slice %81 {offsets = [0, 0], sizes = [1, 128], strides = [1, 1]} : vector<8x128xf32> to vector<1x128xf32>
    %128 = vector.broadcast %127 : vector<1x128xf32> to vector<8x128xf32>
    %129 = arith.subf %128, %81 : vector<8x128xf32>
    %130 = vector.broadcast %82 : vector<1x128xf32> to vector<8x128xf32>
    %131 = arith.addf %129, %130 : vector<8x128xf32>
    %132 = arith.truncf %86 : vector<8x32xf32> to vector<8x32xbf16>
    %cst_34 = arith.constant dense<0.000000e+00> : vector<8x128xf32>
    %133 = tpu.matmul %132, %85, %cst_34 {dimension_numbers = #tpu.dot_dimension_numbers<[1], [0], [0], [1], [0, 0, 1, 1], [], []>} : vector<8x32xbf16>, vector<32x128xbf16>, vector<8x128xf32> -> vector<8x128xf32>
    %134 = arith.addf %131, %133 : vector<8x128xf32>
    %135 = arith.negf %134 : vector<8x128xf32>
    %136 = math.exp %135 : vector<8x128xf32>
    %cst_35 = arith.constant 1.000000e+00 : f32
    %137 = vector.broadcast %cst_35 : f32 to vector<8x128xf32>
    %138 = arith.addf %137, %136 : vector<8x128xf32>
    %139 = arith.divf %137, %138 : vector<8x128xf32>
    %140 = math.tanh %134 : vector<8x128xf32>
    %141 = vector.extract_strided_slice %139 {offsets = [0, 0], sizes = [8, 32], strides = [1, 1]} : vector<8x128xf32> to vector<8x32xf32>
    %142 = vector.extract_strided_slice %139 {offsets = [0, 32], sizes = [8, 32], strides = [1, 1]} : vector<8x128xf32> to vector<8x32xf32>
    %143 = vector.extract_strided_slice %140 {offsets = [0, 64], sizes = [8, 32], strides = [1, 1]} : vector<8x128xf32> to vector<8x32xf32>
    %144 = vector.extract_strided_slice %139 {offsets = [0, 96], sizes = [8, 32], strides = [1, 1]} : vector<8x128xf32> to vector<8x32xf32>
    %145 = arith.mulf %142, %86 : vector<8x32xf32>
    %146 = arith.mulf %141, %143 : vector<8x32xf32>
    %147 = arith.addf %145, %146 : vector<8x32xf32>
    %148 = math.tanh %147 : vector<8x32xf32>
    %149 = arith.mulf %144, %148 : vector<8x32xf32>
    %c8 = arith.constant 8 : index
    %c0_36 = arith.constant 0 : index
    %150 = vector.load %arg20[%c8, %c0_36] : memref<64x128xf32, #tpu.memory_space<vmem>>, vector<8x128xf32>
    %151 = arith.truncf %105 : vector<8x32xf32> to vector<8x32xbf16>
    %cst_37 = arith.constant dense<0.000000e+00> : vector<8x128xf32>
    %152 = tpu.matmul %151, %83, %cst_37 {dimension_numbers = #tpu.dot_dimension_numbers<[1], [0], [0], [1], [0, 0, 1, 1], [], []>} : vector<8x32xbf16>, vector<32x128xbf16>, vector<8x128xf32> -> vector<8x128xf32>
    %153 = arith.addf %150, %152 : vector<8x128xf32>
    %154 = arith.negf %153 : vector<8x128xf32>
    %155 = math.exp %154 : vector<8x128xf32>
    %cst_38 = arith.constant 1.000000e+00 : f32
    %156 = vector.broadcast %cst_38 : f32 to vector<8x128xf32>
    %157 = arith.addf %156, %155 : vector<8x128xf32>
    %158 = arith.divf %156, %157 : vector<8x128xf32>
    %159 = math.tanh %153 : vector<8x128xf32>
    %160 = vector.extract_strided_slice %158 {offsets = [0, 0], sizes = [8, 32], strides = [1, 1]} : vector<8x128xf32> to vector<8x32xf32>
    %161 = vector.extract_strided_slice %158 {offsets = [0, 32], sizes = [8, 32], strides = [1, 1]} : vector<8x128xf32> to vector<8x32xf32>
    %162 = vector.extract_strided_slice %159 {offsets = [0, 64], sizes = [8, 32], strides = [1, 1]} : vector<8x128xf32> to vector<8x32xf32>
    %163 = vector.extract_strided_slice %158 {offsets = [0, 96], sizes = [8, 32], strides = [1, 1]} : vector<8x128xf32> to vector<8x32xf32>
    %164 = arith.mulf %161, %103 : vector<8x32xf32>
    %165 = arith.mulf %160, %162 : vector<8x32xf32>
    %166 = arith.addf %164, %165 : vector<8x32xf32>
    %167 = math.tanh %166 : vector<8x32xf32>
    %168 = arith.mulf %163, %167 : vector<8x32xf32>
    %c48 = arith.constant 48 : index
    %c0_39 = arith.constant 0 : index
    %169 = vector.load %arg21[%c48, %c0_39] : memref<64x128xf32, #tpu.memory_space<vmem>>, vector<8x128xf32>
    %170 = arith.truncf %124 : vector<8x32xf32> to vector<8x32xbf16>
    %cst_40 = arith.constant dense<0.000000e+00> : vector<8x128xf32>
    %171 = tpu.matmul %170, %84, %cst_40 {dimension_numbers = #tpu.dot_dimension_numbers<[1], [0], [0], [1], [0, 0, 1, 1], [], []>} : vector<8x32xbf16>, vector<32x128xbf16>, vector<8x128xf32> -> vector<8x128xf32>
    %172 = arith.addf %169, %171 : vector<8x128xf32>
    %173 = arith.negf %172 : vector<8x128xf32>
    %174 = math.exp %173 : vector<8x128xf32>
    %cst_41 = arith.constant 1.000000e+00 : f32
    %175 = vector.broadcast %cst_41 : f32 to vector<8x128xf32>
    %176 = arith.addf %175, %174 : vector<8x128xf32>
    %177 = arith.divf %175, %176 : vector<8x128xf32>
    %178 = math.tanh %172 : vector<8x128xf32>
    %179 = vector.extract_strided_slice %177 {offsets = [0, 0], sizes = [8, 32], strides = [1, 1]} : vector<8x128xf32> to vector<8x32xf32>
    %180 = vector.extract_strided_slice %177 {offsets = [0, 32], sizes = [8, 32], strides = [1, 1]} : vector<8x128xf32> to vector<8x32xf32>
    %181 = vector.extract_strided_slice %178 {offsets = [0, 64], sizes = [8, 32], strides = [1, 1]} : vector<8x128xf32> to vector<8x32xf32>
    %182 = vector.extract_strided_slice %177 {offsets = [0, 96], sizes = [8, 32], strides = [1, 1]} : vector<8x128xf32> to vector<8x32xf32>
    %183 = arith.mulf %180, %122 : vector<8x32xf32>
    %184 = arith.mulf %179, %181 : vector<8x32xf32>
    %185 = arith.addf %183, %184 : vector<8x32xf32>
    %186 = math.tanh %185 : vector<8x32xf32>
    %187 = arith.mulf %182, %186 : vector<8x32xf32>
    %c8_42 = arith.constant 8 : index
    %c0_43 = arith.constant 0 : index
    %188 = vector.load %arg22[%c8_42, %c0_43] : memref<72x32xf32, #tpu.memory_space<vmem>>, vector<8x32xf32>
    tpu.vector_store %arg22[%c8_42, %c0_43], %168 {strides = array<i32>} : memref<72x32xf32, #tpu.memory_space<vmem>>, vector<8x32xf32>,
    %c48_44 = arith.constant 48 : index
    %c0_45 = arith.constant 0 : index
    %189 = vector.load %arg23[%c48_44, %c0_45] : memref<72x32xf32, #tpu.memory_space<vmem>>, vector<8x32xf32>
    tpu.vector_store %arg23[%c48_44, %c0_45], %187 {strides = array<i32>} : memref<72x32xf32, #tpu.memory_space<vmem>>, vector<8x32xf32>,
    %190 = vector.extract_strided_slice %81 {offsets = [1, 0], sizes = [1, 128], strides = [1, 1]} : vector<8x128xf32> to vector<1x128xf32>
    %191 = vector.broadcast %190 : vector<1x128xf32> to vector<8x128xf32>
    %192 = arith.subf %191, %81 : vector<8x128xf32>
    %193 = vector.broadcast %82 : vector<1x128xf32> to vector<8x128xf32>
    %194 = arith.addf %192, %193 : vector<8x128xf32>
    %195 = arith.truncf %149 : vector<8x32xf32> to vector<8x32xbf16>
    %cst_46 = arith.constant dense<0.000000e+00> : vector<8x128xf32>
    %196 = tpu.matmul %195, %85, %cst_46 {dimension_numbers = #tpu.dot_dimension_numbers<[1], [0], [0], [1], [0, 0, 1, 1], [], []>} : vector<8x32xbf16>, vector<32x128xbf16>, vector<8x128xf32> -> vector<8x128xf32>
    %197 = arith.addf %194, %196 : vector<8x128xf32>
    %198 = arith.negf %197 : vector<8x128xf32>
    %199 = math.exp %198 : vector<8x128xf32>
    %cst_47 = arith.constant 1.000000e+00 : f32
    %200 = vector.broadcast %cst_47 : f32 to vector<8x128xf32>
    %201 = arith.addf %200, %199 : vector<8x128xf32>
    %202 = arith.divf %200, %201 : vector<8x128xf32>
    %203 = math.tanh %197 : vector<8x128xf32>
    %204 = vector.extract_strided_slice %202 {offsets = [0, 0], sizes = [8, 32], strides = [1, 1]} : vector<8x128xf32> to vector<8x32xf32>
    %205 = vector.extract_strided_slice %202 {offsets = [0, 32], sizes = [8, 32], strides = [1, 1]} : vector<8x128xf32> to vector<8x32xf32>
    %206 = vector.extract_strided_slice %203 {offsets = [0, 64], sizes = [8, 32], strides = [1, 1]} : vector<8x128xf32> to vector<8x32xf32>
    %207 = vector.extract_strided_slice %202 {offsets = [0, 96], sizes = [8, 32], strides = [1, 1]} : vector<8x128xf32> to vector<8x32xf32>
    %208 = arith.mulf %205, %147 : vector<8x32xf32>
    %209 = arith.mulf %204, %206 : vector<8x32xf32>
    %210 = arith.addf %208, %209 : vector<8x32xf32>
    %211 = math.tanh %210 : vector<8x32xf32>
    %212 = arith.mulf %207, %211 : vector<8x32xf32>
    %c16 = arith.constant 16 : index
    %c0_48 = arith.constant 0 : index
    %213 = vector.load %arg20[%c16, %c0_48] : memref<64x128xf32, #tpu.memory_space<vmem>>, vector<8x128xf32>
    %214 = arith.truncf %168 : vector<8x32xf32> to vector<8x32xbf16>
    %cst_49 = arith.constant dense<0.000000e+00> : vector<8x128xf32>
    %215 = tpu.matmul %214, %83, %cst_49 {dimension_numbers = #tpu.dot_dimension_numbers<[1], [0], [0], [1], [0, 0, 1, 1], [], []>} : vector<8x32xbf16>, vector<32x128xbf16>, vector<8x128xf32> -> vector<8x128xf32>
    %216 = arith.addf %213, %215 : vector<8x128xf32>
    %217 = arith.negf %216 : vector<8x128xf32>
    %218 = math.exp %217 : vector<8x128xf32>
    %cst_50 = arith.constant 1.000000e+00 : f32
    %219 = vector.broadcast %cst_50 : f32 to vector<8x128xf32>
    %220 = arith.addf %219, %218 : vector<8x128xf32>
    %221 = arith.divf %219, %220 : vector<8x128xf32>
    %222 = math.tanh %216 : vector<8x128xf32>
    %223 = vector.extract_strided_slice %221 {offsets = [0, 0], sizes = [8, 32], strides = [1, 1]} : vector<8x128xf32> to vector<8x32xf32>
    %224 = vector.extract_strided_slice %221 {offsets = [0, 32], sizes = [8, 32], strides = [1, 1]} : vector<8x128xf32> to vector<8x32xf32>
    %225 = vector.extract_strided_slice %222 {offsets = [0, 64], sizes = [8, 32], strides = [1, 1]} : vector<8x128xf32> to vector<8x32xf32>
    %226 = vector.extract_strided_slice %221 {offsets = [0, 96], sizes = [8, 32], strides = [1, 1]} : vector<8x128xf32> to vector<8x32xf32>
    %227 = arith.mulf %224, %166 : vector<8x32xf32>
    %228 = arith.mulf %223, %225 : vector<8x32xf32>
    %229 = arith.addf %227, %228 : vector<8x32xf32>
    %230 = math.tanh %229 : vector<8x32xf32>
    %231 = arith.mulf %226, %230 : vector<8x32xf32>
    %c40 = arith.constant 40 : index
    %c0_51 = arith.constant 0 : index
    %232 = vector.load %arg21[%c40, %c0_51] : memref<64x128xf32, #tpu.memory_space<vmem>>, vector<8x128xf32>
    %233 = arith.truncf %187 : vector<8x32xf32> to vector<8x32xbf16>
    %cst_52 = arith.constant dense<0.000000e+00> : vector<8x128xf32>
    %234 = tpu.matmul %233, %84, %cst_52 {dimension_numbers = #tpu.dot_dimension_numbers<[1], [0], [0], [1], [0, 0, 1, 1], [], []>} : vector<8x32xbf16>, vector<32x128xbf16>, vector<8x128xf32> -> vector<8x128xf32>
    %235 = arith.addf %232, %234 : vector<8x128xf32>
    %236 = arith.negf %235 : vector<8x128xf32>
    %237 = math.exp %236 : vector<8x128xf32>
    %cst_53 = arith.constant 1.000000e+00 : f32
    %238 = vector.broadcast %cst_53 : f32 to vector<8x128xf32>
    %239 = arith.addf %238, %237 : vector<8x128xf32>
    %240 = arith.divf %238, %239 : vector<8x128xf32>
    %241 = math.tanh %235 : vector<8x128xf32>
    %242 = vector.extract_strided_slice %240 {offsets = [0, 0], sizes = [8, 32], strides = [1, 1]} : vector<8x128xf32> to vector<8x32xf32>
    %243 = vector.extract_strided_slice %240 {offsets = [0, 32], sizes = [8, 32], strides = [1, 1]} : vector<8x128xf32> to vector<8x32xf32>
    %244 = vector.extract_strided_slice %241 {offsets = [0, 64], sizes = [8, 32], strides = [1, 1]} : vector<8x128xf32> to vector<8x32xf32>
    %245 = vector.extract_strided_slice %240 {offsets = [0, 96], sizes = [8, 32], strides = [1, 1]} : vector<8x128xf32> to vector<8x32xf32>
    %246 = arith.mulf %243, %185 : vector<8x32xf32>
    %247 = arith.mulf %242, %244 : vector<8x32xf32>
    %248 = arith.addf %246, %247 : vector<8x32xf32>
    %249 = math.tanh %248 : vector<8x32xf32>
    %250 = arith.mulf %245, %249 : vector<8x32xf32>
    %c16_54 = arith.constant 16 : index
    %c0_55 = arith.constant 0 : index
    %251 = vector.load %arg22[%c16_54, %c0_55] : memref<72x32xf32, #tpu.memory_space<vmem>>, vector<8x32xf32>
    tpu.vector_store %arg22[%c16_54, %c0_55], %231 {strides = array<i32>} : memref<72x32xf32, #tpu.memory_space<vmem>>, vector<8x32xf32>,
    %c40_56 = arith.constant 40 : index
    %c0_57 = arith.constant 0 : index
    %252 = vector.load %arg23[%c40_56, %c0_57] : memref<72x32xf32, #tpu.memory_space<vmem>>, vector<8x32xf32>
    tpu.vector_store %arg23[%c40_56, %c0_57], %250 {strides = array<i32>} : memref<72x32xf32, #tpu.memory_space<vmem>>, vector<8x32xf32>,
    %253 = vector.extract_strided_slice %81 {offsets = [2, 0], sizes = [1, 128], strides = [1, 1]} : vector<8x128xf32> to vector<1x128xf32>
    %254 = vector.broadcast %253 : vector<1x128xf32> to vector<8x128xf32>
    %255 = arith.subf %254, %81 : vector<8x128xf32>
    %256 = vector.broadcast %82 : vector<1x128xf32> to vector<8x128xf32>
    %257 = arith.addf %255, %256 : vector<8x128xf32>
    %258 = arith.truncf %212 : vector<8x32xf32> to vector<8x32xbf16>
    %cst_58 = arith.constant dense<0.000000e+00> : vector<8x128xf32>
    %259 = tpu.matmul %258, %85, %cst_58 {dimension_numbers = #tpu.dot_dimension_numbers<[1], [0], [0], [1], [0, 0, 1, 1], [], []>} : vector<8x32xbf16>, vector<32x128xbf16>, vector<8x128xf32> -> vector<8x128xf32>
    %260 = arith.addf %257, %259 : vector<8x128xf32>
    %261 = arith.negf %260 : vector<8x128xf32>
    %262 = math.exp %261 : vector<8x128xf32>
    %cst_59 = arith.constant 1.000000e+00 : f32
    %263 = vector.broadcast %cst_59 : f32 to vector<8x128xf32>
    %264 = arith.addf %263, %262 : vector<8x128xf32>
    %265 = arith.divf %263, %264 : vector<8x128xf32>
    %266 = math.tanh %260 : vector<8x128xf32>
    %267 = vector.extract_strided_slice %265 {offsets = [0, 0], sizes = [8, 32], strides = [1, 1]} : vector<8x128xf32> to vector<8x32xf32>
    %268 = vector.extract_strided_slice %265 {offsets = [0, 32], sizes = [8, 32], strides = [1, 1]} : vector<8x128xf32> to vector<8x32xf32>
    %269 = vector.extract_strided_slice %266 {offsets = [0, 64], sizes = [8, 32], strides = [1, 1]} : vector<8x128xf32> to vector<8x32xf32>
    %270 = vector.extract_strided_slice %265 {offsets = [0, 96], sizes = [8, 32], strides = [1, 1]} : vector<8x128xf32> to vector<8x32xf32>
    %271 = arith.mulf %268, %210 : vector<8x32xf32>
    %272 = arith.mulf %267, %269 : vector<8x32xf32>
    %273 = arith.addf %271, %272 : vector<8x32xf32>
    %274 = math.tanh %273 : vector<8x32xf32>
    %275 = arith.mulf %270, %274 : vector<8x32xf32>
    %c24 = arith.constant 24 : index
    %c0_60 = arith.constant 0 : index
    %276 = vector.load %arg20[%c24, %c0_60] : memref<64x128xf32, #tpu.memory_space<vmem>>, vector<8x128xf32>
    %277 = arith.truncf %231 : vector<8x32xf32> to vector<8x32xbf16>
    %cst_61 = arith.constant dense<0.000000e+00> : vector<8x128xf32>
    %278 = tpu.matmul %277, %83, %cst_61 {dimension_numbers = #tpu.dot_dimension_numbers<[1], [0], [0], [1], [0, 0, 1, 1], [], []>} : vector<8x32xbf16>, vector<32x128xbf16>, vector<8x128xf32> -> vector<8x128xf32>
    %279 = arith.addf %276, %278 : vector<8x128xf32>
    %280 = arith.negf %279 : vector<8x128xf32>
    %281 = math.exp %280 : vector<8x128xf32>
    %cst_62 = arith.constant 1.000000e+00 : f32
    %282 = vector.broadcast %cst_62 : f32 to vector<8x128xf32>
    %283 = arith.addf %282, %281 : vector<8x128xf32>
    %284 = arith.divf %282, %283 : vector<8x128xf32>
    %285 = math.tanh %279 : vector<8x128xf32>
    %286 = vector.extract_strided_slice %284 {offsets = [0, 0], sizes = [8, 32], strides = [1, 1]} : vector<8x128xf32> to vector<8x32xf32>
    %287 = vector.extract_strided_slice %284 {offsets = [0, 32], sizes = [8, 32], strides = [1, 1]} : vector<8x128xf32> to vector<8x32xf32>
    %288 = vector.extract_strided_slice %285 {offsets = [0, 64], sizes = [8, 32], strides = [1, 1]} : vector<8x128xf32> to vector<8x32xf32>
    %289 = vector.extract_strided_slice %284 {offsets = [0, 96], sizes = [8, 32], strides = [1, 1]} : vector<8x128xf32> to vector<8x32xf32>
    %290 = arith.mulf %287, %229 : vector<8x32xf32>
    %291 = arith.mulf %286, %288 : vector<8x32xf32>
    %292 = arith.addf %290, %291 : vector<8x32xf32>
    %293 = math.tanh %292 : vector<8x32xf32>
    %294 = arith.mulf %289, %293 : vector<8x32xf32>
    %c32 = arith.constant 32 : index
    %c0_63 = arith.constant 0 : index
    %295 = vector.load %arg21[%c32, %c0_63] : memref<64x128xf32, #tpu.memory_space<vmem>>, vector<8x128xf32>
    %296 = arith.truncf %250 : vector<8x32xf32> to vector<8x32xbf16>
    %cst_64 = arith.constant dense<0.000000e+00> : vector<8x128xf32>
    %297 = tpu.matmul %296, %84, %cst_64 {dimension_numbers = #tpu.dot_dimension_numbers<[1], [0], [0], [1], [0, 0, 1, 1], [], []>} : vector<8x32xbf16>, vector<32x128xbf16>, vector<8x128xf32> -> vector<8x128xf32>
    %298 = arith.addf %295, %297 : vector<8x128xf32>
    %299 = arith.negf %298 : vector<8x128xf32>
    %300 = math.exp %299 : vector<8x128xf32>
    %cst_65 = arith.constant 1.000000e+00 : f32
    %301 = vector.broadcast %cst_65 : f32 to vector<8x128xf32>
    %302 = arith.addf %301, %300 : vector<8x128xf32>
    %303 = arith.divf %301, %302 : vector<8x128xf32>
    %304 = math.tanh %298 : vector<8x128xf32>
    %305 = vector.extract_strided_slice %303 {offsets = [0, 0], sizes = [8, 32], strides = [1, 1]} : vector<8x128xf32> to vector<8x32xf32>
    %306 = vector.extract_strided_slice %303 {offsets = [0, 32], sizes = [8, 32], strides = [1, 1]} : vector<8x128xf32> to vector<8x32xf32>
    %307 = vector.extract_strided_slice %304 {offsets = [0, 64], sizes = [8, 32], strides = [1, 1]} : vector<8x128xf32> to vector<8x32xf32>
    %308 = vector.extract_strided_slice %303 {offsets = [0, 96], sizes = [8, 32], strides = [1, 1]} : vector<8x128xf32> to vector<8x32xf32>
    %309 = arith.mulf %306, %248 : vector<8x32xf32>
    %310 = arith.mulf %305, %307 : vector<8x32xf32>
    %311 = arith.addf %309, %310 : vector<8x32xf32>
    %312 = math.tanh %311 : vector<8x32xf32>
    %313 = arith.mulf %308, %312 : vector<8x32xf32>
    %c24_66 = arith.constant 24 : index
    %c0_67 = arith.constant 0 : index
    %314 = vector.load %arg22[%c24_66, %c0_67] : memref<72x32xf32, #tpu.memory_space<vmem>>, vector<8x32xf32>
    tpu.vector_store %arg22[%c24_66, %c0_67], %294 {strides = array<i32>} : memref<72x32xf32, #tpu.memory_space<vmem>>, vector<8x32xf32>,
    %c32_68 = arith.constant 32 : index
    %c0_69 = arith.constant 0 : index
    %315 = vector.load %arg23[%c32_68, %c0_69] : memref<72x32xf32, #tpu.memory_space<vmem>>, vector<8x32xf32>
    tpu.vector_store %arg23[%c32_68, %c0_69], %313 {strides = array<i32>} : memref<72x32xf32, #tpu.memory_space<vmem>>, vector<8x32xf32>,
    %316 = vector.extract_strided_slice %81 {offsets = [3, 0], sizes = [1, 128], strides = [1, 1]} : vector<8x128xf32> to vector<1x128xf32>
    %317 = vector.broadcast %316 : vector<1x128xf32> to vector<8x128xf32>
    %318 = arith.subf %317, %81 : vector<8x128xf32>
    %319 = vector.broadcast %82 : vector<1x128xf32> to vector<8x128xf32>
    %320 = arith.addf %318, %319 : vector<8x128xf32>
    %321 = arith.truncf %275 : vector<8x32xf32> to vector<8x32xbf16>
    %cst_70 = arith.constant dense<0.000000e+00> : vector<8x128xf32>
    %322 = tpu.matmul %321, %85, %cst_70 {dimension_numbers = #tpu.dot_dimension_numbers<[1], [0], [0], [1], [0, 0, 1, 1], [], []>} : vector<8x32xbf16>, vector<32x128xbf16>, vector<8x128xf32> -> vector<8x128xf32>
    %323 = arith.addf %320, %322 : vector<8x128xf32>
    %324 = arith.negf %323 : vector<8x128xf32>
    %325 = math.exp %324 : vector<8x128xf32>
    %cst_71 = arith.constant 1.000000e+00 : f32
    %326 = vector.broadcast %cst_71 : f32 to vector<8x128xf32>
    %327 = arith.addf %326, %325 : vector<8x128xf32>
    %328 = arith.divf %326, %327 : vector<8x128xf32>
    %329 = math.tanh %323 : vector<8x128xf32>
    %330 = vector.extract_strided_slice %328 {offsets = [0, 0], sizes = [8, 32], strides = [1, 1]} : vector<8x128xf32> to vector<8x32xf32>
    %331 = vector.extract_strided_slice %328 {offsets = [0, 32], sizes = [8, 32], strides = [1, 1]} : vector<8x128xf32> to vector<8x32xf32>
    %332 = vector.extract_strided_slice %329 {offsets = [0, 64], sizes = [8, 32], strides = [1, 1]} : vector<8x128xf32> to vector<8x32xf32>
    %333 = vector.extract_strided_slice %328 {offsets = [0, 96], sizes = [8, 32], strides = [1, 1]} : vector<8x128xf32> to vector<8x32xf32>
    %334 = arith.mulf %331, %273 : vector<8x32xf32>
    %335 = arith.mulf %330, %332 : vector<8x32xf32>
    %336 = arith.addf %334, %335 : vector<8x32xf32>
    %337 = math.tanh %336 : vector<8x32xf32>
    %338 = arith.mulf %333, %337 : vector<8x32xf32>
    %c32_72 = arith.constant 32 : index
    %c0_73 = arith.constant 0 : index
    %339 = vector.load %arg20[%c32_72, %c0_73] : memref<64x128xf32, #tpu.memory_space<vmem>>, vector<8x128xf32>
    %340 = arith.truncf %294 : vector<8x32xf32> to vector<8x32xbf16>
    %cst_74 = arith.constant dense<0.000000e+00> : vector<8x128xf32>
    %341 = tpu.matmul %340, %83, %cst_74 {dimension_numbers = #tpu.dot_dimension_numbers<[1], [0], [0], [1], [0, 0, 1, 1], [], []>} : vector<8x32xbf16>, vector<32x128xbf16>, vector<8x128xf32> -> vector<8x128xf32>
    %342 = arith.addf %339, %341 : vector<8x128xf32>
    %343 = arith.negf %342 : vector<8x128xf32>
    %344 = math.exp %343 : vector<8x128xf32>
    %cst_75 = arith.constant 1.000000e+00 : f32
    %345 = vector.broadcast %cst_75 : f32 to vector<8x128xf32>
    %346 = arith.addf %345, %344 : vector<8x128xf32>
    %347 = arith.divf %345, %346 : vector<8x128xf32>
    %348 = math.tanh %342 : vector<8x128xf32>
    %349 = vector.extract_strided_slice %347 {offsets = [0, 0], sizes = [8, 32], strides = [1, 1]} : vector<8x128xf32> to vector<8x32xf32>
    %350 = vector.extract_strided_slice %347 {offsets = [0, 32], sizes = [8, 32], strides = [1, 1]} : vector<8x128xf32> to vector<8x32xf32>
    %351 = vector.extract_strided_slice %348 {offsets = [0, 64], sizes = [8, 32], strides = [1, 1]} : vector<8x128xf32> to vector<8x32xf32>
    %352 = vector.extract_strided_slice %347 {offsets = [0, 96], sizes = [8, 32], strides = [1, 1]} : vector<8x128xf32> to vector<8x32xf32>
    %353 = arith.mulf %350, %292 : vector<8x32xf32>
    %354 = arith.mulf %349, %351 : vector<8x32xf32>
    %355 = arith.addf %353, %354 : vector<8x32xf32>
    %356 = math.tanh %355 : vector<8x32xf32>
    %357 = arith.mulf %352, %356 : vector<8x32xf32>
    %c24_76 = arith.constant 24 : index
    %c0_77 = arith.constant 0 : index
    %358 = vector.load %arg21[%c24_76, %c0_77] : memref<64x128xf32, #tpu.memory_space<vmem>>, vector<8x128xf32>
    %359 = arith.truncf %313 : vector<8x32xf32> to vector<8x32xbf16>
    %cst_78 = arith.constant dense<0.000000e+00> : vector<8x128xf32>
    %360 = tpu.matmul %359, %84, %cst_78 {dimension_numbers = #tpu.dot_dimension_numbers<[1], [0], [0], [1], [0, 0, 1, 1], [], []>} : vector<8x32xbf16>, vector<32x128xbf16>, vector<8x128xf32> -> vector<8x128xf32>
    %361 = arith.addf %358, %360 : vector<8x128xf32>
    %362 = arith.negf %361 : vector<8x128xf32>
    %363 = math.exp %362 : vector<8x128xf32>
    %cst_79 = arith.constant 1.000000e+00 : f32
    %364 = vector.broadcast %cst_79 : f32 to vector<8x128xf32>
    %365 = arith.addf %364, %363 : vector<8x128xf32>
    %366 = arith.divf %364, %365 : vector<8x128xf32>
    %367 = math.tanh %361 : vector<8x128xf32>
    %368 = vector.extract_strided_slice %366 {offsets = [0, 0], sizes = [8, 32], strides = [1, 1]} : vector<8x128xf32> to vector<8x32xf32>
    %369 = vector.extract_strided_slice %366 {offsets = [0, 32], sizes = [8, 32], strides = [1, 1]} : vector<8x128xf32> to vector<8x32xf32>
    %370 = vector.extract_strided_slice %367 {offsets = [0, 64], sizes = [8, 32], strides = [1, 1]} : vector<8x128xf32> to vector<8x32xf32>
    %371 = vector.extract_strided_slice %366 {offsets = [0, 96], sizes = [8, 32], strides = [1, 1]} : vector<8x128xf32> to vector<8x32xf32>
    %372 = arith.mulf %369, %311 : vector<8x32xf32>
    %373 = arith.mulf %368, %370 : vector<8x32xf32>
    %374 = arith.addf %372, %373 : vector<8x32xf32>
    %375 = math.tanh %374 : vector<8x32xf32>
    %376 = arith.mulf %371, %375 : vector<8x32xf32>
    %c32_80 = arith.constant 32 : index
    %c0_81 = arith.constant 0 : index
    %377 = vector.load %arg22[%c32_80, %c0_81] : memref<72x32xf32, #tpu.memory_space<vmem>>, vector<8x32xf32>
    tpu.vector_store %arg22[%c32_80, %c0_81], %357 {strides = array<i32>} : memref<72x32xf32, #tpu.memory_space<vmem>>, vector<8x32xf32>,
    %c24_82 = arith.constant 24 : index
    %c0_83 = arith.constant 0 : index
    %378 = vector.load %arg23[%c24_82, %c0_83] : memref<72x32xf32, #tpu.memory_space<vmem>>, vector<8x32xf32>
    tpu.vector_store %arg23[%c24_82, %c0_83], %376 {strides = array<i32>} : memref<72x32xf32, #tpu.memory_space<vmem>>, vector<8x32xf32>,
    %379 = vector.extract_strided_slice %81 {offsets = [4, 0], sizes = [1, 128], strides = [1, 1]} : vector<8x128xf32> to vector<1x128xf32>
    %380 = vector.broadcast %379 : vector<1x128xf32> to vector<8x128xf32>
    %381 = arith.subf %380, %81 : vector<8x128xf32>
    %382 = vector.broadcast %82 : vector<1x128xf32> to vector<8x128xf32>
    %383 = arith.addf %381, %382 : vector<8x128xf32>
    %384 = arith.truncf %338 : vector<8x32xf32> to vector<8x32xbf16>
    %cst_84 = arith.constant dense<0.000000e+00> : vector<8x128xf32>
    %385 = tpu.matmul %384, %85, %cst_84 {dimension_numbers = #tpu.dot_dimension_numbers<[1], [0], [0], [1], [0, 0, 1, 1], [], []>} : vector<8x32xbf16>, vector<32x128xbf16>, vector<8x128xf32> -> vector<8x128xf32>
    %386 = arith.addf %383, %385 : vector<8x128xf32>
    %387 = arith.negf %386 : vector<8x128xf32>
    %388 = math.exp %387 : vector<8x128xf32>
    %cst_85 = arith.constant 1.000000e+00 : f32
    %389 = vector.broadcast %cst_85 : f32 to vector<8x128xf32>
    %390 = arith.addf %389, %388 : vector<8x128xf32>
    %391 = arith.divf %389, %390 : vector<8x128xf32>
    %392 = math.tanh %386 : vector<8x128xf32>
    %393 = vector.extract_strided_slice %391 {offsets = [0, 0], sizes = [8, 32], strides = [1, 1]} : vector<8x128xf32> to vector<8x32xf32>
    %394 = vector.extract_strided_slice %391 {offsets = [0, 32], sizes = [8, 32], strides = [1, 1]} : vector<8x128xf32> to vector<8x32xf32>
    %395 = vector.extract_strided_slice %392 {offsets = [0, 64], sizes = [8, 32], strides = [1, 1]} : vector<8x128xf32> to vector<8x32xf32>
    %396 = vector.extract_strided_slice %391 {offsets = [0, 96], sizes = [8, 32], strides = [1, 1]} : vector<8x128xf32> to vector<8x32xf32>
    %397 = arith.mulf %394, %336 : vector<8x32xf32>
    %398 = arith.mulf %393, %395 : vector<8x32xf32>
    %399 = arith.addf %397, %398 : vector<8x32xf32>
    %400 = math.tanh %399 : vector<8x32xf32>
    %401 = arith.mulf %396, %400 : vector<8x32xf32>
    %c40_86 = arith.constant 40 : index
    %c0_87 = arith.constant 0 : index
    %402 = vector.load %arg20[%c40_86, %c0_87] : memref<64x128xf32, #tpu.memory_space<vmem>>, vector<8x128xf32>
    %403 = arith.truncf %357 : vector<8x32xf32> to vector<8x32xbf16>
    %cst_88 = arith.constant dense<0.000000e+00> : vector<8x128xf32>
    %404 = tpu.matmul %403, %83, %cst_88 {dimension_numbers = #tpu.dot_dimension_numbers<[1], [0], [0], [1], [0, 0, 1, 1], [], []>} : vector<8x32xbf16>, vector<32x128xbf16>, vector<8x128xf32> -> vector<8x128xf32>
    %405 = arith.addf %402, %404 : vector<8x128xf32>
    %406 = arith.negf %405 : vector<8x128xf32>
    %407 = math.exp %406 : vector<8x128xf32>
    %cst_89 = arith.constant 1.000000e+00 : f32
    %408 = vector.broadcast %cst_89 : f32 to vector<8x128xf32>
    %409 = arith.addf %408, %407 : vector<8x128xf32>
    %410 = arith.divf %408, %409 : vector<8x128xf32>
    %411 = math.tanh %405 : vector<8x128xf32>
    %412 = vector.extract_strided_slice %410 {offsets = [0, 0], sizes = [8, 32], strides = [1, 1]} : vector<8x128xf32> to vector<8x32xf32>
    %413 = vector.extract_strided_slice %410 {offsets = [0, 32], sizes = [8, 32], strides = [1, 1]} : vector<8x128xf32> to vector<8x32xf32>
    %414 = vector.extract_strided_slice %411 {offsets = [0, 64], sizes = [8, 32], strides = [1, 1]} : vector<8x128xf32> to vector<8x32xf32>
    %415 = vector.extract_strided_slice %410 {offsets = [0, 96], sizes = [8, 32], strides = [1, 1]} : vector<8x128xf32> to vector<8x32xf32>
    %416 = arith.mulf %413, %355 : vector<8x32xf32>
    %417 = arith.mulf %412, %414 : vector<8x32xf32>
    %418 = arith.addf %416, %417 : vector<8x32xf32>
    %419 = math.tanh %418 : vector<8x32xf32>
    %420 = arith.mulf %415, %419 : vector<8x32xf32>
    %c16_90 = arith.constant 16 : index
    %c0_91 = arith.constant 0 : index
    %421 = vector.load %arg21[%c16_90, %c0_91] : memref<64x128xf32, #tpu.memory_space<vmem>>, vector<8x128xf32>
    %422 = arith.truncf %376 : vector<8x32xf32> to vector<8x32xbf16>
    %cst_92 = arith.constant dense<0.000000e+00> : vector<8x128xf32>
    %423 = tpu.matmul %422, %84, %cst_92 {dimension_numbers = #tpu.dot_dimension_numbers<[1], [0], [0], [1], [0, 0, 1, 1], [], []>} : vector<8x32xbf16>, vector<32x128xbf16>, vector<8x128xf32> -> vector<8x128xf32>
    %424 = arith.addf %421, %423 : vector<8x128xf32>
    %425 = arith.negf %424 : vector<8x128xf32>
    %426 = math.exp %425 : vector<8x128xf32>
    %cst_93 = arith.constant 1.000000e+00 : f32
    %427 = vector.broadcast %cst_93 : f32 to vector<8x128xf32>
    %428 = arith.addf %427, %426 : vector<8x128xf32>
    %429 = arith.divf %427, %428 : vector<8x128xf32>
    %430 = math.tanh %424 : vector<8x128xf32>
    %431 = vector.extract_strided_slice %429 {offsets = [0, 0], sizes = [8, 32], strides = [1, 1]} : vector<8x128xf32> to vector<8x32xf32>
    %432 = vector.extract_strided_slice %429 {offsets = [0, 32], sizes = [8, 32], strides = [1, 1]} : vector<8x128xf32> to vector<8x32xf32>
    %433 = vector.extract_strided_slice %430 {offsets = [0, 64], sizes = [8, 32], strides = [1, 1]} : vector<8x128xf32> to vector<8x32xf32>
    %434 = vector.extract_strided_slice %429 {offsets = [0, 96], sizes = [8, 32], strides = [1, 1]} : vector<8x128xf32> to vector<8x32xf32>
    %435 = arith.mulf %432, %374 : vector<8x32xf32>
    %436 = arith.mulf %431, %433 : vector<8x32xf32>
    %437 = arith.addf %435, %436 : vector<8x32xf32>
    %438 = math.tanh %437 : vector<8x32xf32>
    %439 = arith.mulf %434, %438 : vector<8x32xf32>
    %c40_94 = arith.constant 40 : index
    %c0_95 = arith.constant 0 : index
    %440 = vector.load %arg22[%c40_94, %c0_95] : memref<72x32xf32, #tpu.memory_space<vmem>>, vector<8x32xf32>
    tpu.vector_store %arg22[%c40_94, %c0_95], %420 {strides = array<i32>} : memref<72x32xf32, #tpu.memory_space<vmem>>, vector<8x32xf32>,
    %c16_96 = arith.constant 16 : index
    %c0_97 = arith.constant 0 : index
    %441 = vector.load %arg23[%c16_96, %c0_97] : memref<72x32xf32, #tpu.memory_space<vmem>>, vector<8x32xf32>
    tpu.vector_store %arg23[%c16_96, %c0_97], %439 {strides = array<i32>} : memref<72x32xf32, #tpu.memory_space<vmem>>, vector<8x32xf32>,
    %442 = vector.extract_strided_slice %81 {offsets = [5, 0], sizes = [1, 128], strides = [1, 1]} : vector<8x128xf32> to vector<1x128xf32>
    %443 = vector.broadcast %442 : vector<1x128xf32> to vector<8x128xf32>
    %444 = arith.subf %443, %81 : vector<8x128xf32>
    %445 = vector.broadcast %82 : vector<1x128xf32> to vector<8x128xf32>
    %446 = arith.addf %444, %445 : vector<8x128xf32>
    %447 = arith.truncf %401 : vector<8x32xf32> to vector<8x32xbf16>
    %cst_98 = arith.constant dense<0.000000e+00> : vector<8x128xf32>
    %448 = tpu.matmul %447, %85, %cst_98 {dimension_numbers = #tpu.dot_dimension_numbers<[1], [0], [0], [1], [0, 0, 1, 1], [], []>} : vector<8x32xbf16>, vector<32x128xbf16>, vector<8x128xf32> -> vector<8x128xf32>
    %449 = arith.addf %446, %448 : vector<8x128xf32>
    %450 = arith.negf %449 : vector<8x128xf32>
    %451 = math.exp %450 : vector<8x128xf32>
    %cst_99 = arith.constant 1.000000e+00 : f32
    %452 = vector.broadcast %cst_99 : f32 to vector<8x128xf32>
    %453 = arith.addf %452, %451 : vector<8x128xf32>
    %454 = arith.divf %452, %453 : vector<8x128xf32>
    %455 = math.tanh %449 : vector<8x128xf32>
    %456 = vector.extract_strided_slice %454 {offsets = [0, 0], sizes = [8, 32], strides = [1, 1]} : vector<8x128xf32> to vector<8x32xf32>
    %457 = vector.extract_strided_slice %454 {offsets = [0, 32], sizes = [8, 32], strides = [1, 1]} : vector<8x128xf32> to vector<8x32xf32>
    %458 = vector.extract_strided_slice %455 {offsets = [0, 64], sizes = [8, 32], strides = [1, 1]} : vector<8x128xf32> to vector<8x32xf32>
    %459 = vector.extract_strided_slice %454 {offsets = [0, 96], sizes = [8, 32], strides = [1, 1]} : vector<8x128xf32> to vector<8x32xf32>
    %460 = arith.mulf %457, %399 : vector<8x32xf32>
    %461 = arith.mulf %456, %458 : vector<8x32xf32>
    %462 = arith.addf %460, %461 : vector<8x32xf32>
    %463 = math.tanh %462 : vector<8x32xf32>
    %464 = arith.mulf %459, %463 : vector<8x32xf32>
    %c48_100 = arith.constant 48 : index
    %c0_101 = arith.constant 0 : index
    %465 = vector.load %arg20[%c48_100, %c0_101] : memref<64x128xf32, #tpu.memory_space<vmem>>, vector<8x128xf32>
    %466 = arith.truncf %420 : vector<8x32xf32> to vector<8x32xbf16>
    %cst_102 = arith.constant dense<0.000000e+00> : vector<8x128xf32>
    %467 = tpu.matmul %466, %83, %cst_102 {dimension_numbers = #tpu.dot_dimension_numbers<[1], [0], [0], [1], [0, 0, 1, 1], [], []>} : vector<8x32xbf16>, vector<32x128xbf16>, vector<8x128xf32> -> vector<8x128xf32>
    %468 = arith.addf %465, %467 : vector<8x128xf32>
    %469 = arith.negf %468 : vector<8x128xf32>
    %470 = math.exp %469 : vector<8x128xf32>
    %cst_103 = arith.constant 1.000000e+00 : f32
    %471 = vector.broadcast %cst_103 : f32 to vector<8x128xf32>
    %472 = arith.addf %471, %470 : vector<8x128xf32>
    %473 = arith.divf %471, %472 : vector<8x128xf32>
    %474 = math.tanh %468 : vector<8x128xf32>
    %475 = vector.extract_strided_slice %473 {offsets = [0, 0], sizes = [8, 32], strides = [1, 1]} : vector<8x128xf32> to vector<8x32xf32>
    %476 = vector.extract_strided_slice %473 {offsets = [0, 32], sizes = [8, 32], strides = [1, 1]} : vector<8x128xf32> to vector<8x32xf32>
    %477 = vector.extract_strided_slice %474 {offsets = [0, 64], sizes = [8, 32], strides = [1, 1]} : vector<8x128xf32> to vector<8x32xf32>
    %478 = vector.extract_strided_slice %473 {offsets = [0, 96], sizes = [8, 32], strides = [1, 1]} : vector<8x128xf32> to vector<8x32xf32>
    %479 = arith.mulf %476, %418 : vector<8x32xf32>
    %480 = arith.mulf %475, %477 : vector<8x32xf32>
    %481 = arith.addf %479, %480 : vector<8x32xf32>
    %482 = math.tanh %481 : vector<8x32xf32>
    %483 = arith.mulf %478, %482 : vector<8x32xf32>
    %c8_104 = arith.constant 8 : index
    %c0_105 = arith.constant 0 : index
    %484 = vector.load %arg21[%c8_104, %c0_105] : memref<64x128xf32, #tpu.memory_space<vmem>>, vector<8x128xf32>
    %485 = arith.truncf %439 : vector<8x32xf32> to vector<8x32xbf16>
    %cst_106 = arith.constant dense<0.000000e+00> : vector<8x128xf32>
    %486 = tpu.matmul %485, %84, %cst_106 {dimension_numbers = #tpu.dot_dimension_numbers<[1], [0], [0], [1], [0, 0, 1, 1], [], []>} : vector<8x32xbf16>, vector<32x128xbf16>, vector<8x128xf32> -> vector<8x128xf32>
    %487 = arith.addf %484, %486 : vector<8x128xf32>
    %488 = arith.negf %487 : vector<8x128xf32>
    %489 = math.exp %488 : vector<8x128xf32>
    %cst_107 = arith.constant 1.000000e+00 : f32
    %490 = vector.broadcast %cst_107 : f32 to vector<8x128xf32>
    %491 = arith.addf %490, %489 : vector<8x128xf32>
    %492 = arith.divf %490, %491 : vector<8x128xf32>
    %493 = math.tanh %487 : vector<8x128xf32>
    %494 = vector.extract_strided_slice %492 {offsets = [0, 0], sizes = [8, 32], strides = [1, 1]} : vector<8x128xf32> to vector<8x32xf32>
    %495 = vector.extract_strided_slice %492 {offsets = [0, 32], sizes = [8, 32], strides = [1, 1]} : vector<8x128xf32> to vector<8x32xf32>
    %496 = vector.extract_strided_slice %493 {offsets = [0, 64], sizes = [8, 32], strides = [1, 1]} : vector<8x128xf32> to vector<8x32xf32>
    %497 = vector.extract_strided_slice %492 {offsets = [0, 96], sizes = [8, 32], strides = [1, 1]} : vector<8x128xf32> to vector<8x32xf32>
    %498 = arith.mulf %495, %437 : vector<8x32xf32>
    %499 = arith.mulf %494, %496 : vector<8x32xf32>
    %500 = arith.addf %498, %499 : vector<8x32xf32>
    %501 = math.tanh %500 : vector<8x32xf32>
    %502 = arith.mulf %497, %501 : vector<8x32xf32>
    %c48_108 = arith.constant 48 : index
    %c0_109 = arith.constant 0 : index
    %503 = vector.load %arg22[%c48_108, %c0_109] : memref<72x32xf32, #tpu.memory_space<vmem>>, vector<8x32xf32>
    tpu.vector_store %arg22[%c48_108, %c0_109], %483 {strides = array<i32>} : memref<72x32xf32, #tpu.memory_space<vmem>>, vector<8x32xf32>,
    %c8_110 = arith.constant 8 : index
    %c0_111 = arith.constant 0 : index
    %504 = vector.load %arg23[%c8_110, %c0_111] : memref<72x32xf32, #tpu.memory_space<vmem>>, vector<8x32xf32>
    tpu.vector_store %arg23[%c8_110, %c0_111], %502 {strides = array<i32>} : memref<72x32xf32, #tpu.memory_space<vmem>>, vector<8x32xf32>,
    %505 = vector.extract_strided_slice %81 {offsets = [6, 0], sizes = [1, 128], strides = [1, 1]} : vector<8x128xf32> to vector<1x128xf32>
    %506 = vector.broadcast %505 : vector<1x128xf32> to vector<8x128xf32>
    %507 = arith.subf %506, %81 : vector<8x128xf32>
    %508 = vector.broadcast %82 : vector<1x128xf32> to vector<8x128xf32>
    %509 = arith.addf %507, %508 : vector<8x128xf32>
    %510 = arith.truncf %464 : vector<8x32xf32> to vector<8x32xbf16>
    %cst_112 = arith.constant dense<0.000000e+00> : vector<8x128xf32>
    %511 = tpu.matmul %510, %85, %cst_112 {dimension_numbers = #tpu.dot_dimension_numbers<[1], [0], [0], [1], [0, 0, 1, 1], [], []>} : vector<8x32xbf16>, vector<32x128xbf16>, vector<8x128xf32> -> vector<8x128xf32>
    %512 = arith.addf %509, %511 : vector<8x128xf32>
    %513 = arith.negf %512 : vector<8x128xf32>
    %514 = math.exp %513 : vector<8x128xf32>
    %cst_113 = arith.constant 1.000000e+00 : f32
    %515 = vector.broadcast %cst_113 : f32 to vector<8x128xf32>
    %516 = arith.addf %515, %514 : vector<8x128xf32>
    %517 = arith.divf %515, %516 : vector<8x128xf32>
    %518 = math.tanh %512 : vector<8x128xf32>
    %519 = vector.extract_strided_slice %517 {offsets = [0, 0], sizes = [8, 32], strides = [1, 1]} : vector<8x128xf32> to vector<8x32xf32>
    %520 = vector.extract_strided_slice %517 {offsets = [0, 32], sizes = [8, 32], strides = [1, 1]} : vector<8x128xf32> to vector<8x32xf32>
    %521 = vector.extract_strided_slice %518 {offsets = [0, 64], sizes = [8, 32], strides = [1, 1]} : vector<8x128xf32> to vector<8x32xf32>
    %522 = vector.extract_strided_slice %517 {offsets = [0, 96], sizes = [8, 32], strides = [1, 1]} : vector<8x128xf32> to vector<8x32xf32>
    %523 = arith.mulf %520, %462 : vector<8x32xf32>
    %524 = arith.mulf %519, %521 : vector<8x32xf32>
    %525 = arith.addf %523, %524 : vector<8x32xf32>
    %526 = math.tanh %525 : vector<8x32xf32>
    %527 = arith.mulf %522, %526 : vector<8x32xf32>
    %c56_114 = arith.constant 56 : index
    %c0_115 = arith.constant 0 : index
    %528 = vector.load %arg20[%c56_114, %c0_115] : memref<64x128xf32, #tpu.memory_space<vmem>>, vector<8x128xf32>
    %529 = arith.truncf %483 : vector<8x32xf32> to vector<8x32xbf16>
    %cst_116 = arith.constant dense<0.000000e+00> : vector<8x128xf32>
    %530 = tpu.matmul %529, %83, %cst_116 {dimension_numbers = #tpu.dot_dimension_numbers<[1], [0], [0], [1], [0, 0, 1, 1], [], []>} : vector<8x32xbf16>, vector<32x128xbf16>, vector<8x128xf32> -> vector<8x128xf32>
    %531 = arith.addf %528, %530 : vector<8x128xf32>
    %532 = arith.negf %531 : vector<8x128xf32>
    %533 = math.exp %532 : vector<8x128xf32>
    %cst_117 = arith.constant 1.000000e+00 : f32
    %534 = vector.broadcast %cst_117 : f32 to vector<8x128xf32>
    %535 = arith.addf %534, %533 : vector<8x128xf32>
    %536 = arith.divf %534, %535 : vector<8x128xf32>
    %537 = math.tanh %531 : vector<8x128xf32>
    %538 = vector.extract_strided_slice %536 {offsets = [0, 0], sizes = [8, 32], strides = [1, 1]} : vector<8x128xf32> to vector<8x32xf32>
    %539 = vector.extract_strided_slice %536 {offsets = [0, 32], sizes = [8, 32], strides = [1, 1]} : vector<8x128xf32> to vector<8x32xf32>
    %540 = vector.extract_strided_slice %537 {offsets = [0, 64], sizes = [8, 32], strides = [1, 1]} : vector<8x128xf32> to vector<8x32xf32>
    %541 = vector.extract_strided_slice %536 {offsets = [0, 96], sizes = [8, 32], strides = [1, 1]} : vector<8x128xf32> to vector<8x32xf32>
    %542 = arith.mulf %539, %481 : vector<8x32xf32>
    %543 = arith.mulf %538, %540 : vector<8x32xf32>
    %544 = arith.addf %542, %543 : vector<8x32xf32>
    %545 = math.tanh %544 : vector<8x32xf32>
    %546 = arith.mulf %541, %545 : vector<8x32xf32>
    %c0_118 = arith.constant 0 : index
    %c0_119 = arith.constant 0 : index
    %547 = vector.load %arg21[%c0_118, %c0_119] : memref<64x128xf32, #tpu.memory_space<vmem>>, vector<8x128xf32>
    %548 = arith.truncf %502 : vector<8x32xf32> to vector<8x32xbf16>
    %cst_120 = arith.constant dense<0.000000e+00> : vector<8x128xf32>
    %549 = tpu.matmul %548, %84, %cst_120 {dimension_numbers = #tpu.dot_dimension_numbers<[1], [0], [0], [1], [0, 0, 1, 1], [], []>} : vector<8x32xbf16>, vector<32x128xbf16>, vector<8x128xf32> -> vector<8x128xf32>
    %550 = arith.addf %547, %549 : vector<8x128xf32>
    %551 = arith.negf %550 : vector<8x128xf32>
    %552 = math.exp %551 : vector<8x128xf32>
    %cst_121 = arith.constant 1.000000e+00 : f32
    %553 = vector.broadcast %cst_121 : f32 to vector<8x128xf32>
    %554 = arith.addf %553, %552 : vector<8x128xf32>
    %555 = arith.divf %553, %554 : vector<8x128xf32>
    %556 = math.tanh %550 : vector<8x128xf32>
    %557 = vector.extract_strided_slice %555 {offsets = [0, 0], sizes = [8, 32], strides = [1, 1]} : vector<8x128xf32> to vector<8x32xf32>
    %558 = vector.extract_strided_slice %555 {offsets = [0, 32], sizes = [8, 32], strides = [1, 1]} : vector<8x128xf32> to vector<8x32xf32>
    %559 = vector.extract_strided_slice %556 {offsets = [0, 64], sizes = [8, 32], strides = [1, 1]} : vector<8x128xf32> to vector<8x32xf32>
    %560 = vector.extract_strided_slice %555 {offsets = [0, 96], sizes = [8, 32], strides = [1, 1]} : vector<8x128xf32> to vector<8x32xf32>
    %561 = arith.mulf %558, %500 : vector<8x32xf32>
    %562 = arith.mulf %557, %559 : vector<8x32xf32>
    %563 = arith.addf %561, %562 : vector<8x32xf32>
    %564 = math.tanh %563 : vector<8x32xf32>
    %565 = arith.mulf %560, %564 : vector<8x32xf32>
    %c56_122 = arith.constant 56 : index
    %c0_123 = arith.constant 0 : index
    %566 = vector.load %arg22[%c56_122, %c0_123] : memref<72x32xf32, #tpu.memory_space<vmem>>, vector<8x32xf32>
    tpu.vector_store %arg22[%c56_122, %c0_123], %546 {strides = array<i32>} : memref<72x32xf32, #tpu.memory_space<vmem>>, vector<8x32xf32>,
    %c0_124 = arith.constant 0 : index
    %c0_125 = arith.constant 0 : index
    %567 = vector.load %arg23[%c0_124, %c0_125] : memref<72x32xf32, #tpu.memory_space<vmem>>, vector<8x32xf32>
    tpu.vector_store %arg23[%c0_124, %c0_125], %565 {strides = array<i32>} : memref<72x32xf32, #tpu.memory_space<vmem>>, vector<8x32xf32>,
    %568 = vector.extract_strided_slice %81 {offsets = [7, 0], sizes = [1, 128], strides = [1, 1]} : vector<8x128xf32> to vector<1x128xf32>
    %569 = vector.broadcast %568 : vector<1x128xf32> to vector<8x128xf32>
    %570 = arith.subf %569, %81 : vector<8x128xf32>
    %571 = vector.broadcast %82 : vector<1x128xf32> to vector<8x128xf32>
    %572 = arith.addf %570, %571 : vector<8x128xf32>
    %573 = arith.truncf %527 : vector<8x32xf32> to vector<8x32xbf16>
    %cst_126 = arith.constant dense<0.000000e+00> : vector<8x128xf32>
    %574 = tpu.matmul %573, %85, %cst_126 {dimension_numbers = #tpu.dot_dimension_numbers<[1], [0], [0], [1], [0, 0, 1, 1], [], []>} : vector<8x32xbf16>, vector<32x128xbf16>, vector<8x128xf32> -> vector<8x128xf32>
    %575 = arith.addf %572, %574 : vector<8x128xf32>
    %576 = arith.negf %575 : vector<8x128xf32>
    %577 = math.exp %576 : vector<8x128xf32>
    %cst_127 = arith.constant 1.000000e+00 : f32
    %578 = vector.broadcast %cst_127 : f32 to vector<8x128xf32>
    %579 = arith.addf %578, %577 : vector<8x128xf32>
    %580 = arith.divf %578, %579 : vector<8x128xf32>
    %581 = math.tanh %575 : vector<8x128xf32>
    %582 = vector.extract_strided_slice %580 {offsets = [0, 0], sizes = [8, 32], strides = [1, 1]} : vector<8x128xf32> to vector<8x32xf32>
    %583 = vector.extract_strided_slice %580 {offsets = [0, 32], sizes = [8, 32], strides = [1, 1]} : vector<8x128xf32> to vector<8x32xf32>
    %584 = vector.extract_strided_slice %581 {offsets = [0, 64], sizes = [8, 32], strides = [1, 1]} : vector<8x128xf32> to vector<8x32xf32>
    %585 = vector.extract_strided_slice %580 {offsets = [0, 96], sizes = [8, 32], strides = [1, 1]} : vector<8x128xf32> to vector<8x32xf32>
    %586 = arith.mulf %583, %525 : vector<8x32xf32>
    %587 = arith.mulf %582, %584 : vector<8x32xf32>
    %588 = arith.addf %586, %587 : vector<8x32xf32>
    %589 = math.tanh %588 : vector<8x32xf32>
    %590 = arith.mulf %585, %589 : vector<8x32xf32>
    %c0_128 = arith.constant 0 : index
    %c0_129 = arith.constant 0 : index
    %591 = vector.load %arg10[%c0_128, %c0_129] : memref<4x128xf32, #tpu.memory_space<vmem>>, vector<4x128xf32>
    %592 = vector.extract_strided_slice %57 {offsets = [0, 0], sizes = [8, 1], strides = [1, 1]} : vector<8x4xf32> to vector<8x1xf32>
    %593 = vector.extract_strided_slice %591 {offsets = [0, 0], sizes = [1, 128], strides = [1, 1]} : vector<4x128xf32> to vector<1x128xf32>
    %594 = vector.broadcast %592 : vector<8x1xf32> to vector<8x128xf32>
    %595 = vector.broadcast %593 : vector<1x128xf32> to vector<8x128xf32>
    %596 = arith.mulf %594, %595 : vector<8x128xf32>
    %597 = vector.extract_strided_slice %57 {offsets = [0, 1], sizes = [8, 1], strides = [1, 1]} : vector<8x4xf32> to vector<8x1xf32>
    %598 = vector.extract_strided_slice %591 {offsets = [1, 0], sizes = [1, 128], strides = [1, 1]} : vector<4x128xf32> to vector<1x128xf32>
    %599 = vector.broadcast %597 : vector<8x1xf32> to vector<8x128xf32>
    %600 = vector.broadcast %598 : vector<1x128xf32> to vector<8x128xf32>
    %601 = arith.mulf %599, %600 : vector<8x128xf32>
    %602 = arith.addf %596, %601 : vector<8x128xf32>
    %603 = vector.extract_strided_slice %57 {offsets = [0, 2], sizes = [8, 1], strides = [1, 1]} : vector<8x4xf32> to vector<8x1xf32>
    %604 = vector.extract_strided_slice %591 {offsets = [2, 0], sizes = [1, 128], strides = [1, 1]} : vector<4x128xf32> to vector<1x128xf32>
    %605 = vector.broadcast %603 : vector<8x1xf32> to vector<8x128xf32>
    %606 = vector.broadcast %604 : vector<1x128xf32> to vector<8x128xf32>
    %607 = arith.mulf %605, %606 : vector<8x128xf32>
    %608 = arith.addf %602, %607 : vector<8x128xf32>
    %609 = vector.extract_strided_slice %57 {offsets = [0, 3], sizes = [8, 1], strides = [1, 1]} : vector<8x4xf32> to vector<8x1xf32>
    %610 = vector.extract_strided_slice %591 {offsets = [3, 0], sizes = [1, 128], strides = [1, 1]} : vector<4x128xf32> to vector<1x128xf32>
    %611 = vector.broadcast %609 : vector<8x1xf32> to vector<8x128xf32>
    %612 = vector.broadcast %610 : vector<1x128xf32> to vector<8x128xf32>
    %613 = arith.mulf %611, %612 : vector<8x128xf32>
    %614 = arith.addf %608, %613 : vector<8x128xf32>
    %615 = vector.extract_strided_slice %614 {offsets = [7, 0], sizes = [1, 128], strides = [1, 1]} : vector<8x128xf32> to vector<1x128xf32>
    %616 = vector.broadcast %615 : vector<1x128xf32> to vector<8x128xf32>
    %617 = arith.subf %616, %614 : vector<8x128xf32>
    %c0_130 = arith.constant 0 : index
    %c0_131 = arith.constant 0 : index
    %618 = vector.load %arg12[%c0_130, %c0_131] : memref<1x128xf32, #tpu.memory_space<vmem>>, vector<1x128xf32>
    %619 = vector.broadcast %618 : vector<1x128xf32> to vector<8x128xf32>
    %620 = arith.addf %617, %619 : vector<8x128xf32>
    %c0_132 = arith.constant 0 : index
    %c0_133 = arith.constant 0 : index
    %621 = vector.load %arg11[%c0_132, %c0_133] : memref<32x128xbf16, #tpu.memory_space<vmem>>, vector<32x128xbf16>
    %622 = arith.truncf %86 : vector<8x32xf32> to vector<8x32xbf16>
    %cst_134 = arith.constant dense<0.000000e+00> : vector<8x128xf32>
    %623 = tpu.matmul %622, %621, %cst_134 {dimension_numbers = #tpu.dot_dimension_numbers<[1], [0], [0], [1], [0, 0, 1, 1], [], []>} : vector<8x32xbf16>, vector<32x128xbf16>, vector<8x128xf32> -> vector<8x128xf32>
    %624 = arith.addf %620, %623 : vector<8x128xf32>
    %625 = arith.negf %624 : vector<8x128xf32>
    %626 = math.exp %625 : vector<8x128xf32>
    %cst_135 = arith.constant 1.000000e+00 : f32
    %627 = vector.broadcast %cst_135 : f32 to vector<8x128xf32>
    %628 = arith.addf %627, %626 : vector<8x128xf32>
    %629 = arith.divf %627, %628 : vector<8x128xf32>
    %630 = math.tanh %624 : vector<8x128xf32>
    %631 = vector.extract_strided_slice %629 {offsets = [0, 0], sizes = [8, 32], strides = [1, 1]} : vector<8x128xf32> to vector<8x32xf32>
    %632 = vector.extract_strided_slice %629 {offsets = [0, 32], sizes = [8, 32], strides = [1, 1]} : vector<8x128xf32> to vector<8x32xf32>
    %633 = vector.extract_strided_slice %630 {offsets = [0, 64], sizes = [8, 32], strides = [1, 1]} : vector<8x128xf32> to vector<8x32xf32>
    %634 = vector.extract_strided_slice %629 {offsets = [0, 96], sizes = [8, 32], strides = [1, 1]} : vector<8x128xf32> to vector<8x32xf32>
    %635 = arith.mulf %632, %86 : vector<8x32xf32>
    %636 = arith.mulf %631, %633 : vector<8x32xf32>
    %637 = arith.addf %635, %636 : vector<8x32xf32>
    %638 = math.tanh %637 : vector<8x32xf32>
    %639 = arith.mulf %634, %638 : vector<8x32xf32>
    %c64 = arith.constant 64 : index
    %c0_136 = arith.constant 0 : index
    %640 = vector.load %arg22[%c64, %c0_136] : memref<72x32xf32, #tpu.memory_space<vmem>>, vector<8x32xf32>
    tpu.vector_store %arg22[%c64, %c0_136], %590 {strides = array<i32>} : memref<72x32xf32, #tpu.memory_space<vmem>>, vector<8x32xf32>,
    %c64_137 = arith.constant 64 : index
    %c0_138 = arith.constant 0 : index
    %641 = vector.load %arg23[%c64_137, %c0_138] : memref<72x32xf32, #tpu.memory_space<vmem>>, vector<8x32xf32>
    tpu.vector_store %arg23[%c64_137, %c0_138], %639 {strides = array<i32>} : memref<72x32xf32, #tpu.memory_space<vmem>>, vector<8x32xf32>,
    %c0_139 = arith.constant 0 : index
    %c0_140 = arith.constant 0 : index
    %642 = vector.load %arg22[%c0_139, %c0_140] : memref<72x32xf32, #tpu.memory_space<vmem>>, vector<72x32xf32>
    %643 = arith.truncf %642 : vector<72x32xf32> to vector<72x32xbf16>
    %c0_141 = arith.constant 0 : index
    %c0_142 = arith.constant 0 : index
    %644 = vector.load %arg23[%c0_141, %c0_142] : memref<72x32xf32, #tpu.memory_space<vmem>>, vector<72x32xf32>
    %645 = arith.truncf %644 : vector<72x32xf32> to vector<72x32xbf16>
    %c0_143 = arith.constant 0 : index
    %c0_144 = arith.constant 0 : index
    %646 = vector.load %arg13[%c0_143, %c0_144] : memref<64x256xbf16, #tpu.memory_space<vmem>>, vector<32x256xbf16>
    %cst_145 = arith.constant dense<0.000000e+00> : vector<72x256xf32>
    %647 = tpu.matmul %643, %646, %cst_145 {dimension_numbers = #tpu.dot_dimension_numbers<[1], [0], [0], [1], [0, 0, 1, 1], [], []>} : vector<72x32xbf16>, vector<32x256xbf16>, vector<72x256xf32> -> vector<72x256xf32>
    %c32_146 = arith.constant 32 : index
    %c0_147 = arith.constant 0 : index
    %648 = vector.load %arg13[%c32_146, %c0_147] : memref<64x256xbf16, #tpu.memory_space<vmem>>, vector<32x256xbf16>
    %cst_148 = arith.constant dense<0.000000e+00> : vector<72x256xf32>
    %649 = tpu.matmul %645, %648, %cst_148 {dimension_numbers = #tpu.dot_dimension_numbers<[1], [0], [0], [1], [0, 0, 1, 1], [], []>} : vector<72x32xbf16>, vector<32x256xbf16>, vector<72x256xf32> -> vector<72x256xf32>
    %650 = arith.addf %647, %649 : vector<72x256xf32>
    %c0_149 = arith.constant 0 : index
    %c0_150 = arith.constant 0 : index
    %651 = vector.load %arg16[%c0_149, %c0_150] : memref<1x256xf32, #tpu.memory_space<vmem>>, vector<1x256xf32>
    %652 = vector.broadcast %651 : vector<1x256xf32> to vector<72x256xf32>
    %653 = arith.addf %650, %652 : vector<72x256xf32>
    %654 = vector.extract_strided_slice %653 {offsets = [0, 0], sizes = [72, 128], strides = [1, 1]} : vector<72x256xf32> to vector<72x128xf32>
    %655 = vector.extract_strided_slice %653 {offsets = [0, 128], sizes = [72, 128], strides = [1, 1]} : vector<72x256xf32> to vector<72x128xf32>
    %c0_151 = arith.constant 0 : index
    %c0_152 = arith.constant 0 : index
    %656 = vector.load %arg14[%c0_151, %c0_152] : memref<32x128xbf16, #tpu.memory_space<vmem>>, vector<32x128xbf16>
    %c0_153 = arith.constant 0 : index
    %c0_154 = arith.constant 0 : index
    %657 = vector.load %arg15[%c0_153, %c0_154] : memref<32x128xbf16, #tpu.memory_space<vmem>>, vector<32x128xbf16>
    %cst_155 = arith.constant 0.000000e+00 : f32
    %658 = vector.broadcast %cst_155 : f32 to vector<8x32xf32>
    %c0_156 = arith.constant 0 : index
    %c0_157 = arith.constant 0 : index
    %659 = vector.load %arg18[%c0_156, %c0_157] : memref<1x2xf32, #tpu.memory_space<vmem>>, vector<1x2xf32>
    %660 = vector.extract_strided_slice %57 {offsets = [0, 0], sizes = [8, 2], strides = [1, 1]} : vector<8x4xf32> to vector<8x2xf32>
    %661 = vector.broadcast %659 : vector<1x2xf32> to vector<8x2xf32>
    %662 = arith.addf %661, %660 : vector<8x2xf32>
    %663 = vector.extract_strided_slice %654 {offsets = [0, 0], sizes = [8, 128], strides = [1, 1]} : vector<72x128xf32> to vector<8x128xf32>
    %664 = arith.truncf %658 : vector<8x32xf32> to vector<8x32xbf16>
    %cst_158 = arith.constant dense<0.000000e+00> : vector<8x128xf32>
    %665 = tpu.matmul %664, %656, %cst_158 {dimension_numbers = #tpu.dot_dimension_numbers<[1], [0], [0], [1], [0, 0, 1, 1], [], []>} : vector<8x32xbf16>, vector<32x128xbf16>, vector<8x128xf32> -> vector<8x128xf32>
    %666 = arith.addf %663, %665 : vector<8x128xf32>
    %667 = arith.negf %666 : vector<8x128xf32>
    %668 = math.exp %667 : vector<8x128xf32>
    %cst_159 = arith.constant 1.000000e+00 : f32
    %669 = vector.broadcast %cst_159 : f32 to vector<8x128xf32>
    %670 = arith.addf %669, %668 : vector<8x128xf32>
    %671 = arith.divf %669, %670 : vector<8x128xf32>
    %672 = math.tanh %666 : vector<8x128xf32>
    %673 = vector.extract_strided_slice %671 {offsets = [0, 0], sizes = [8, 32], strides = [1, 1]} : vector<8x128xf32> to vector<8x32xf32>
    %674 = vector.extract_strided_slice %671 {offsets = [0, 32], sizes = [8, 32], strides = [1, 1]} : vector<8x128xf32> to vector<8x32xf32>
    %675 = vector.extract_strided_slice %672 {offsets = [0, 64], sizes = [8, 32], strides = [1, 1]} : vector<8x128xf32> to vector<8x32xf32>
    %676 = vector.extract_strided_slice %671 {offsets = [0, 96], sizes = [8, 32], strides = [1, 1]} : vector<8x128xf32> to vector<8x32xf32>
    %677 = arith.mulf %674, %658 : vector<8x32xf32>
    %678 = arith.mulf %673, %675 : vector<8x32xf32>
    %679 = arith.addf %677, %678 : vector<8x32xf32>
    %680 = math.tanh %679 : vector<8x32xf32>
    %681 = arith.mulf %676, %680 : vector<8x32xf32>
    %682 = vector.extract_strided_slice %655 {offsets = [64, 0], sizes = [8, 128], strides = [1, 1]} : vector<72x128xf32> to vector<8x128xf32>
    %683 = arith.truncf %658 : vector<8x32xf32> to vector<8x32xbf16>
    %cst_160 = arith.constant dense<0.000000e+00> : vector<8x128xf32>
    %684 = tpu.matmul %683, %657, %cst_160 {dimension_numbers = #tpu.dot_dimension_numbers<[1], [0], [0], [1], [0, 0, 1, 1], [], []>} : vector<8x32xbf16>, vector<32x128xbf16>, vector<8x128xf32> -> vector<8x128xf32>
    %685 = arith.addf %682, %684 : vector<8x128xf32>
    %686 = arith.negf %685 : vector<8x128xf32>
    %687 = math.exp %686 : vector<8x128xf32>
    %cst_161 = arith.constant 1.000000e+00 : f32
    %688 = vector.broadcast %cst_161 : f32 to vector<8x128xf32>
    %689 = arith.addf %688, %687 : vector<8x128xf32>
    %690 = arith.divf %688, %689 : vector<8x128xf32>
    %691 = math.tanh %685 : vector<8x128xf32>
    %692 = vector.extract_strided_slice %690 {offsets = [0, 0], sizes = [8, 32], strides = [1, 1]} : vector<8x128xf32> to vector<8x32xf32>
    %693 = vector.extract_strided_slice %690 {offsets = [0, 32], sizes = [8, 32], strides = [1, 1]} : vector<8x128xf32> to vector<8x32xf32>
    %694 = vector.extract_strided_slice %691 {offsets = [0, 64], sizes = [8, 32], strides = [1, 1]} : vector<8x128xf32> to vector<8x32xf32>
    %695 = vector.extract_strided_slice %690 {offsets = [0, 96], sizes = [8, 32], strides = [1, 1]} : vector<8x128xf32> to vector<8x32xf32>
    %696 = arith.mulf %693, %658 : vector<8x32xf32>
    %697 = arith.mulf %692, %694 : vector<8x32xf32>
    %698 = arith.addf %696, %697 : vector<8x32xf32>
    %699 = math.tanh %698 : vector<8x32xf32>
    %700 = arith.mulf %695, %699 : vector<8x32xf32>
    %701 = arith.truncf %681 : vector<8x32xf32> to vector<8x32xbf16>
    %c0_162 = arith.constant 0 : index
    %c0_163 = arith.constant 0 : index
    %c0_164 = arith.constant 0 : index
    %702 = vector.load %arg17[%c0_162, %c0_163, %c0_164] : memref<18x32x2xbf16, #tpu.memory_space<vmem>>, vector<1x32x2xbf16>
    %703 = vector.shape_cast %702 : vector<1x32x2xbf16> to vector<32x2xbf16>
    %cst_165 = arith.constant dense<0.000000e+00> : vector<8x2xf32>
    %704 = tpu.matmul %701, %703, %cst_165 {dimension_numbers = #tpu.dot_dimension_numbers<[1], [0], [0], [1], [0, 0, 1, 1], [], []>} : vector<8x32xbf16>, vector<32x2xbf16>, vector<8x2xf32> -> vector<8x2xf32>
    %705 = arith.addf %662, %704 : vector<8x2xf32>
    %706 = arith.truncf %700 : vector<8x32xf32> to vector<8x32xbf16>
    %c17 = arith.constant 17 : index
    %c0_166 = arith.constant 0 : index
    %c0_167 = arith.constant 0 : index
    %707 = vector.load %arg17[%c17, %c0_166, %c0_167] : memref<18x32x2xbf16, #tpu.memory_space<vmem>>, vector<1x32x2xbf16>
    %708 = vector.shape_cast %707 : vector<1x32x2xbf16> to vector<32x2xbf16>
    %cst_168 = arith.constant dense<0.000000e+00> : vector<8x2xf32>
    %709 = tpu.matmul %706, %708, %cst_168 {dimension_numbers = #tpu.dot_dimension_numbers<[1], [0], [0], [1], [0, 0, 1, 1], [], []>} : vector<8x32xbf16>, vector<32x2xbf16>, vector<8x2xf32> -> vector<8x2xf32>
    %710 = arith.addf %705, %709 : vector<8x2xf32>
    %711 = vector.extract_strided_slice %654 {offsets = [8, 0], sizes = [8, 128], strides = [1, 1]} : vector<72x128xf32> to vector<8x128xf32>
    %712 = arith.truncf %681 : vector<8x32xf32> to vector<8x32xbf16>
    %cst_169 = arith.constant dense<0.000000e+00> : vector<8x128xf32>
    %713 = tpu.matmul %712, %656, %cst_169 {dimension_numbers = #tpu.dot_dimension_numbers<[1], [0], [0], [1], [0, 0, 1, 1], [], []>} : vector<8x32xbf16>, vector<32x128xbf16>, vector<8x128xf32> -> vector<8x128xf32>
    %714 = arith.addf %711, %713 : vector<8x128xf32>
    %715 = arith.negf %714 : vector<8x128xf32>
    %716 = math.exp %715 : vector<8x128xf32>
    %cst_170 = arith.constant 1.000000e+00 : f32
    %717 = vector.broadcast %cst_170 : f32 to vector<8x128xf32>
    %718 = arith.addf %717, %716 : vector<8x128xf32>
    %719 = arith.divf %717, %718 : vector<8x128xf32>
    %720 = math.tanh %714 : vector<8x128xf32>
    %721 = vector.extract_strided_slice %719 {offsets = [0, 0], sizes = [8, 32], strides = [1, 1]} : vector<8x128xf32> to vector<8x32xf32>
    %722 = vector.extract_strided_slice %719 {offsets = [0, 32], sizes = [8, 32], strides = [1, 1]} : vector<8x128xf32> to vector<8x32xf32>
    %723 = vector.extract_strided_slice %720 {offsets = [0, 64], sizes = [8, 32], strides = [1, 1]} : vector<8x128xf32> to vector<8x32xf32>
    %724 = vector.extract_strided_slice %719 {offsets = [0, 96], sizes = [8, 32], strides = [1, 1]} : vector<8x128xf32> to vector<8x32xf32>
    %725 = arith.mulf %722, %679 : vector<8x32xf32>
    %726 = arith.mulf %721, %723 : vector<8x32xf32>
    %727 = arith.addf %725, %726 : vector<8x32xf32>
    %728 = math.tanh %727 : vector<8x32xf32>
    %729 = arith.mulf %724, %728 : vector<8x32xf32>
    %730 = vector.extract_strided_slice %655 {offsets = [56, 0], sizes = [8, 128], strides = [1, 1]} : vector<72x128xf32> to vector<8x128xf32>
    %731 = arith.truncf %700 : vector<8x32xf32> to vector<8x32xbf16>
    %cst_171 = arith.constant dense<0.000000e+00> : vector<8x128xf32>
    %732 = tpu.matmul %731, %657, %cst_171 {dimension_numbers = #tpu.dot_dimension_numbers<[1], [0], [0], [1], [0, 0, 1, 1], [], []>} : vector<8x32xbf16>, vector<32x128xbf16>, vector<8x128xf32> -> vector<8x128xf32>
    %733 = arith.addf %730, %732 : vector<8x128xf32>
    %734 = arith.negf %733 : vector<8x128xf32>
    %735 = math.exp %734 : vector<8x128xf32>
    %cst_172 = arith.constant 1.000000e+00 : f32
    %736 = vector.broadcast %cst_172 : f32 to vector<8x128xf32>
    %737 = arith.addf %736, %735 : vector<8x128xf32>
    %738 = arith.divf %736, %737 : vector<8x128xf32>
    %739 = math.tanh %733 : vector<8x128xf32>
    %740 = vector.extract_strided_slice %738 {offsets = [0, 0], sizes = [8, 32], strides = [1, 1]} : vector<8x128xf32> to vector<8x32xf32>
    %741 = vector.extract_strided_slice %738 {offsets = [0, 32], sizes = [8, 32], strides = [1, 1]} : vector<8x128xf32> to vector<8x32xf32>
    %742 = vector.extract_strided_slice %739 {offsets = [0, 64], sizes = [8, 32], strides = [1, 1]} : vector<8x128xf32> to vector<8x32xf32>
    %743 = vector.extract_strided_slice %738 {offsets = [0, 96], sizes = [8, 32], strides = [1, 1]} : vector<8x128xf32> to vector<8x32xf32>
    %744 = arith.mulf %741, %698 : vector<8x32xf32>
    %745 = arith.mulf %740, %742 : vector<8x32xf32>
    %746 = arith.addf %744, %745 : vector<8x32xf32>
    %747 = math.tanh %746 : vector<8x32xf32>
    %748 = arith.mulf %743, %747 : vector<8x32xf32>
    %749 = arith.truncf %729 : vector<8x32xf32> to vector<8x32xbf16>
    %c2 = arith.constant 2 : index
    %c0_173 = arith.constant 0 : index
    %c0_174 = arith.constant 0 : index
    %750 = vector.load %arg17[%c2, %c0_173, %c0_174] : memref<18x32x2xbf16, #tpu.memory_space<vmem>>, vector<1x32x2xbf16>
    %751 = vector.shape_cast %750 : vector<1x32x2xbf16> to vector<32x2xbf16>
    %cst_175 = arith.constant dense<0.000000e+00> : vector<8x2xf32>
    %752 = tpu.matmul %749, %751, %cst_175 {dimension_numbers = #tpu.dot_dimension_numbers<[1], [0], [0], [1], [0, 0, 1, 1], [], []>} : vector<8x32xbf16>, vector<32x2xbf16>, vector<8x2xf32> -> vector<8x2xf32>
    %753 = arith.addf %710, %752 : vector<8x2xf32>
    %754 = arith.truncf %748 : vector<8x32xf32> to vector<8x32xbf16>
    %c15 = arith.constant 15 : index
    %c0_176 = arith.constant 0 : index
    %c0_177 = arith.constant 0 : index
    %755 = vector.load %arg17[%c15, %c0_176, %c0_177] : memref<18x32x2xbf16, #tpu.memory_space<vmem>>, vector<1x32x2xbf16>
    %756 = vector.shape_cast %755 : vector<1x32x2xbf16> to vector<32x2xbf16>
    %cst_178 = arith.constant dense<0.000000e+00> : vector<8x2xf32>
    %757 = tpu.matmul %754, %756, %cst_178 {dimension_numbers = #tpu.dot_dimension_numbers<[1], [0], [0], [1], [0, 0, 1, 1], [], []>} : vector<8x32xbf16>, vector<32x2xbf16>, vector<8x2xf32> -> vector<8x2xf32>
    %758 = arith.addf %753, %757 : vector<8x2xf32>
    %759 = vector.extract_strided_slice %654 {offsets = [16, 0], sizes = [8, 128], strides = [1, 1]} : vector<72x128xf32> to vector<8x128xf32>
    %760 = arith.truncf %729 : vector<8x32xf32> to vector<8x32xbf16>
    %cst_179 = arith.constant dense<0.000000e+00> : vector<8x128xf32>
    %761 = tpu.matmul %760, %656, %cst_179 {dimension_numbers = #tpu.dot_dimension_numbers<[1], [0], [0], [1], [0, 0, 1, 1], [], []>} : vector<8x32xbf16>, vector<32x128xbf16>, vector<8x128xf32> -> vector<8x128xf32>
    %762 = arith.addf %759, %761 : vector<8x128xf32>
    %763 = arith.negf %762 : vector<8x128xf32>
    %764 = math.exp %763 : vector<8x128xf32>
    %cst_180 = arith.constant 1.000000e+00 : f32
    %765 = vector.broadcast %cst_180 : f32 to vector<8x128xf32>
    %766 = arith.addf %765, %764 : vector<8x128xf32>
    %767 = arith.divf %765, %766 : vector<8x128xf32>
    %768 = math.tanh %762 : vector<8x128xf32>
    %769 = vector.extract_strided_slice %767 {offsets = [0, 0], sizes = [8, 32], strides = [1, 1]} : vector<8x128xf32> to vector<8x32xf32>
    %770 = vector.extract_strided_slice %767 {offsets = [0, 32], sizes = [8, 32], strides = [1, 1]} : vector<8x128xf32> to vector<8x32xf32>
    %771 = vector.extract_strided_slice %768 {offsets = [0, 64], sizes = [8, 32], strides = [1, 1]} : vector<8x128xf32> to vector<8x32xf32>
    %772 = vector.extract_strided_slice %767 {offsets = [0, 96], sizes = [8, 32], strides = [1, 1]} : vector<8x128xf32> to vector<8x32xf32>
    %773 = arith.mulf %770, %727 : vector<8x32xf32>
    %774 = arith.mulf %769, %771 : vector<8x32xf32>
    %775 = arith.addf %773, %774 : vector<8x32xf32>
    %776 = math.tanh %775 : vector<8x32xf32>
    %777 = arith.mulf %772, %776 : vector<8x32xf32>
    %778 = vector.extract_strided_slice %655 {offsets = [48, 0], sizes = [8, 128], strides = [1, 1]} : vector<72x128xf32> to vector<8x128xf32>
    %779 = arith.truncf %748 : vector<8x32xf32> to vector<8x32xbf16>
    %cst_181 = arith.constant dense<0.000000e+00> : vector<8x128xf32>
    %780 = tpu.matmul %779, %657, %cst_181 {dimension_numbers = #tpu.dot_dimension_numbers<[1], [0], [0], [1], [0, 0, 1, 1], [], []>} : vector<8x32xbf16>, vector<32x128xbf16>, vector<8x128xf32> -> vector<8x128xf32>
    %781 = arith.addf %778, %780 : vector<8x128xf32>
    %782 = arith.negf %781 : vector<8x128xf32>
    %783 = math.exp %782 : vector<8x128xf32>
    %cst_182 = arith.constant 1.000000e+00 : f32
    %784 = vector.broadcast %cst_182 : f32 to vector<8x128xf32>
    %785 = arith.addf %784, %783 : vector<8x128xf32>
    %786 = arith.divf %784, %785 : vector<8x128xf32>
    %787 = math.tanh %781 : vector<8x128xf32>
    %788 = vector.extract_strided_slice %786 {offsets = [0, 0], sizes = [8, 32], strides = [1, 1]} : vector<8x128xf32> to vector<8x32xf32>
    %789 = vector.extract_strided_slice %786 {offsets = [0, 32], sizes = [8, 32], strides = [1, 1]} : vector<8x128xf32> to vector<8x32xf32>
    %790 = vector.extract_strided_slice %787 {offsets = [0, 64], sizes = [8, 32], strides = [1, 1]} : vector<8x128xf32> to vector<8x32xf32>
    %791 = vector.extract_strided_slice %786 {offsets = [0, 96], sizes = [8, 32], strides = [1, 1]} : vector<8x128xf32> to vector<8x32xf32>
    %792 = arith.mulf %789, %746 : vector<8x32xf32>
    %793 = arith.mulf %788, %790 : vector<8x32xf32>
    %794 = arith.addf %792, %793 : vector<8x32xf32>
    %795 = math.tanh %794 : vector<8x32xf32>
    %796 = arith.mulf %791, %795 : vector<8x32xf32>
    %797 = arith.truncf %777 : vector<8x32xf32> to vector<8x32xbf16>
    %c4 = arith.constant 4 : index
    %c0_183 = arith.constant 0 : index
    %c0_184 = arith.constant 0 : index
    %798 = vector.load %arg17[%c4, %c0_183, %c0_184] : memref<18x32x2xbf16, #tpu.memory_space<vmem>>, vector<1x32x2xbf16>
    %799 = vector.shape_cast %798 : vector<1x32x2xbf16> to vector<32x2xbf16>
    %cst_185 = arith.constant dense<0.000000e+00> : vector<8x2xf32>
    %800 = tpu.matmul %797, %799, %cst_185 {dimension_numbers = #tpu.dot_dimension_numbers<[1], [0], [0], [1], [0, 0, 1, 1], [], []>} : vector<8x32xbf16>, vector<32x2xbf16>, vector<8x2xf32> -> vector<8x2xf32>
    %801 = arith.addf %758, %800 : vector<8x2xf32>
    %802 = arith.truncf %796 : vector<8x32xf32> to vector<8x32xbf16>
    %c13 = arith.constant 13 : index
    %c0_186 = arith.constant 0 : index
    %c0_187 = arith.constant 0 : index
    %803 = vector.load %arg17[%c13, %c0_186, %c0_187] : memref<18x32x2xbf16, #tpu.memory_space<vmem>>, vector<1x32x2xbf16>
    %804 = vector.shape_cast %803 : vector<1x32x2xbf16> to vector<32x2xbf16>
    %cst_188 = arith.constant dense<0.000000e+00> : vector<8x2xf32>
    %805 = tpu.matmul %802, %804, %cst_188 {dimension_numbers = #tpu.dot_dimension_numbers<[1], [0], [0], [1], [0, 0, 1, 1], [], []>} : vector<8x32xbf16>, vector<32x2xbf16>, vector<8x2xf32> -> vector<8x2xf32>
    %806 = arith.addf %801, %805 : vector<8x2xf32>
    %807 = vector.extract_strided_slice %654 {offsets = [24, 0], sizes = [8, 128], strides = [1, 1]} : vector<72x128xf32> to vector<8x128xf32>
    %808 = arith.truncf %777 : vector<8x32xf32> to vector<8x32xbf16>
    %cst_189 = arith.constant dense<0.000000e+00> : vector<8x128xf32>
    %809 = tpu.matmul %808, %656, %cst_189 {dimension_numbers = #tpu.dot_dimension_numbers<[1], [0], [0], [1], [0, 0, 1, 1], [], []>} : vector<8x32xbf16>, vector<32x128xbf16>, vector<8x128xf32> -> vector<8x128xf32>
    %810 = arith.addf %807, %809 : vector<8x128xf32>
    %811 = arith.negf %810 : vector<8x128xf32>
    %812 = math.exp %811 : vector<8x128xf32>
    %cst_190 = arith.constant 1.000000e+00 : f32
    %813 = vector.broadcast %cst_190 : f32 to vector<8x128xf32>
    %814 = arith.addf %813, %812 : vector<8x128xf32>
    %815 = arith.divf %813, %814 : vector<8x128xf32>
    %816 = math.tanh %810 : vector<8x128xf32>
    %817 = vector.extract_strided_slice %815 {offsets = [0, 0], sizes = [8, 32], strides = [1, 1]} : vector<8x128xf32> to vector<8x32xf32>
    %818 = vector.extract_strided_slice %815 {offsets = [0, 32], sizes = [8, 32], strides = [1, 1]} : vector<8x128xf32> to vector<8x32xf32>
    %819 = vector.extract_strided_slice %816 {offsets = [0, 64], sizes = [8, 32], strides = [1, 1]} : vector<8x128xf32> to vector<8x32xf32>
    %820 = vector.extract_strided_slice %815 {offsets = [0, 96], sizes = [8, 32], strides = [1, 1]} : vector<8x128xf32> to vector<8x32xf32>
    %821 = arith.mulf %818, %775 : vector<8x32xf32>
    %822 = arith.mulf %817, %819 : vector<8x32xf32>
    %823 = arith.addf %821, %822 : vector<8x32xf32>
    %824 = math.tanh %823 : vector<8x32xf32>
    %825 = arith.mulf %820, %824 : vector<8x32xf32>
    %826 = vector.extract_strided_slice %655 {offsets = [40, 0], sizes = [8, 128], strides = [1, 1]} : vector<72x128xf32> to vector<8x128xf32>
    %827 = arith.truncf %796 : vector<8x32xf32> to vector<8x32xbf16>
    %cst_191 = arith.constant dense<0.000000e+00> : vector<8x128xf32>
    %828 = tpu.matmul %827, %657, %cst_191 {dimension_numbers = #tpu.dot_dimension_numbers<[1], [0], [0], [1], [0, 0, 1, 1], [], []>} : vector<8x32xbf16>, vector<32x128xbf16>, vector<8x128xf32> -> vector<8x128xf32>
    %829 = arith.addf %826, %828 : vector<8x128xf32>
    %830 = arith.negf %829 : vector<8x128xf32>
    %831 = math.exp %830 : vector<8x128xf32>
    %cst_192 = arith.constant 1.000000e+00 : f32
    %832 = vector.broadcast %cst_192 : f32 to vector<8x128xf32>
    %833 = arith.addf %832, %831 : vector<8x128xf32>
    %834 = arith.divf %832, %833 : vector<8x128xf32>
    %835 = math.tanh %829 : vector<8x128xf32>
    %836 = vector.extract_strided_slice %834 {offsets = [0, 0], sizes = [8, 32], strides = [1, 1]} : vector<8x128xf32> to vector<8x32xf32>
    %837 = vector.extract_strided_slice %834 {offsets = [0, 32], sizes = [8, 32], strides = [1, 1]} : vector<8x128xf32> to vector<8x32xf32>
    %838 = vector.extract_strided_slice %835 {offsets = [0, 64], sizes = [8, 32], strides = [1, 1]} : vector<8x128xf32> to vector<8x32xf32>
    %839 = vector.extract_strided_slice %834 {offsets = [0, 96], sizes = [8, 32], strides = [1, 1]} : vector<8x128xf32> to vector<8x32xf32>
    %840 = arith.mulf %837, %794 : vector<8x32xf32>
    %841 = arith.mulf %836, %838 : vector<8x32xf32>
    %842 = arith.addf %840, %841 : vector<8x32xf32>
    %843 = math.tanh %842 : vector<8x32xf32>
    %844 = arith.mulf %839, %843 : vector<8x32xf32>
    %845 = arith.truncf %825 : vector<8x32xf32> to vector<8x32xbf16>
    %c6 = arith.constant 6 : index
    %c0_193 = arith.constant 0 : index
    %c0_194 = arith.constant 0 : index
    %846 = vector.load %arg17[%c6, %c0_193, %c0_194] : memref<18x32x2xbf16, #tpu.memory_space<vmem>>, vector<1x32x2xbf16>
    %847 = vector.shape_cast %846 : vector<1x32x2xbf16> to vector<32x2xbf16>
    %cst_195 = arith.constant dense<0.000000e+00> : vector<8x2xf32>
    %848 = tpu.matmul %845, %847, %cst_195 {dimension_numbers = #tpu.dot_dimension_numbers<[1], [0], [0], [1], [0, 0, 1, 1], [], []>} : vector<8x32xbf16>, vector<32x2xbf16>, vector<8x2xf32> -> vector<8x2xf32>
    %849 = arith.addf %806, %848 : vector<8x2xf32>
    %850 = arith.truncf %844 : vector<8x32xf32> to vector<8x32xbf16>
    %c11 = arith.constant 11 : index
    %c0_196 = arith.constant 0 : index
    %c0_197 = arith.constant 0 : index
    %851 = vector.load %arg17[%c11, %c0_196, %c0_197] : memref<18x32x2xbf16, #tpu.memory_space<vmem>>, vector<1x32x2xbf16>
    %852 = vector.shape_cast %851 : vector<1x32x2xbf16> to vector<32x2xbf16>
    %cst_198 = arith.constant dense<0.000000e+00> : vector<8x2xf32>
    %853 = tpu.matmul %850, %852, %cst_198 {dimension_numbers = #tpu.dot_dimension_numbers<[1], [0], [0], [1], [0, 0, 1, 1], [], []>} : vector<8x32xbf16>, vector<32x2xbf16>, vector<8x2xf32> -> vector<8x2xf32>
    %854 = arith.addf %849, %853 : vector<8x2xf32>
    %855 = vector.extract_strided_slice %654 {offsets = [32, 0], sizes = [8, 128], strides = [1, 1]} : vector<72x128xf32> to vector<8x128xf32>
    %856 = arith.truncf %825 : vector<8x32xf32> to vector<8x32xbf16>
    %cst_199 = arith.constant dense<0.000000e+00> : vector<8x128xf32>
    %857 = tpu.matmul %856, %656, %cst_199 {dimension_numbers = #tpu.dot_dimension_numbers<[1], [0], [0], [1], [0, 0, 1, 1], [], []>} : vector<8x32xbf16>, vector<32x128xbf16>, vector<8x128xf32> -> vector<8x128xf32>
    %858 = arith.addf %855, %857 : vector<8x128xf32>
    %859 = arith.negf %858 : vector<8x128xf32>
    %860 = math.exp %859 : vector<8x128xf32>
    %cst_200 = arith.constant 1.000000e+00 : f32
    %861 = vector.broadcast %cst_200 : f32 to vector<8x128xf32>
    %862 = arith.addf %861, %860 : vector<8x128xf32>
    %863 = arith.divf %861, %862 : vector<8x128xf32>
    %864 = math.tanh %858 : vector<8x128xf32>
    %865 = vector.extract_strided_slice %863 {offsets = [0, 0], sizes = [8, 32], strides = [1, 1]} : vector<8x128xf32> to vector<8x32xf32>
    %866 = vector.extract_strided_slice %863 {offsets = [0, 32], sizes = [8, 32], strides = [1, 1]} : vector<8x128xf32> to vector<8x32xf32>
    %867 = vector.extract_strided_slice %864 {offsets = [0, 64], sizes = [8, 32], strides = [1, 1]} : vector<8x128xf32> to vector<8x32xf32>
    %868 = vector.extract_strided_slice %863 {offsets = [0, 96], sizes = [8, 32], strides = [1, 1]} : vector<8x128xf32> to vector<8x32xf32>
    %869 = arith.mulf %866, %823 : vector<8x32xf32>
    %870 = arith.mulf %865, %867 : vector<8x32xf32>
    %871 = arith.addf %869, %870 : vector<8x32xf32>
    %872 = math.tanh %871 : vector<8x32xf32>
    %873 = arith.mulf %868, %872 : vector<8x32xf32>
    %874 = vector.extract_strided_slice %655 {offsets = [32, 0], sizes = [8, 128], strides = [1, 1]} : vector<72x128xf32> to vector<8x128xf32>
    %875 = arith.truncf %844 : vector<8x32xf32> to vector<8x32xbf16>
    %cst_201 = arith.constant dense<0.000000e+00> : vector<8x128xf32>
    %876 = tpu.matmul %875, %657, %cst_201 {dimension_numbers = #tpu.dot_dimension_numbers<[1], [0], [0], [1], [0, 0, 1, 1], [], []>} : vector<8x32xbf16>, vector<32x128xbf16>, vector<8x128xf32> -> vector<8x128xf32>
    %877 = arith.addf %874, %876 : vector<8x128xf32>
    %878 = arith.negf %877 : vector<8x128xf32>
    %879 = math.exp %878 : vector<8x128xf32>
    %cst_202 = arith.constant 1.000000e+00 : f32
    %880 = vector.broadcast %cst_202 : f32 to vector<8x128xf32>
    %881 = arith.addf %880, %879 : vector<8x128xf32>
    %882 = arith.divf %880, %881 : vector<8x128xf32>
    %883 = math.tanh %877 : vector<8x128xf32>
    %884 = vector.extract_strided_slice %882 {offsets = [0, 0], sizes = [8, 32], strides = [1, 1]} : vector<8x128xf32> to vector<8x32xf32>
    %885 = vector.extract_strided_slice %882 {offsets = [0, 32], sizes = [8, 32], strides = [1, 1]} : vector<8x128xf32> to vector<8x32xf32>
    %886 = vector.extract_strided_slice %883 {offsets = [0, 64], sizes = [8, 32], strides = [1, 1]} : vector<8x128xf32> to vector<8x32xf32>
    %887 = vector.extract_strided_slice %882 {offsets = [0, 96], sizes = [8, 32], strides = [1, 1]} : vector<8x128xf32> to vector<8x32xf32>
    %888 = arith.mulf %885, %842 : vector<8x32xf32>
    %889 = arith.mulf %884, %886 : vector<8x32xf32>
    %890 = arith.addf %888, %889 : vector<8x32xf32>
    %891 = math.tanh %890 : vector<8x32xf32>
    %892 = arith.mulf %887, %891 : vector<8x32xf32>
    %893 = arith.truncf %873 : vector<8x32xf32> to vector<8x32xbf16>
    %c8_203 = arith.constant 8 : index
    %c0_204 = arith.constant 0 : index
    %c0_205 = arith.constant 0 : index
    %894 = vector.load %arg17[%c8_203, %c0_204, %c0_205] : memref<18x32x2xbf16, #tpu.memory_space<vmem>>, vector<1x32x2xbf16>
    %895 = vector.shape_cast %894 : vector<1x32x2xbf16> to vector<32x2xbf16>
    %cst_206 = arith.constant dense<0.000000e+00> : vector<8x2xf32>
    %896 = tpu.matmul %893, %895, %cst_206 {dimension_numbers = #tpu.dot_dimension_numbers<[1], [0], [0], [1], [0, 0, 1, 1], [], []>} : vector<8x32xbf16>, vector<32x2xbf16>, vector<8x2xf32> -> vector<8x2xf32>
    %897 = arith.addf %854, %896 : vector<8x2xf32>
    %898 = arith.truncf %892 : vector<8x32xf32> to vector<8x32xbf16>
    %c9 = arith.constant 9 : index
    %c0_207 = arith.constant 0 : index
    %c0_208 = arith.constant 0 : index
    %899 = vector.load %arg17[%c9, %c0_207, %c0_208] : memref<18x32x2xbf16, #tpu.memory_space<vmem>>, vector<1x32x2xbf16>
    %900 = vector.shape_cast %899 : vector<1x32x2xbf16> to vector<32x2xbf16>
    %cst_209 = arith.constant dense<0.000000e+00> : vector<8x2xf32>
    %901 = tpu.matmul %898, %900, %cst_209 {dimension_numbers = #tpu.dot_dimension_numbers<[1], [0], [0], [1], [0, 0, 1, 1], [], []>} : vector<8x32xbf16>, vector<32x2xbf16>, vector<8x2xf32> -> vector<8x2xf32>
    %902 = arith.addf %897, %901 : vector<8x2xf32>
    %903 = vector.extract_strided_slice %654 {offsets = [40, 0], sizes = [8, 128], strides = [1, 1]} : vector<72x128xf32> to vector<8x128xf32>
    %904 = arith.truncf %873 : vector<8x32xf32> to vector<8x32xbf16>
    %cst_210 = arith.constant dense<0.000000e+00> : vector<8x128xf32>
    %905 = tpu.matmul %904, %656, %cst_210 {dimension_numbers = #tpu.dot_dimension_numbers<[1], [0], [0], [1], [0, 0, 1, 1], [], []>} : vector<8x32xbf16>, vector<32x128xbf16>, vector<8x128xf32> -> vector<8x128xf32>
    %906 = arith.addf %903, %905 : vector<8x128xf32>
    %907 = arith.negf %906 : vector<8x128xf32>
    %908 = math.exp %907 : vector<8x128xf32>
    %cst_211 = arith.constant 1.000000e+00 : f32
    %909 = vector.broadcast %cst_211 : f32 to vector<8x128xf32>
    %910 = arith.addf %909, %908 : vector<8x128xf32>
    %911 = arith.divf %909, %910 : vector<8x128xf32>
    %912 = math.tanh %906 : vector<8x128xf32>
    %913 = vector.extract_strided_slice %911 {offsets = [0, 0], sizes = [8, 32], strides = [1, 1]} : vector<8x128xf32> to vector<8x32xf32>
    %914 = vector.extract_strided_slice %911 {offsets = [0, 32], sizes = [8, 32], strides = [1, 1]} : vector<8x128xf32> to vector<8x32xf32>
    %915 = vector.extract_strided_slice %912 {offsets = [0, 64], sizes = [8, 32], strides = [1, 1]} : vector<8x128xf32> to vector<8x32xf32>
    %916 = vector.extract_strided_slice %911 {offsets = [0, 96], sizes = [8, 32], strides = [1, 1]} : vector<8x128xf32> to vector<8x32xf32>
    %917 = arith.mulf %914, %871 : vector<8x32xf32>
    %918 = arith.mulf %913, %915 : vector<8x32xf32>
    %919 = arith.addf %917, %918 : vector<8x32xf32>
    %920 = math.tanh %919 : vector<8x32xf32>
    %921 = arith.mulf %916, %920 : vector<8x32xf32>
    %922 = vector.extract_strided_slice %655 {offsets = [24, 0], sizes = [8, 128], strides = [1, 1]} : vector<72x128xf32> to vector<8x128xf32>
    %923 = arith.truncf %892 : vector<8x32xf32> to vector<8x32xbf16>
    %cst_212 = arith.constant dense<0.000000e+00> : vector<8x128xf32>
    %924 = tpu.matmul %923, %657, %cst_212 {dimension_numbers = #tpu.dot_dimension_numbers<[1], [0], [0], [1], [0, 0, 1, 1], [], []>} : vector<8x32xbf16>, vector<32x128xbf16>, vector<8x128xf32> -> vector<8x128xf32>
    %925 = arith.addf %922, %924 : vector<8x128xf32>
    %926 = arith.negf %925 : vector<8x128xf32>
    %927 = math.exp %926 : vector<8x128xf32>
    %cst_213 = arith.constant 1.000000e+00 : f32
    %928 = vector.broadcast %cst_213 : f32 to vector<8x128xf32>
    %929 = arith.addf %928, %927 : vector<8x128xf32>
    %930 = arith.divf %928, %929 : vector<8x128xf32>
    %931 = math.tanh %925 : vector<8x128xf32>
    %932 = vector.extract_strided_slice %930 {offsets = [0, 0], sizes = [8, 32], strides = [1, 1]} : vector<8x128xf32> to vector<8x32xf32>
    %933 = vector.extract_strided_slice %930 {offsets = [0, 32], sizes = [8, 32], strides = [1, 1]} : vector<8x128xf32> to vector<8x32xf32>
    %934 = vector.extract_strided_slice %931 {offsets = [0, 64], sizes = [8, 32], strides = [1, 1]} : vector<8x128xf32> to vector<8x32xf32>
    %935 = vector.extract_strided_slice %930 {offsets = [0, 96], sizes = [8, 32], strides = [1, 1]} : vector<8x128xf32> to vector<8x32xf32>
    %936 = arith.mulf %933, %890 : vector<8x32xf32>
    %937 = arith.mulf %932, %934 : vector<8x32xf32>
    %938 = arith.addf %936, %937 : vector<8x32xf32>
    %939 = math.tanh %938 : vector<8x32xf32>
    %940 = arith.mulf %935, %939 : vector<8x32xf32>
    %941 = arith.truncf %921 : vector<8x32xf32> to vector<8x32xbf16>
    %c10 = arith.constant 10 : index
    %c0_214 = arith.constant 0 : index
    %c0_215 = arith.constant 0 : index
    %942 = vector.load %arg17[%c10, %c0_214, %c0_215] : memref<18x32x2xbf16, #tpu.memory_space<vmem>>, vector<1x32x2xbf16>
    %943 = vector.shape_cast %942 : vector<1x32x2xbf16> to vector<32x2xbf16>
    %cst_216 = arith.constant dense<0.000000e+00> : vector<8x2xf32>
    %944 = tpu.matmul %941, %943, %cst_216 {dimension_numbers = #tpu.dot_dimension_numbers<[1], [0], [0], [1], [0, 0, 1, 1], [], []>} : vector<8x32xbf16>, vector<32x2xbf16>, vector<8x2xf32> -> vector<8x2xf32>
    %945 = arith.addf %902, %944 : vector<8x2xf32>
    %946 = arith.truncf %940 : vector<8x32xf32> to vector<8x32xbf16>
    %c7 = arith.constant 7 : index
    %c0_217 = arith.constant 0 : index
    %c0_218 = arith.constant 0 : index
    %947 = vector.load %arg17[%c7, %c0_217, %c0_218] : memref<18x32x2xbf16, #tpu.memory_space<vmem>>, vector<1x32x2xbf16>
    %948 = vector.shape_cast %947 : vector<1x32x2xbf16> to vector<32x2xbf16>
    %cst_219 = arith.constant dense<0.000000e+00> : vector<8x2xf32>
    %949 = tpu.matmul %946, %948, %cst_219 {dimension_numbers = #tpu.dot_dimension_numbers<[1], [0], [0], [1], [0, 0, 1, 1], [], []>} : vector<8x32xbf16>, vector<32x2xbf16>, vector<8x2xf32> -> vector<8x2xf32>
    %950 = arith.addf %945, %949 : vector<8x2xf32>
    %951 = vector.extract_strided_slice %654 {offsets = [48, 0], sizes = [8, 128], strides = [1, 1]} : vector<72x128xf32> to vector<8x128xf32>
    %952 = arith.truncf %921 : vector<8x32xf32> to vector<8x32xbf16>
    %cst_220 = arith.constant dense<0.000000e+00> : vector<8x128xf32>
    %953 = tpu.matmul %952, %656, %cst_220 {dimension_numbers = #tpu.dot_dimension_numbers<[1], [0], [0], [1], [0, 0, 1, 1], [], []>} : vector<8x32xbf16>, vector<32x128xbf16>, vector<8x128xf32> -> vector<8x128xf32>
    %954 = arith.addf %951, %953 : vector<8x128xf32>
    %955 = arith.negf %954 : vector<8x128xf32>
    %956 = math.exp %955 : vector<8x128xf32>
    %cst_221 = arith.constant 1.000000e+00 : f32
    %957 = vector.broadcast %cst_221 : f32 to vector<8x128xf32>
    %958 = arith.addf %957, %956 : vector<8x128xf32>
    %959 = arith.divf %957, %958 : vector<8x128xf32>
    %960 = math.tanh %954 : vector<8x128xf32>
    %961 = vector.extract_strided_slice %959 {offsets = [0, 0], sizes = [8, 32], strides = [1, 1]} : vector<8x128xf32> to vector<8x32xf32>
    %962 = vector.extract_strided_slice %959 {offsets = [0, 32], sizes = [8, 32], strides = [1, 1]} : vector<8x128xf32> to vector<8x32xf32>
    %963 = vector.extract_strided_slice %960 {offsets = [0, 64], sizes = [8, 32], strides = [1, 1]} : vector<8x128xf32> to vector<8x32xf32>
    %964 = vector.extract_strided_slice %959 {offsets = [0, 96], sizes = [8, 32], strides = [1, 1]} : vector<8x128xf32> to vector<8x32xf32>
    %965 = arith.mulf %962, %919 : vector<8x32xf32>
    %966 = arith.mulf %961, %963 : vector<8x32xf32>
    %967 = arith.addf %965, %966 : vector<8x32xf32>
    %968 = math.tanh %967 : vector<8x32xf32>
    %969 = arith.mulf %964, %968 : vector<8x32xf32>
    %970 = vector.extract_strided_slice %655 {offsets = [16, 0], sizes = [8, 128], strides = [1, 1]} : vector<72x128xf32> to vector<8x128xf32>
    %971 = arith.truncf %940 : vector<8x32xf32> to vector<8x32xbf16>
    %cst_222 = arith.constant dense<0.000000e+00> : vector<8x128xf32>
    %972 = tpu.matmul %971, %657, %cst_222 {dimension_numbers = #tpu.dot_dimension_numbers<[1], [0], [0], [1], [0, 0, 1, 1], [], []>} : vector<8x32xbf16>, vector<32x128xbf16>, vector<8x128xf32> -> vector<8x128xf32>
    %973 = arith.addf %970, %972 : vector<8x128xf32>
    %974 = arith.negf %973 : vector<8x128xf32>
    %975 = math.exp %974 : vector<8x128xf32>
    %cst_223 = arith.constant 1.000000e+00 : f32
    %976 = vector.broadcast %cst_223 : f32 to vector<8x128xf32>
    %977 = arith.addf %976, %975 : vector<8x128xf32>
    %978 = arith.divf %976, %977 : vector<8x128xf32>
    %979 = math.tanh %973 : vector<8x128xf32>
    %980 = vector.extract_strided_slice %978 {offsets = [0, 0], sizes = [8, 32], strides = [1, 1]} : vector<8x128xf32> to vector<8x32xf32>
    %981 = vector.extract_strided_slice %978 {offsets = [0, 32], sizes = [8, 32], strides = [1, 1]} : vector<8x128xf32> to vector<8x32xf32>
    %982 = vector.extract_strided_slice %979 {offsets = [0, 64], sizes = [8, 32], strides = [1, 1]} : vector<8x128xf32> to vector<8x32xf32>
    %983 = vector.extract_strided_slice %978 {offsets = [0, 96], sizes = [8, 32], strides = [1, 1]} : vector<8x128xf32> to vector<8x32xf32>
    %984 = arith.mulf %981, %938 : vector<8x32xf32>
    %985 = arith.mulf %980, %982 : vector<8x32xf32>
    %986 = arith.addf %984, %985 : vector<8x32xf32>
    %987 = math.tanh %986 : vector<8x32xf32>
    %988 = arith.mulf %983, %987 : vector<8x32xf32>
    %989 = arith.truncf %969 : vector<8x32xf32> to vector<8x32xbf16>
    %c12 = arith.constant 12 : index
    %c0_224 = arith.constant 0 : index
    %c0_225 = arith.constant 0 : index
    %990 = vector.load %arg17[%c12, %c0_224, %c0_225] : memref<18x32x2xbf16, #tpu.memory_space<vmem>>, vector<1x32x2xbf16>
    %991 = vector.shape_cast %990 : vector<1x32x2xbf16> to vector<32x2xbf16>
    %cst_226 = arith.constant dense<0.000000e+00> : vector<8x2xf32>
    %992 = tpu.matmul %989, %991, %cst_226 {dimension_numbers = #tpu.dot_dimension_numbers<[1], [0], [0], [1], [0, 0, 1, 1], [], []>} : vector<8x32xbf16>, vector<32x2xbf16>, vector<8x2xf32> -> vector<8x2xf32>
    %993 = arith.addf %950, %992 : vector<8x2xf32>
    %994 = arith.truncf %988 : vector<8x32xf32> to vector<8x32xbf16>
    %c5 = arith.constant 5 : index
    %c0_227 = arith.constant 0 : index
    %c0_228 = arith.constant 0 : index
    %995 = vector.load %arg17[%c5, %c0_227, %c0_228] : memref<18x32x2xbf16, #tpu.memory_space<vmem>>, vector<1x32x2xbf16>
    %996 = vector.shape_cast %995 : vector<1x32x2xbf16> to vector<32x2xbf16>
    %cst_229 = arith.constant dense<0.000000e+00> : vector<8x2xf32>
    %997 = tpu.matmul %994, %996, %cst_229 {dimension_numbers = #tpu.dot_dimension_numbers<[1], [0], [0], [1], [0, 0, 1, 1], [], []>} : vector<8x32xbf16>, vector<32x2xbf16>, vector<8x2xf32> -> vector<8x2xf32>
    %998 = arith.addf %993, %997 : vector<8x2xf32>
    %999 = vector.extract_strided_slice %654 {offsets = [56, 0], sizes = [8, 128], strides = [1, 1]} : vector<72x128xf32> to vector<8x128xf32>
    %1000 = arith.truncf %969 : vector<8x32xf32> to vector<8x32xbf16>
    %cst_230 = arith.constant dense<0.000000e+00> : vector<8x128xf32>
    %1001 = tpu.matmul %1000, %656, %cst_230 {dimension_numbers = #tpu.dot_dimension_numbers<[1], [0], [0], [1], [0, 0, 1, 1], [], []>} : vector<8x32xbf16>, vector<32x128xbf16>, vector<8x128xf32> -> vector<8x128xf32>
    %1002 = arith.addf %999, %1001 : vector<8x128xf32>
    %1003 = arith.negf %1002 : vector<8x128xf32>
    %1004 = math.exp %1003 : vector<8x128xf32>
    %cst_231 = arith.constant 1.000000e+00 : f32
    %1005 = vector.broadcast %cst_231 : f32 to vector<8x128xf32>
    %1006 = arith.addf %1005, %1004 : vector<8x128xf32>
    %1007 = arith.divf %1005, %1006 : vector<8x128xf32>
    %1008 = math.tanh %1002 : vector<8x128xf32>
    %1009 = vector.extract_strided_slice %1007 {offsets = [0, 0], sizes = [8, 32], strides = [1, 1]} : vector<8x128xf32> to vector<8x32xf32>
    %1010 = vector.extract_strided_slice %1007 {offsets = [0, 32], sizes = [8, 32], strides = [1, 1]} : vector<8x128xf32> to vector<8x32xf32>
    %1011 = vector.extract_strided_slice %1008 {offsets = [0, 64], sizes = [8, 32], strides = [1, 1]} : vector<8x128xf32> to vector<8x32xf32>
    %1012 = vector.extract_strided_slice %1007 {offsets = [0, 96], sizes = [8, 32], strides = [1, 1]} : vector<8x128xf32> to vector<8x32xf32>
    %1013 = arith.mulf %1010, %967 : vector<8x32xf32>
    %1014 = arith.mulf %1009, %1011 : vector<8x32xf32>
    %1015 = arith.addf %1013, %1014 : vector<8x32xf32>
    %1016 = math.tanh %1015 : vector<8x32xf32>
    %1017 = arith.mulf %1012, %1016 : vector<8x32xf32>
    %1018 = vector.extract_strided_slice %655 {offsets = [8, 0], sizes = [8, 128], strides = [1, 1]} : vector<72x128xf32> to vector<8x128xf32>
    %1019 = arith.truncf %988 : vector<8x32xf32> to vector<8x32xbf16>
    %cst_232 = arith.constant dense<0.000000e+00> : vector<8x128xf32>
    %1020 = tpu.matmul %1019, %657, %cst_232 {dimension_numbers = #tpu.dot_dimension_numbers<[1], [0], [0], [1], [0, 0, 1, 1], [], []>} : vector<8x32xbf16>, vector<32x128xbf16>, vector<8x128xf32> -> vector<8x128xf32>
    %1021 = arith.addf %1018, %1020 : vector<8x128xf32>
    %1022 = arith.negf %1021 : vector<8x128xf32>
    %1023 = math.exp %1022 : vector<8x128xf32>
    %cst_233 = arith.constant 1.000000e+00 : f32
    %1024 = vector.broadcast %cst_233 : f32 to vector<8x128xf32>
    %1025 = arith.addf %1024, %1023 : vector<8x128xf32>
    %1026 = arith.divf %1024, %1025 : vector<8x128xf32>
    %1027 = math.tanh %1021 : vector<8x128xf32>
    %1028 = vector.extract_strided_slice %1026 {offsets = [0, 0], sizes = [8, 32], strides = [1, 1]} : vector<8x128xf32> to vector<8x32xf32>
    %1029 = vector.extract_strided_slice %1026 {offsets = [0, 32], sizes = [8, 32], strides = [1, 1]} : vector<8x128xf32> to vector<8x32xf32>
    %1030 = vector.extract_strided_slice %1027 {offsets = [0, 64], sizes = [8, 32], strides = [1, 1]} : vector<8x128xf32> to vector<8x32xf32>
    %1031 = vector.extract_strided_slice %1026 {offsets = [0, 96], sizes = [8, 32], strides = [1, 1]} : vector<8x128xf32> to vector<8x32xf32>
    %1032 = arith.mulf %1029, %986 : vector<8x32xf32>
    %1033 = arith.mulf %1028, %1030 : vector<8x32xf32>
    %1034 = arith.addf %1032, %1033 : vector<8x32xf32>
    %1035 = math.tanh %1034 : vector<8x32xf32>
    %1036 = arith.mulf %1031, %1035 : vector<8x32xf32>
    %1037 = arith.truncf %1017 : vector<8x32xf32> to vector<8x32xbf16>
    %c14 = arith.constant 14 : index
    %c0_234 = arith.constant 0 : index
    %c0_235 = arith.constant 0 : index
    %1038 = vector.load %arg17[%c14, %c0_234, %c0_235] : memref<18x32x2xbf16, #tpu.memory_space<vmem>>, vector<1x32x2xbf16>
    %1039 = vector.shape_cast %1038 : vector<1x32x2xbf16> to vector<32x2xbf16>
    %cst_236 = arith.constant dense<0.000000e+00> : vector<8x2xf32>
    %1040 = tpu.matmul %1037, %1039, %cst_236 {dimension_numbers = #tpu.dot_dimension_numbers<[1], [0], [0], [1], [0, 0, 1, 1], [], []>} : vector<8x32xbf16>, vector<32x2xbf16>, vector<8x2xf32> -> vector<8x2xf32>
    %1041 = arith.addf %998, %1040 : vector<8x2xf32>
    %1042 = arith.truncf %1036 : vector<8x32xf32> to vector<8x32xbf16>
    %c3 = arith.constant 3 : index
    %c0_237 = arith.constant 0 : index
    %c0_238 = arith.constant 0 : index
    %1043 = vector.load %arg17[%c3, %c0_237, %c0_238] : memref<18x32x2xbf16, #tpu.memory_space<vmem>>, vector<1x32x2xbf16>
    %1044 = vector.shape_cast %1043 : vector<1x32x2xbf16> to vector<32x2xbf16>
    %cst_239 = arith.constant dense<0.000000e+00> : vector<8x2xf32>
    %1045 = tpu.matmul %1042, %1044, %cst_239 {dimension_numbers = #tpu.dot_dimension_numbers<[1], [0], [0], [1], [0, 0, 1, 1], [], []>} : vector<8x32xbf16>, vector<32x2xbf16>, vector<8x2xf32> -> vector<8x2xf32>
    %1046 = arith.addf %1041, %1045 : vector<8x2xf32>
    %1047 = vector.extract_strided_slice %654 {offsets = [64, 0], sizes = [8, 128], strides = [1, 1]} : vector<72x128xf32> to vector<8x128xf32>
    %1048 = arith.truncf %1017 : vector<8x32xf32> to vector<8x32xbf16>
    %cst_240 = arith.constant dense<0.000000e+00> : vector<8x128xf32>
    %1049 = tpu.matmul %1048, %656, %cst_240 {dimension_numbers = #tpu.dot_dimension_numbers<[1], [0], [0], [1], [0, 0, 1, 1], [], []>} : vector<8x32xbf16>, vector<32x128xbf16>, vector<8x128xf32> -> vector<8x128xf32>
    %1050 = arith.addf %1047, %1049 : vector<8x128xf32>
    %1051 = arith.negf %1050 : vector<8x128xf32>
    %1052 = math.exp %1051 : vector<8x128xf32>
    %cst_241 = arith.constant 1.000000e+00 : f32
    %1053 = vector.broadcast %cst_241 : f32 to vector<8x128xf32>
    %1054 = arith.addf %1053, %1052 : vector<8x128xf32>
    %1055 = arith.divf %1053, %1054 : vector<8x128xf32>
    %1056 = math.tanh %1050 : vector<8x128xf32>
    %1057 = vector.extract_strided_slice %1055 {offsets = [0, 0], sizes = [8, 32], strides = [1, 1]} : vector<8x128xf32> to vector<8x32xf32>
    %1058 = vector.extract_strided_slice %1055 {offsets = [0, 32], sizes = [8, 32], strides = [1, 1]} : vector<8x128xf32> to vector<8x32xf32>
    %1059 = vector.extract_strided_slice %1056 {offsets = [0, 64], sizes = [8, 32], strides = [1, 1]} : vector<8x128xf32> to vector<8x32xf32>
    %1060 = vector.extract_strided_slice %1055 {offsets = [0, 96], sizes = [8, 32], strides = [1, 1]} : vector<8x128xf32> to vector<8x32xf32>
    %1061 = arith.mulf %1058, %1015 : vector<8x32xf32>
    %1062 = arith.mulf %1057, %1059 : vector<8x32xf32>
    %1063 = arith.addf %1061, %1062 : vector<8x32xf32>
    %1064 = math.tanh %1063 : vector<8x32xf32>
    %1065 = arith.mulf %1060, %1064 : vector<8x32xf32>
    %1066 = vector.extract_strided_slice %655 {offsets = [0, 0], sizes = [8, 128], strides = [1, 1]} : vector<72x128xf32> to vector<8x128xf32>
    %1067 = arith.truncf %1036 : vector<8x32xf32> to vector<8x32xbf16>
    %cst_242 = arith.constant dense<0.000000e+00> : vector<8x128xf32>
    %1068 = tpu.matmul %1067, %657, %cst_242 {dimension_numbers = #tpu.dot_dimension_numbers<[1], [0], [0], [1], [0, 0, 1, 1], [], []>} : vector<8x32xbf16>, vector<32x128xbf16>, vector<8x128xf32> -> vector<8x128xf32>
    %1069 = arith.addf %1066, %1068 : vector<8x128xf32>
    %1070 = arith.negf %1069 : vector<8x128xf32>
    %1071 = math.exp %1070 : vector<8x128xf32>
    %cst_243 = arith.constant 1.000000e+00 : f32
    %1072 = vector.broadcast %cst_243 : f32 to vector<8x128xf32>
    %1073 = arith.addf %1072, %1071 : vector<8x128xf32>
    %1074 = arith.divf %1072, %1073 : vector<8x128xf32>
    %1075 = math.tanh %1069 : vector<8x128xf32>
    %1076 = vector.extract_strided_slice %1074 {offsets = [0, 0], sizes = [8, 32], strides = [1, 1]} : vector<8x128xf32> to vector<8x32xf32>
    %1077 = vector.extract_strided_slice %1074 {offsets = [0, 32], sizes = [8, 32], strides = [1, 1]} : vector<8x128xf32> to vector<8x32xf32>
    %1078 = vector.extract_strided_slice %1075 {offsets = [0, 64], sizes = [8, 32], strides = [1, 1]} : vector<8x128xf32> to vector<8x32xf32>
    %1079 = vector.extract_strided_slice %1074 {offsets = [0, 96], sizes = [8, 32], strides = [1, 1]} : vector<8x128xf32> to vector<8x32xf32>
    %1080 = arith.mulf %1077, %1034 : vector<8x32xf32>
    %1081 = arith.mulf %1076, %1078 : vector<8x32xf32>
    %1082 = arith.addf %1080, %1081 : vector<8x32xf32>
    %1083 = math.tanh %1082 : vector<8x32xf32>
    %1084 = arith.mulf %1079, %1083 : vector<8x32xf32>
    %1085 = arith.truncf %1065 : vector<8x32xf32> to vector<8x32xbf16>
    %c16_244 = arith.constant 16 : index
    %c0_245 = arith.constant 0 : index
    %c0_246 = arith.constant 0 : index
    %1086 = vector.load %arg17[%c16_244, %c0_245, %c0_246] : memref<18x32x2xbf16, #tpu.memory_space<vmem>>, vector<1x32x2xbf16>
    %1087 = vector.shape_cast %1086 : vector<1x32x2xbf16> to vector<32x2xbf16>
    %cst_247 = arith.constant dense<0.000000e+00> : vector<8x2xf32>
    %1088 = tpu.matmul %1085, %1087, %cst_247 {dimension_numbers = #tpu.dot_dimension_numbers<[1], [0], [0], [1], [0, 0, 1, 1], [], []>} : vector<8x32xbf16>, vector<32x2xbf16>, vector<8x2xf32> -> vector<8x2xf32>
    %1089 = arith.addf %1046, %1088 : vector<8x2xf32>
    %1090 = arith.truncf %1084 : vector<8x32xf32> to vector<8x32xbf16>
    %c1 = arith.constant 1 : index
    %c0_248 = arith.constant 0 : index
    %c0_249 = arith.constant 0 : index
    %1091 = vector.load %arg17[%c1, %c0_248, %c0_249] : memref<18x32x2xbf16, #tpu.memory_space<vmem>>, vector<1x32x2xbf16>
    %1092 = vector.shape_cast %1091 : vector<1x32x2xbf16> to vector<32x2xbf16>
    %cst_250 = arith.constant dense<0.000000e+00> : vector<8x2xf32>
    %1093 = tpu.matmul %1090, %1092, %cst_250 {dimension_numbers = #tpu.dot_dimension_numbers<[1], [0], [0], [1], [0, 0, 1, 1], [], []>} : vector<8x32xbf16>, vector<32x2xbf16>, vector<8x2xf32> -> vector<8x2xf32>
    %1094 = arith.addf %1089, %1093 : vector<8x2xf32>
    %c0_251 = arith.constant 0 : index
    %c0_252 = arith.constant 0 : index
    %1095 = vector.load %arg19[%c0_251, %c0_252] : memref<8x2xf32, #tpu.memory_space<vmem>>, vector<8x2xf32>
    tpu.vector_store %arg19[%c0_251, %c0_252], %1094 {strides = array<i32>} : memref<8x2xf32, #tpu.memory_space<vmem>>, vector<8x2xf32>,
    return
  }
}

</mosaic_0001>

<llo_original>
// kernel: forward.1
$region0: #{forward.1}
  #allocation0 [shape = 'u32[]', space=smem, size = 0x4, offset = 0x4, fixed_abs, tag = 'smem constant byte address 0x4 - core index']
  #allocation1 [shape = 'u32[72,128]{1,0:T(1,128)}', space=vmem, size = 0x9000, scoped, tag = 'internal scratch']
  #allocation2 [shape = 'f32[64,128]{1,0:T(8,128)}', space=vmem, size = 0x8000, scoped, tag = 'scratch operand']
  #allocation3 [shape = 'f32[64,128]{1,0:T(8,128)}', space=vmem, size = 0x8000, scoped, tag = 'scratch operand']
  #allocation4 [shape = 'f32[72,32]{1,0:T(8,128)}', space=vmem, size = 0x9000, scoped, tag = 'scratch operand']
  #allocation5 [shape = 'f32[72,32]{1,0:T(8,128)}', space=vmem, size = 0x9000, scoped, tag = 'scratch operand']
  %s0 = inlined_call_operand.vmem [shape: f32[64,4], index: 0, kind: input, shape index: {}]
  %s1 = inlined_call_operand.vmem [shape: f32[4,128], index: 1, kind: input, shape index: {}]
  %s2 = inlined_call_operand.vmem [shape: bf16[32,128], index: 2, kind: input, shape index: {}]
  %s3 = inlined_call_operand.vmem [shape: f32[1,128], index: 3, kind: input, shape index: {}]
  %s4 = inlined_call_operand.vmem [shape: f32[4,128], index: 4, kind: input, shape index: {}]
  %s5 = inlined_call_operand.vmem [shape: bf16[32,128], index: 5, kind: input, shape index: {}]
  %s6 = inlined_call_operand.vmem [shape: f32[1,128], index: 6, kind: input, shape index: {}]
  %s7 = inlined_call_operand.vmem [shape: f32[4,128], index: 7, kind: input, shape index: {}]
  %s8 = inlined_call_operand.vmem [shape: bf16[32,128], index: 8, kind: input, shape index: {}]
  %s9 = inlined_call_operand.vmem [shape: f32[1,128], index: 9, kind: input, shape index: {}]
  %s10 = inlined_call_operand.vmem [shape: f32[4,128], index: 10, kind: input, shape index: {}]
  %s11 = inlined_call_operand.vmem [shape: bf16[32,128], index: 11, kind: input, shape index: {}]
  %s12 = inlined_call_operand.vmem [shape: f32[1,128], index: 12, kind: input, shape index: {}]
  %s13 = inlined_call_operand.vmem [shape: bf16[64,256], index: 13, kind: input, shape index: {}]
  %s14 = inlined_call_operand.vmem [shape: bf16[32,128], index: 14, kind: input, shape index: {}]
  %s15 = inlined_call_operand.vmem [shape: bf16[32,128], index: 15, kind: input, shape index: {}]
  %s16 = inlined_call_operand.vmem [shape: f32[1,256], index: 16, kind: input, shape index: {}]
  %s17 = inlined_call_operand.vmem [shape: bf16[18,32,2], index: 17, kind: input, shape index: {}]
  %s18 = inlined_call_operand.vmem [shape: f32[1,2], index: 18, kind: input, shape index: {}]
  %s19 = inlined_call_operand.vmem [shape: f32[8,2], index: 19, kind: output, shape index: {}]
  %s20 = sld [smem:[#allocation0]]
  $region86: #{forward.1} parent=0
    _
  %s22 = ssub.s32 1, %s20
  %s23 = scalar_select 0, %s22, %s20
  // Predicated region
  $region2: #{forward.1} parent=0 // pred_check
    _
  $region3: #{forward.1} parent=0 // pred_check_branch
    %25 = sbr.rel (0) target = $region5
  $region4: #{forward.1} parent=0 // pred_region
    _
  $region5: #{forward.1} parent=0 // pred_fallthru
    _
  // Predicated region
  $region6: #{forward.1} parent=0 // pred_check
    _
  $region7: #{forward.1} parent=0 // pred_check_branch
    %27 = sbr.rel (0) target = $region9
  $region8: #{forward.1} parent=0 // pred_region
    _
  $region9: #{forward.1} parent=0 // pred_fallthru
    _
  // Predicated region
  $region10: #{forward.1} parent=0 // pred_check
    _
  $region11: #{forward.1} parent=0 // pred_check_branch
    %29 = sbr.rel (0) target = $region13
  $region12: #{forward.1} parent=0 // pred_region
    _
  $region13: #{forward.1} parent=0 // pred_fallthru
    _
  // Predicated region
  $region14: #{forward.1} parent=0 // pred_check
    _
  $region15: #{forward.1} parent=0 // pred_check_branch
    %31 = sbr.rel (0) target = $region17
  $region16: #{forward.1} parent=0 // pred_region
    _
  $region17: #{forward.1} parent=0 // pred_fallthru
    _
  // Predicated region
  $region18: #{forward.1} parent=0 // pred_check
    _
  $region19: #{forward.1} parent=0 // pred_check_branch
    %33 = sbr.rel (0) target = $region21
  $region20: #{forward.1} parent=0 // pred_region
    _
  $region21: #{forward.1} parent=0 // pred_fallthru
    _
  // Predicated region
  $region22: #{forward.1} parent=0 // pred_check
    _
  $region23: #{forward.1} parent=0 // pred_check_branch
    %35 = sbr.rel (0) target = $region25
  $region24: #{forward.1} parent=0 // pred_region
    _
  $region25: #{forward.1} parent=0 // pred_fallthru
    _
  // Predicated region
  $region26: #{forward.1} parent=0 // pred_check
    _
  $region27: #{forward.1} parent=0 // pred_check_branch
    %37 = sbr.rel (0) target = $region29
  $region28: #{forward.1} parent=0 // pred_region
    _
  $region29: #{forward.1} parent=0 // pred_fallthru
    _
  // Predicated region
  $region30: #{forward.1} parent=0 // pred_check
    _
  $region31: #{forward.1} parent=0 // pred_check_branch
    %39 = sbr.rel (0) target = $region33
  $region32: #{forward.1} parent=0 // pred_region
    _
  $region33: #{forward.1} parent=0 // pred_fallthru
    _
  // Predicated region
  $region34: #{forward.1} parent=0 // pred_check
    _
  $region35: #{forward.1} parent=0 // pred_check_branch
    %41 = sbr.rel (0) target = $region37
  $region36: #{forward.1} parent=0 // pred_region
    _
  $region37: #{forward.1} parent=0 // pred_fallthru
    _
  // Predicated region
  $region38: #{forward.1} parent=0 // pred_check
    _
  $region39: #{forward.1} parent=0 // pred_check_branch
    %43 = sbr.rel (0) target = $region41
  $region40: #{forward.1} parent=0 // pred_region
    _
  $region41: #{forward.1} parent=0 // pred_fallthru
    _
  // Predicated region
  $region42: #{forward.1} parent=0 // pred_check
    _
  $region43: #{forward.1} parent=0 // pred_check_branch
    %45 = sbr.rel (0) target = $region45
  $region44: #{forward.1} parent=0 // pred_region
    _
  $region45: #{forward.1} parent=0 // pred_fallthru
    _
  // Predicated region
  $region46: #{forward.1} parent=0 // pred_check
    _
  $region47: #{forward.1} parent=0 // pred_check_branch
    %47 = sbr.rel (0) target = $region49
  $region48: #{forward.1} parent=0 // pred_region
    _
  $region49: #{forward.1} parent=0 // pred_fallthru
    _
  // Predicated region
  $region50: #{forward.1} parent=0 // pred_check
    _
  $region51: #{forward.1} parent=0 // pred_check_branch
    %49 = sbr.rel (0) target = $region53
  $region52: #{forward.1} parent=0 // pred_region
    _
  $region53: #{forward.1} parent=0 // pred_fallthru
    _
  // Predicated region
  $region54: #{forward.1} parent=0 // pred_check
    _
  $region55: #{forward.1} parent=0 // pred_check_branch
    %51 = sbr.rel (0) target = $region57
  $region56: #{forward.1} parent=0 // pred_region
    _
  $region57: #{forward.1} parent=0 // pred_fallthru
    _
  // Predicated region
  $region58: #{forward.1} parent=0 // pred_check
    _
  $region59: #{forward.1} parent=0 // pred_check_branch
    %53 = sbr.rel (0) target = $region61
  $region60: #{forward.1} parent=0 // pred_region
    _
  $region61: #{forward.1} parent=0 // pred_fallthru
    _
  // Predicated region
  $region62: #{forward.1} parent=0 // pred_check
    _
  $region63: #{forward.1} parent=0 // pred_check_branch
    %55 = sbr.rel (0) target = $region65
  $region64: #{forward.1} parent=0 // pred_region
    _
  $region65: #{forward.1} parent=0 // pred_fallthru
    _
  // Predicated region
  $region66: #{forward.1} parent=0 // pred_check
    _
  $region67: #{forward.1} parent=0 // pred_check_branch
    %57 = sbr.rel (0) target = $region69
  $region68: #{forward.1} parent=0 // pred_region
    _
  $region69: #{forward.1} parent=0 // pred_fallthru
    _
  // Predicated region
  $region70: #{forward.1} parent=0 // pred_check
    _
  $region71: #{forward.1} parent=0 // pred_check_branch
    %59 = sbr.rel (0) target = $region73
  $region72: #{forward.1} parent=0 // pred_region
    _
  $region73: #{forward.1} parent=0 // pred_fallthru
    _
  // Predicated region
  $region74: #{forward.1} parent=0 // pred_check
    _
  $region75: #{forward.1} parent=0 // pred_check_branch
    %61 = sbr.rel (0) target = $region77
  $region76: #{forward.1} parent=0 // pred_region
    _
  $region77: #{forward.1} parent=0 // pred_fallthru
    _
  %v63 = vld [vmem:[%s0] sm:$0xff]
  %v64 = vld [vmem:[%s0 + $0x8] sm:$0xff]
  %v65 = vld [vmem:[%s0 + $0x10] sm:$0xff]
  %v66 = vld [vmem:[%s0 + $0x18] sm:$0xff]
  %v67 = vld [vmem:[%s0 + $0x20] sm:$0xff]
  %v68 = vld [vmem:[%s0 + $0x28] sm:$0xff]
  %v69 = vld [vmem:[%s0 + $0x30] sm:$0xff]
  %v70 = vld [vmem:[%s0 + $0x38] sm:$0xff]
  %v71 = vld [vmem:[%s1] sm:$0xf]
  %73 = vset.pattern.permute.xlu0 0
  %74 = vperm.xlu0 %73, %v63
  %v75 = vpop.permute.xlu0 %74
  %78 = vset.pattern.permute.xlu0 0
  %79 = vperm.xlu0 %78, %v64
  %v80 = vpop.permute.xlu0 %79
  %83 = vset.pattern.permute.xlu0 0
  %84 = vperm.xlu0 %83, %v65
  %v85 = vpop.permute.xlu0 %84
  %88 = vset.pattern.permute.xlu0 0
  %89 = vperm.xlu0 %88, %v66
  %v90 = vpop.permute.xlu0 %89
  %93 = vset.pattern.permute.xlu0 0
  %94 = vperm.xlu0 %93, %v67
  %v95 = vpop.permute.xlu0 %94
  %98 = vset.pattern.permute.xlu0 0
  %99 = vperm.xlu0 %98, %v68
  %v100 = vpop.permute.xlu0 %99
  %103 = vset.pattern.permute.xlu0 0
  %104 = vperm.xlu0 %103, %v69
  %v105 = vpop.permute.xlu0 %104
  %108 = vset.pattern.permute.xlu0 0
  %109 = vperm.xlu0 %108, %v70
  %v110 = vpop.permute.xlu0 %109
  %v112 = vperm.slane %v71, 0
  %v113 = vmul.f32 %v75, %v112
  %v114 = vmul.f32 %v80, %v112
  %v115 = vmul.f32 %v85, %v112
  %v116 = vmul.f32 %v90, %v112
  %v117 = vmul.f32 %v95, %v112
  %v118 = vmul.f32 %v100, %v112
  %v119 = vmul.f32 %v105, %v112
  %v120 = vmul.f32 %v110, %v112
  %121 = vset.pattern.permute.xlu0 1
  %122 = vperm.xlu0 %121, %v63
  %v123 = vpop.permute.xlu0 %122
  %125 = vset.pattern.permute.xlu0 1
  %126 = vperm.xlu0 %125, %v64
  %v127 = vpop.permute.xlu0 %126
  %129 = vset.pattern.permute.xlu0 1
  %130 = vperm.xlu0 %129, %v65
  %v131 = vpop.permute.xlu0 %130
  %133 = vset.pattern.permute.xlu0 1
  %134 = vperm.xlu0 %133, %v66
  %v135 = vpop.permute.xlu0 %134
  %137 = vset.pattern.permute.xlu0 1
  %138 = vperm.xlu0 %137, %v67
  %v139 = vpop.permute.xlu0 %138
  %141 = vset.pattern.permute.xlu0 1
  %142 = vperm.xlu0 %141, %v68
  %v143 = vpop.permute.xlu0 %142
  %145 = vset.pattern.permute.xlu0 1
  %146 = vperm.xlu0 %145, %v69
  %v147 = vpop.permute.xlu0 %146
  %149 = vset.pattern.permute.xlu0 1
  %150 = vperm.xlu0 %149, %v70
  %v151 = vpop.permute.xlu0 %150
  %v153 = vperm.slane %v71, 1
  %v154 = vmul.f32 %v123, %v153
  %v155 = vmul.f32 %v127, %v153
  %v156 = vmul.f32 %v131, %v153
  %v157 = vmul.f32 %v135, %v153
  %v158 = vmul.f32 %v139, %v153
  %v159 = vmul.f32 %v143, %v153
  %v160 = vmul.f32 %v147, %v153
  %v161 = vmul.f32 %v151, %v153
  %v162 = vadd.f32 %v113, %v154
  %v163 = vadd.f32 %v114, %v155
  %v164 = vadd.f32 %v115, %v156
  %v165 = vadd.f32 %v116, %v157
  %v166 = vadd.f32 %v117, %v158
  %v167 = vadd.f32 %v118, %v159
  %v168 = vadd.f32 %v119, %v160
  %v169 = vadd.f32 %v120, %v161
  %170 = vset.pattern.permute.xlu0 2
  %171 = vperm.xlu0 %170, %v63
  %v172 = vpop.permute.xlu0 %171
  %174 = vset.pattern.permute.xlu0 2
  %175 = vperm.xlu0 %174, %v64
  %v176 = vpop.permute.xlu0 %175
  %178 = vset.pattern.permute.xlu0 2
  %179 = vperm.xlu0 %178, %v65
  %v180 = vpop.permute.xlu0 %179
  %182 = vset.pattern.permute.xlu0 2
  %183 = vperm.xlu0 %182, %v66
  %v184 = vpop.permute.xlu0 %183
  %186 = vset.pattern.permute.xlu0 2
  %187 = vperm.xlu0 %186, %v67
  %v188 = vpop.permute.xlu0 %187
  %190 = vset.pattern.permute.xlu0 2
  %191 = vperm.xlu0 %190, %v68
  %v192 = vpop.permute.xlu0 %191
  %194 = vset.pattern.permute.xlu0 2
  %195 = vperm.xlu0 %194, %v69
  %v196 = vpop.permute.xlu0 %195
  %198 = vset.pattern.permute.xlu0 2
  %199 = vperm.xlu0 %198, %v70
  %v200 = vpop.permute.xlu0 %199
  %v202 = vperm.slane %v71, 2
  %v203 = vmul.f32 %v172, %v202
  %v204 = vmul.f32 %v176, %v202
  %v205 = vmul.f32 %v180, %v202
  %v206 = vmul.f32 %v184, %v202
  %v207 = vmul.f32 %v188, %v202
  %v208 = vmul.f32 %v192, %v202
  %v209 = vmul.f32 %v196, %v202
  %v210 = vmul.f32 %v200, %v202
  %v211 = vadd.f32 %v162, %v203
  %v212 = vadd.f32 %v163, %v204
  %v213 = vadd.f32 %v164, %v205
  %v214 = vadd.f32 %v165, %v206
  %v215 = vadd.f32 %v166, %v207
  %v216 = vadd.f32 %v167, %v208
  %v217 = vadd.f32 %v168, %v209
  %v218 = vadd.f32 %v169, %v210
  %219 = vset.pattern.permute.xlu0 3
  %220 = vperm.xlu0 %219, %v63
  %v221 = vpop.permute.xlu0 %220
  %223 = vset.pattern.permute.xlu0 3
  %224 = vperm.xlu0 %223, %v64
  %v225 = vpop.permute.xlu0 %224
  %227 = vset.pattern.permute.xlu0 3
  %228 = vperm.xlu0 %227, %v65
  %v229 = vpop.permute.xlu0 %228
  %231 = vset.pattern.permute.xlu0 3
  %232 = vperm.xlu0 %231, %v66
  %v233 = vpop.permute.xlu0 %232
  %235 = vset.pattern.permute.xlu0 3
  %236 = vperm.xlu0 %235, %v67
  %v237 = vpop.permute.xlu0 %236
  %239 = vset.pattern.permute.xlu0 3
  %240 = vperm.xlu0 %239, %v68
  %v241 = vpop.permute.xlu0 %240
  %243 = vset.pattern.permute.xlu0 3
  %244 = vperm.xlu0 %243, %v69
  %v245 = vpop.permute.xlu0 %244
  %247 = vset.pattern.permute.xlu0 3
  %248 = vperm.xlu0 %247, %v70
  %v249 = vpop.permute.xlu0 %248
  %v251 = vperm.slane %v71, 3
  %v252 = vmul.f32 %v221, %v251
  %v253 = vmul.f32 %v225, %v251
  %v254 = vmul.f32 %v229, %v251
  %v255 = vmul.f32 %v233, %v251
  %v256 = vmul.f32 %v237, %v251
  %v257 = vmul.f32 %v241, %v251
  %v258 = vmul.f32 %v245, %v251
  %v259 = vmul.f32 %v249, %v251
  %v260 = vadd.f32 %v211, %v252
  %v261 = vadd.f32 %v212, %v253
  %v262 = vadd.f32 %v213, %v254
  %v263 = vadd.f32 %v214, %v255
  %v264 = vadd.f32 %v215, %v256
  %v265 = vadd.f32 %v216, %v257
  %v266 = vadd.f32 %v217, %v258
  %v267 = vadd.f32 %v218, %v259
  %v268 = vld [vmem:[%s3] sm:$0x1]
  %v270 = vperm.slane %v268, 0
  %v272 = vadd.f32 %v260, %v270
  %v273 = vadd.f32 %v261, %v270
  %v274 = vadd.f32 %v262, %v270
  %v275 = vadd.f32 %v263, %v270
  %v276 = vadd.f32 %v264, %v270
  %v277 = vadd.f32 %v265, %v270
  %v278 = vadd.f32 %v266, %v270
  %v279 = vadd.f32 %v267, %v270
  %280 = vst [vmem:[#allocation2] sm:$0xff] %v272
  %281 = vst [vmem:[#allocation2 + $0x8] sm:$0xff] %v273
  %282 = vst [vmem:[#allocation2 + $0x10] sm:$0xff] %v274
  %283 = vst [vmem:[#allocation2 + $0x18] sm:$0xff] %v275
  %284 = vst [vmem:[#allocation2 + $0x20] sm:$0xff] %v276
  %285 = vst [vmem:[#allocation2 + $0x28] sm:$0xff] %v277
  %286 = vst [vmem:[#allocation2 + $0x30] sm:$0xff] %v278
  %287 = vst [vmem:[#allocation2 + $0x38] sm:$0xff] %v279
  %v288 = vld [vmem:[%s4] sm:$0xf]
  %v289 = vperm.slane %v288, 0
  %v290 = vmul.f32 %v75, %v289
  %v291 = vmul.f32 %v80, %v289
  %v292 = vmul.f32 %v85, %v289
  %v293 = vmul.f32 %v90, %v289
  %v294 = vmul.f32 %v95, %v289
  %v295 = vmul.f32 %v100, %v289
  %v296 = vmul.f32 %v105, %v289
  %v297 = vmul.f32 %v110, %v289
  %v298 = vperm.slane %v288, 1
  %v299 = vmul.f32 %v123, %v298
  %v300 = vmul.f32 %v127, %v298
  %v301 = vmul.f32 %v131, %v298
  %v302 = vmul.f32 %v135, %v298
  %v303 = vmul.f32 %v139, %v298
  %v304 = vmul.f32 %v143, %v298
  %v305 = vmul.f32 %v147, %v298
  %v306 = vmul.f32 %v151, %v298
  %v307 = vadd.f32 %v290, %v299
  %v308 = vadd.f32 %v291, %v300
  %v309 = vadd.f32 %v292, %v301
  %v310 = vadd.f32 %v293, %v302
  %v311 = vadd.f32 %v294, %v303
  %v312 = vadd.f32 %v295, %v304
  %v313 = vadd.f32 %v296, %v305
  %v314 = vadd.f32 %v297, %v306
  %v315 = vperm.slane %v288, 2
  %v316 = vmul.f32 %v172, %v315
  %v317 = vmul.f32 %v176, %v315
  %v318 = vmul.f32 %v180, %v315
  %v319 = vmul.f32 %v184, %v315
  %v320 = vmul.f32 %v188, %v315
  %v321 = vmul.f32 %v192, %v315
  %v322 = vmul.f32 %v196, %v315
  %v323 = vmul.f32 %v200, %v315
  %v324 = vadd.f32 %v307, %v316
  %v325 = vadd.f32 %v308, %v317
  %v326 = vadd.f32 %v309, %v318
  %v327 = vadd.f32 %v310, %v319
  %v328 = vadd.f32 %v311, %v320
  %v329 = vadd.f32 %v312, %v321
  %v330 = vadd.f32 %v313, %v322
  %v331 = vadd.f32 %v314, %v323
  %v332 = vperm.slane %v288, 3
  %v333 = vmul.f32 %v221, %v332
  %v334 = vmul.f32 %v225, %v332
  %v335 = vmul.f32 %v229, %v332
  %v336 = vmul.f32 %v233, %v332
  %v337 = vmul.f32 %v237, %v332
  %v338 = vmul.f32 %v241, %v332
  %v339 = vmul.f32 %v245, %v332
  %v340 = vmul.f32 %v249, %v332
  %v341 = vadd.f32 %v324, %v333
  %v342 = vadd.f32 %v325, %v334
  %v343 = vadd.f32 %v326, %v335
  %v344 = vadd.f32 %v327, %v336
  %v345 = vadd.f32 %v328, %v337
  %v346 = vadd.f32 %v329, %v338
  %v347 = vadd.f32 %v330, %v339
  %v348 = vadd.f32 %v331, %v340
  %v349 = vld [vmem:[%s6] sm:$0x1]
  %v351 = vperm.slane %v349, 0
  %v353 = vadd.f32 %v341, %v351
  %v354 = vadd.f32 %v342, %v351
  %v355 = vadd.f32 %v343, %v351
  %v356 = vadd.f32 %v344, %v351
  %v357 = vadd.f32 %v345, %v351
  %v358 = vadd.f32 %v346, %v351
  %v359 = vadd.f32 %v347, %v351
  %v360 = vadd.f32 %v348, %v351
  %361 = vst [vmem:[#allocation3] sm:$0xff] %v353
  %362 = vst [vmem:[#allocation3 + $0x8] sm:$0xff] %v354
  %363 = vst [vmem:[#allocation3 + $0x10] sm:$0xff] %v355
  %364 = vst [vmem:[#allocation3 + $0x18] sm:$0xff] %v356
  %365 = vst [vmem:[#allocation3 + $0x20] sm:$0xff] %v357
  %366 = vst [vmem:[#allocation3 + $0x28] sm:$0xff] %v358
  %367 = vst [vmem:[#allocation3 + $0x30] sm:$0xff] %v359
  %368 = vst [vmem:[#allocation3 + $0x38] sm:$0xff] %v360
  %v369 = vld [vmem:[%s7] sm:$0xf]
  %v370 = vperm.slane %v369, 0
  %v371 = vmul.f32 %v110, %v370
  %v372 = vperm.slane %v369, 1
  %v373 = vmul.f32 %v151, %v372
  %v374 = vadd.f32 %v371, %v373
  %v375 = vperm.slane %v369, 2
  %v376 = vmul.f32 %v200, %v375
  %v377 = vadd.f32 %v374, %v376
  %v378 = vperm.slane %v369, 3
  %v379 = vmul.f32 %v249, %v378
  %v380 = vadd.f32 %v377, %v379
  %v381 = vld [vmem:[%s9] sm:$0x1]
  %v382 = vld [vmem:[%s2] sm:$0xf]
  %v383 = vld [vmem:[%s2 + $0x4] sm:$0xf]
  %v384 = vld [vmem:[%s2 + $0x8] sm:$0xf]
  %v385 = vld [vmem:[%s2 + $0xc] sm:$0xf]
  %v386 = vld [vmem:[%s5] sm:$0xf]
  %v387 = vld [vmem:[%s5 + $0x4] sm:$0xf]
  %v388 = vld [vmem:[%s5 + $0x8] sm:$0xf]
  %v389 = vld [vmem:[%s5 + $0xc] sm:$0xf]
  %v390 = vld [vmem:[%s8] sm:$0xf]
  %v391 = vld [vmem:[%s8 + $0x4] sm:$0xf]
  %v392 = vld [vmem:[%s8 + $0x8] sm:$0xf]
  %v393 = vld [vmem:[%s8 + $0xc] sm:$0xf]
  %v394 = vld [vmem:[#allocation2] sm:$0xff]
  %v399 = vunpack.c.l.b16 %v382
  %v400 = vunpack.c.l.b16 %v383
  %v401 = vunpack.c.l.b16 %v384
  %v402 = vunpack.c.l.b16 %v385
  %v403 = vpack.c.b16 %v400, %v399
  %v404 = vpack.c.b16 %v402, %v401
  %vm407 = vcmask 261120
  %v409 = vsel %vm407, 0, 0
  %411 = vmatpush.bf16.msra.mxu0 0
  %412 = vmatpush.bf16.msra.mxu0 0
  %413 = vmatpush.bf16.msra.mxu0 0
  %414 = vmatpush.bf16.msra.mxu0 0
  %415 = vmatpush.bf16.msra.mxu0 0
  %416 = vmatpush.bf16.msra.mxu0 0
  %417 = vmatpush.bf16.msra.mxu0 %v404
  %418 = vmatpush.bf16.msra.mxu0 %v403
  %419 = vmatmul.bf16.gmra.mxu0 %v409
  %v420 = vpop.f32.mrf.mxu0
  %v421 = vadd.f32 0.0, %v420
  %v422 = vpop.f32.mrf.mxu0
  %423 = vdwg.mxu0
  %v424 = vadd.f32 %v394, %v421
  %v425 = vxor.u32 %v424, 2147483648
  %v426 = vmul.f32 %v425, 1.442695
  %v427 = vpow.pop %v426
  %v428 = vadd.f32 %v427, 1.0
  %v429 = vrcp.pop %v428
  %v430 = vmul.f32 %v428, %v429
  %v431 = vsub.f32 1.0, %v430
  %v432 = vmul.f32 %v429, %v431
  %v433 = vadd.f32 %v429, %v432
  %vm434 = vweird.f32 %v428
  %vm435 = vweird.f32 %v429
  %vm436 = vmor %vm434, %vm435
  %v437 = vsel %vm436, %v429, %v433
  %v438 = vand.u32 2147483647, %v428
  %vm439 = vcmp.eq.f32.partialorder %v438, 8.507059e+37
  %v440 = vand.u32 %v428, 2147483648
  %v441 = vor.u32 1.1754944e-38, %v440
  %v442 = vsel %vm439, %v441, %v437
  %v443 = vmul.f32 1.0, %v442
  %v444 = vtanh.pop %v424
  %v445 = vmul.f32 %v443, 0.0
  %447 = vrot.lane.b32.xlu0 %v444, 64
  %v448 = vpop.permute.xlu0 %447
  %v450 = vmul.f32 %v443, %v448
  %452 = vrot.lane.b32.xlu0 %v450, 32
  %v453 = vpop.permute.xlu0 %452
  %v455 = vadd.f32 %v445, %v453
  %v456 = vtanh.pop %v455
  %458 = vrot.lane.b32.xlu0 %v456, 64
  %v459 = vpop.permute.xlu0 %458
  %v461 = vmul.f32 %v443, %v459
  %v462 = vld [vmem:[#allocation3 + $0x38] sm:$0xff]
  %v467 = vunpack.c.l.b16 %v386
  %v468 = vunpack.c.l.b16 %v387
  %v469 = vunpack.c.l.b16 %v388
  %v470 = vunpack.c.l.b16 %v389
  %v471 = vpack.c.b16 %v468, %v467
  %v472 = vpack.c.b16 %v470, %v469
  %475 = vmatpush.bf16.msra.mxu0 0
  %476 = vmatpush.bf16.msra.mxu0 0
  %477 = vmatpush.bf16.msra.mxu0 0
  %478 = vmatpush.bf16.msra.mxu0 0
  %479 = vmatpush.bf16.msra.mxu0 0
  %480 = vmatpush.bf16.msra.mxu0 0
  %481 = vmatpush.bf16.msra.mxu0 %v472
  %482 = vmatpush.bf16.msra.mxu0 %v471
  %483 = vmatmul.bf16.gmra.mxu0 %v409
  %v484 = vpop.f32.mrf.mxu0
  %v485 = vadd.f32 0.0, %v484
  %v486 = vpop.f32.mrf.mxu0
  %487 = vdwg.mxu0
  %v488 = vadd.f32 %v462, %v485
  %v489 = vxor.u32 %v488, 2147483648
  %v490 = vmul.f32 %v489, 1.442695
  %v491 = vpow.pop %v490
  %v492 = vadd.f32 %v491, 1.0
  %v493 = vrcp.pop %v492
  %v494 = vmul.f32 %v492, %v493
  %v495 = vsub.f32 1.0, %v494
  %v496 = vmul.f32 %v493, %v495
  %v497 = vadd.f32 %v493, %v496
  %vm498 = vweird.f32 %v492
  %vm499 = vweird.f32 %v493
  %vm500 = vmor %vm498, %vm499
  %v501 = vsel %vm500, %v493, %v497
  %v502 = vand.u32 2147483647, %v492
  %vm503 = vcmp.eq.f32.partialorder %v502, 8.507059e+37
  %v504 = vand.u32 %v492, 2147483648
  %v505 = vor.u32 1.1754944e-38, %v504
  %v506 = vsel %vm503, %v505, %v501
  %v507 = vmul.f32 1.0, %v506
  %v508 = vtanh.pop %v488
  %v509 = vmul.f32 %v507, 0.0
  %511 = vrot.lane.b32.xlu0 %v508, 64
  %v512 = vpop.permute.xlu0 %511
  %v514 = vmul.f32 %v507, %v512
  %516 = vrot.lane.b32.xlu0 %v514, 32
  %v517 = vpop.permute.xlu0 %516
  %v519 = vadd.f32 %v509, %v517
  %v520 = vtanh.pop %v519
  %522 = vrot.lane.b32.xlu0 %v520, 64
  %v523 = vpop.permute.xlu0 %522
  %v525 = vmul.f32 %v507, %v523
  %527 = vrot.lane.b32.xlu0 %v461, 32
  %v528 = vpop.permute.xlu0 %527
  %530 = vst.msk [vmem:[#allocation4] sm:$0xff] %vm407, %v528
  %532 = vrot.lane.b32.xlu0 %v525, 32
  %v533 = vpop.permute.xlu0 %532
  %535 = vst.msk [vmem:[#allocation5 + $0x38] sm:$0xff] %vm407, %v533
  %v536 = vperm.slane %v380, 0
  %v537 = vsub.f32 %v536, %v380
  %v539 = vperm.slane %v381, 0
  %v541 = vadd.f32 %v537, %v539
  %v546 = vunpack.c.l.b16 %v390
  %v547 = vunpack.c.l.b16 %v391
  %v548 = vunpack.c.l.b16 %v392
  %v549 = vunpack.c.l.b16 %v393
  %v550 = vpack.c.b16 %v547, %v546
  %v551 = vpack.c.b16 %v549, %v548
  %554 = vmatpush.bf16.msra.mxu0 0
  %555 = vmatpush.bf16.msra.mxu0 0
  %556 = vmatpush.bf16.msra.mxu0 0
  %557 = vmatpush.bf16.msra.mxu0 0
  %558 = vmatpush.bf16.msra.mxu0 0
  %559 = vmatpush.bf16.msra.mxu0 0
  %560 = vmatpush.bf16.msra.mxu0 %v551
  %561 = vmatpush.bf16.msra.mxu0 %v550
  %562 = vmatmul.bf16.gmra.mxu0 %v409
  %v563 = vpop.f32.mrf.mxu0
  %v564 = vadd.f32 0.0, %v563
  %v565 = vpop.f32.mrf.mxu0
  %566 = vdwg.mxu0
  %v567 = vadd.f32 %v541, %v564
  %v568 = vxor.u32 %v567, 2147483648
  %v569 = vmul.f32 %v568, 1.442695
  %v570 = vpow.pop %v569
  %v571 = vadd.f32 %v570, 1.0
  %v572 = vrcp.pop %v571
  %v573 = vmul.f32 %v571, %v572
  %v574 = vsub.f32 1.0, %v573
  %v575 = vmul.f32 %v572, %v574
  %v576 = vadd.f32 %v572, %v575
  %vm577 = vweird.f32 %v571
  %vm578 = vweird.f32 %v572
  %vm579 = vmor %vm577, %vm578
  %v580 = vsel %vm579, %v572, %v576
  %v581 = vand.u32 2147483647, %v571
  %vm582 = vcmp.eq.f32.partialorder %v581, 8.507059e+37
  %v583 = vand.u32 %v571, 2147483648
  %v584 = vor.u32 1.1754944e-38, %v583
  %v585 = vsel %vm582, %v584, %v580
  %v586 = vmul.f32 1.0, %v585
  %v587 = vtanh.pop %v567
  %v588 = vmul.f32 %v586, 0.0
  %590 = vrot.lane.b32.xlu0 %v587, 64
  %v591 = vpop.permute.xlu0 %590
  %v593 = vmul.f32 %v586, %v591
  %595 = vrot.lane.b32.xlu0 %v593, 32
  %v596 = vpop.permute.xlu0 %595
  %v598 = vadd.f32 %v588, %v596
  %v599 = vtanh.pop %v598
  %601 = vrot.lane.b32.xlu0 %v599, 64
  %v602 = vpop.permute.xlu0 %601
  %v604 = vmul.f32 %v586, %v602
  %v605 = vld [vmem:[#allocation2 + $0x8] sm:$0xff]
  %v606 = vpack.c.bf16 %v461, %v461
  %608 = vrot.lane.b32.xlu0 %v606, 32
  %v609 = vpop.permute.xlu0 %608
  %v611 = vsel %vm407, %v609, 0
  %613 = vmatpush.bf16.msra.mxu0 0
  %614 = vmatpush.bf16.msra.mxu0 0
  %615 = vmatpush.bf16.msra.mxu0 0
  %616 = vmatpush.bf16.msra.mxu0 0
  %617 = vmatpush.bf16.msra.mxu0 0
  %618 = vmatpush.bf16.msra.mxu0 0
  %619 = vmatpush.bf16.msra.mxu0 %v404
  %620 = vmatpush.bf16.msra.mxu0 %v403
  %621 = vmatmul.bf16.gmra.mxu0 %v611
  %v622 = vpop.f32.mrf.mxu0
  %v623 = vadd.f32 0.0, %v622
  %v624 = vpop.f32.mrf.mxu0
  %625 = vdwg.mxu0
  %v626 = vadd.f32 %v605, %v623
  %v627 = vxor.u32 %v626, 2147483648
  %v628 = vmul.f32 %v627, 1.442695
  %v629 = vpow.pop %v628
  %v630 = vadd.f32 %v629, 1.0
  %v631 = vrcp.pop %v630
  %v632 = vmul.f32 %v630, %v631
  %v633 = vsub.f32 1.0, %v632
  %v634 = vmul.f32 %v631, %v633
  %v635 = vadd.f32 %v631, %v634
  %vm636 = vweird.f32 %v630
  %vm637 = vweird.f32 %v631
  %vm638 = vmor %vm636, %vm637
  %v639 = vsel %vm638, %v631, %v635
  %v640 = vand.u32 2147483647, %v630
  %vm641 = vcmp.eq.f32.partialorder %v640, 8.507059e+37
  %v642 = vand.u32 %v630, 2147483648
  %v643 = vor.u32 1.1754944e-38, %v642
  %v644 = vsel %vm641, %v643, %v639
  %v645 = vmul.f32 1.0, %v644
  %v646 = vtanh.pop %v626
  %v647 = vmul.f32 %v645, %v455
  %649 = vrot.lane.b32.xlu0 %v646, 64
  %v650 = vpop.permute.xlu0 %649
  %v652 = vmul.f32 %v645, %v650
  %654 = vrot.lane.b32.xlu0 %v652, 32
  %v655 = vpop.permute.xlu0 %654
  %v657 = vadd.f32 %v647, %v655
  %v658 = vtanh.pop %v657
  %660 = vrot.lane.b32.xlu0 %v658, 64
  %v661 = vpop.permute.xlu0 %660
  %v663 = vmul.f32 %v645, %v661
  %v664 = vld [vmem:[#allocation3 + $0x30] sm:$0xff]
  %v665 = vpack.c.bf16 %v525, %v525
  %667 = vrot.lane.b32.xlu0 %v665, 32
  %v668 = vpop.permute.xlu0 %667
  %v670 = vsel %vm407, %v668, 0
  %672 = vmatpush.bf16.msra.mxu0 0
  %673 = vmatpush.bf16.msra.mxu0 0
  %674 = vmatpush.bf16.msra.mxu0 0
  %675 = vmatpush.bf16.msra.mxu0 0
  %676 = vmatpush.bf16.msra.mxu0 0
  %677 = vmatpush.bf16.msra.mxu0 0
  %678 = vmatpush.bf16.msra.mxu0 %v472
  %679 = vmatpush.bf16.msra.mxu0 %v471
  %680 = vmatmul.bf16.gmra.mxu0 %v670
  %v681 = vpop.f32.mrf.mxu0
  %v682 = vadd.f32 0.0, %v681
  %v683 = vpop.f32.mrf.mxu0
  %684 = vdwg.mxu0
  %v685 = vadd.f32 %v664, %v682
  %v686 = vxor.u32 %v685, 2147483648
  %v687 = vmul.f32 %v686, 1.442695
  %v688 = vpow.pop %v687
  %v689 = vadd.f32 %v688, 1.0
  %v690 = vrcp.pop %v689
  %v691 = vmul.f32 %v689, %v690
  %v692 = vsub.f32 1.0, %v691
  %v693 = vmul.f32 %v690, %v692
  %v694 = vadd.f32 %v690, %v693
  %vm695 = vweird.f32 %v689
  %vm696 = vweird.f32 %v690
  %vm697 = vmor %vm695, %vm696
  %v698 = vsel %vm697, %v690, %v694
  %v699 = vand.u32 2147483647, %v689
  %vm700 = vcmp.eq.f32.partialorder %v699, 8.507059e+37
  %v701 = vand.u32 %v689, 2147483648
  %v702 = vor.u32 1.1754944e-38, %v701
  %v703 = vsel %vm700, %v702, %v698
  %v704 = vmul.f32 1.0, %v703
  %v705 = vtanh.pop %v685
  %v706 = vmul.f32 %v704, %v519
  %708 = vrot.lane.b32.xlu0 %v705, 64
  %v709 = vpop.permute.xlu0 %708
  %v711 = vmul.f32 %v704, %v709
  %713 = vrot.lane.b32.xlu0 %v711, 32
  %v714 = vpop.permute.xlu0 %713
  %v716 = vadd.f32 %v706, %v714
  %v717 = vtanh.pop %v716
  %719 = vrot.lane.b32.xlu0 %v717, 64
  %v720 = vpop.permute.xlu0 %719
  %v722 = vmul.f32 %v704, %v720
  %724 = vrot.lane.b32.xlu0 %v663, 32
  %v725 = vpop.permute.xlu0 %724
  %727 = vst.msk [vmem:[#allocation4 + $0x8] sm:$0xff] %vm407, %v725
  %729 = vrot.lane.b32.xlu0 %v722, 32
  %v730 = vpop.permute.xlu0 %729
  %732 = vst.msk [vmem:[#allocation5 + $0x30] sm:$0xff] %vm407, %v730
  %v733 = vperm.slane %v380, 1
  %v734 = vsub.f32 %v733, %v380
  %v735 = vadd.f32 %v734, %v539
  %v736 = vpack.c.bf16 %v604, %v604
  %738 = vrot.lane.b32.xlu0 %v736, 32
  %v739 = vpop.permute.xlu0 %738
  %v741 = vsel %vm407, %v739, 0
  %743 = vmatpush.bf16.msra.mxu0 0
  %744 = vmatpush.bf16.msra.mxu0 0
  %745 = vmatpush.bf16.msra.mxu0 0
  %746 = vmatpush.bf16.msra.mxu0 0
  %747 = vmatpush.bf16.msra.mxu0 0
  %748 = vmatpush.bf16.msra.mxu0 0
  %749 = vmatpush.bf16.msra.mxu0 %v551
  %750 = vmatpush.bf16.msra.mxu0 %v550
  %751 = vmatmul.bf16.gmra.mxu0 %v741
  %v752 = vpop.f32.mrf.mxu0
  %v753 = vadd.f32 0.0, %v752
  %v754 = vpop.f32.mrf.mxu0
  %755 = vdwg.mxu0
  %v756 = vadd.f32 %v735, %v753
  %v757 = vxor.u32 %v756, 2147483648
  %v758 = vmul.f32 %v757, 1.442695
  %v759 = vpow.pop %v758
  %v760 = vadd.f32 %v759, 1.0
  %v761 = vrcp.pop %v760
  %v762 = vmul.f32 %v760, %v761
  %v763 = vsub.f32 1.0, %v762
  %v764 = vmul.f32 %v761, %v763
  %v765 = vadd.f32 %v761, %v764
  %vm766 = vweird.f32 %v760
  %vm767 = vweird.f32 %v761
  %vm768 = vmor %vm766, %vm767
  %v769 = vsel %vm768, %v761, %v765
  %v770 = vand.u32 2147483647, %v760
  %vm771 = vcmp.eq.f32.partialorder %v770, 8.507059e+37
  %v772 = vand.u32 %v760, 2147483648
  %v773 = vor.u32 1.1754944e-38, %v772
  %v774 = vsel %vm771, %v773, %v769
  %v775 = vmul.f32 1.0, %v774
  %v776 = vtanh.pop %v756
  %v777 = vmul.f32 %v775, %v598
  %779 = vrot.lane.b32.xlu0 %v776, 64
  %v780 = vpop.permute.xlu0 %779
  %v782 = vmul.f32 %v775, %v780
  %784 = vrot.lane.b32.xlu0 %v782, 32
  %v785 = vpop.permute.xlu0 %784
  %v787 = vadd.f32 %v777, %v785
  %v788 = vtanh.pop %v787
  %790 = vrot.lane.b32.xlu0 %v788, 64
  %v791 = vpop.permute.xlu0 %790
  %v793 = vmul.f32 %v775, %v791
  %v794 = vld [vmem:[#allocation2 + $0x10] sm:$0xff]
  %v795 = vpack.c.bf16 %v663, %v663
  %797 = vrot.lane.b32.xlu0 %v795, 32
  %v798 = vpop.permute.xlu0 %797
  %v800 = vsel %vm407, %v798, 0
  %802 = vmatpush.bf16.msra.mxu0 0
  %803 = vmatpush.bf16.msra.mxu0 0
  %804 = vmatpush.bf16.msra.mxu0 0
  %805 = vmatpush.bf16.msra.mxu0 0
  %806 = vmatpush.bf16.msra.mxu0 0
  %807 = vmatpush.bf16.msra.mxu0 0
  %808 = vmatpush.bf16.msra.mxu0 %v404
  %809 = vmatpush.bf16.msra.mxu0 %v403
  %810 = vmatmul.bf16.gmra.mxu0 %v800
  %v811 = vpop.f32.mrf.mxu0
  %v812 = vadd.f32 0.0, %v811
  %v813 = vpop.f32.mrf.mxu0
  %814 = vdwg.mxu0
  %v815 = vadd.f32 %v794, %v812
  %v816 = vxor.u32 %v815, 2147483648
  %v817 = vmul.f32 %v816, 1.442695
  %v818 = vpow.pop %v817
  %v819 = vadd.f32 %v818, 1.0
  %v820 = vrcp.pop %v819
  %v821 = vmul.f32 %v819, %v820
  %v822 = vsub.f32 1.0, %v821
  %v823 = vmul.f32 %v820, %v822
  %v824 = vadd.f32 %v820, %v823
  %vm825 = vweird.f32 %v819
  %vm826 = vweird.f32 %v820
  %vm827 = vmor %vm825, %vm826
  %v828 = vsel %vm827, %v820, %v824
  %v829 = vand.u32 2147483647, %v819
  %vm830 = vcmp.eq.f32.partialorder %v829, 8.507059e+37
  %v831 = vand.u32 %v819, 2147483648
  %v832 = vor.u32 1.1754944e-38, %v831
  %v833 = vsel %vm830, %v832, %v828
  %v834 = vmul.f32 1.0, %v833
  %v835 = vtanh.pop %v815
  %v836 = vmul.f32 %v834, %v657
  %838 = vrot.lane.b32.xlu0 %v835, 64
  %v839 = vpop.permute.xlu0 %838
  %v841 = vmul.f32 %v834, %v839
  %843 = vrot.lane.b32.xlu0 %v841, 32
  %v844 = vpop.permute.xlu0 %843
  %v846 = vadd.f32 %v836, %v844
  %v847 = vtanh.pop %v846
  %849 = vrot.lane.b32.xlu0 %v847, 64
  %v850 = vpop.permute.xlu0 %849
  %v852 = vmul.f32 %v834, %v850
  %v853 = vld [vmem:[#allocation3 + $0x28] sm:$0xff]
  %v854 = vpack.c.bf16 %v722, %v722
  %856 = vrot.lane.b32.xlu0 %v854, 32
  %v857 = vpop.permute.xlu0 %856
  %v859 = vsel %vm407, %v857, 0
  %861 = vmatpush.bf16.msra.mxu0 0
  %862 = vmatpush.bf16.msra.mxu0 0
  %863 = vmatpush.bf16.msra.mxu0 0
  %864 = vmatpush.bf16.msra.mxu0 0
  %865 = vmatpush.bf16.msra.mxu0 0
  %866 = vmatpush.bf16.msra.mxu0 0
  %867 = vmatpush.bf16.msra.mxu0 %v472
  %868 = vmatpush.bf16.msra.mxu0 %v471
  %869 = vmatmul.bf16.gmra.mxu0 %v859
  %v870 = vpop.f32.mrf.mxu0
  %v871 = vadd.f32 0.0, %v870
  %v872 = vpop.f32.mrf.mxu0
  %873 = vdwg.mxu0
  %v874 = vadd.f32 %v853, %v871
  %v875 = vxor.u32 %v874, 2147483648
  %v876 = vmul.f32 %v875, 1.442695
  %v877 = vpow.pop %v876
  %v878 = vadd.f32 %v877, 1.0
  %v879 = vrcp.pop %v878
  %v880 = vmul.f32 %v878, %v879
  %v881 = vsub.f32 1.0, %v880
  %v882 = vmul.f32 %v879, %v881
  %v883 = vadd.f32 %v879, %v882
  %vm884 = vweird.f32 %v878
  %vm885 = vweird.f32 %v879
  %vm886 = vmor %vm884, %vm885
  %v887 = vsel %vm886, %v879, %v883
  %v888 = vand.u32 2147483647, %v878
  %vm889 = vcmp.eq.f32.partialorder %v888, 8.507059e+37
  %v890 = vand.u32 %v878, 2147483648
  %v891 = vor.u32 1.1754944e-38, %v890
  %v892 = vsel %vm889, %v891, %v887
  %v893 = vmul.f32 1.0, %v892
  %v894 = vtanh.pop %v874
  %v895 = vmul.f32 %v893, %v716
  %897 = vrot.lane.b32.xlu0 %v894, 64
  %v898 = vpop.permute.xlu0 %897
  %v900 = vmul.f32 %v893, %v898
  %902 = vrot.lane.b32.xlu0 %v900, 32
  %v903 = vpop.permute.xlu0 %902
  %v905 = vadd.f32 %v895, %v903
  %v906 = vtanh.pop %v905
  %908 = vrot.lane.b32.xlu0 %v906, 64
  %v909 = vpop.permute.xlu0 %908
  %v911 = vmul.f32 %v893, %v909
  %913 = vrot.lane.b32.xlu0 %v852, 32
  %v914 = vpop.permute.xlu0 %913
  %916 = vst.msk [vmem:[#allocation4 + $0x10] sm:$0xff] %vm407, %v914
  %918 = vrot.lane.b32.xlu0 %v911, 32
  %v919 = vpop.permute.xlu0 %918
  %921 = vst.msk [vmem:[#allocation5 + $0x28] sm:$0xff] %vm407, %v919
  %v922 = vperm.slane %v380, 2
  %v923 = vsub.f32 %v922, %v380
  %v924 = vadd.f32 %v923, %v539
  %v925 = vpack.c.bf16 %v793, %v793
  %927 = vrot.lane.b32.xlu0 %v925, 32
  %v928 = vpop.permute.xlu0 %927
  %v930 = vsel %vm407, %v928, 0
  %932 = vmatpush.bf16.msra.mxu0 0
  %933 = vmatpush.bf16.msra.mxu0 0
  %934 = vmatpush.bf16.msra.mxu0 0
  %935 = vmatpush.bf16.msra.mxu0 0
  %936 = vmatpush.bf16.msra.mxu0 0
  %937 = vmatpush.bf16.msra.mxu0 0
  %938 = vmatpush.bf16.msra.mxu0 %v551
  %939 = vmatpush.bf16.msra.mxu0 %v550
  %940 = vmatmul.bf16.gmra.mxu0 %v930
  %v941 = vpop.f32.mrf.mxu0
  %v942 = vadd.f32 0.0, %v941
  %v943 = vpop.f32.mrf.mxu0
  %944 = vdwg.mxu0
  %v945 = vadd.f32 %v924, %v942
  %v946 = vxor.u32 %v945, 2147483648
  %v947 = vmul.f32 %v946, 1.442695
  %v948 = vpow.pop %v947
  %v949 = vadd.f32 %v948, 1.0
  %v950 = vrcp.pop %v949
  %v951 = vmul.f32 %v949, %v950
  %v952 = vsub.f32 1.0, %v951
  %v953 = vmul.f32 %v950, %v952
  %v954 = vadd.f32 %v950, %v953
  %vm955 = vweird.f32 %v949
  %vm956 = vweird.f32 %v950
  %vm957 = vmor %vm955, %vm956
  %v958 = vsel %vm957, %v950, %v954
  %v959 = vand.u32 2147483647, %v949
  %vm960 = vcmp.eq.f32.partialorder %v959, 8.507059e+37
  %v961 = vand.u32 %v949, 2147483648
  %v962 = vor.u32 1.1754944e-38, %v961
  %v963 = vsel %vm960, %v962, %v958
  %v964 = vmul.f32 1.0, %v963
  %v965 = vtanh.pop %v945
  %v966 = vmul.f32 %v964, %v787
  %968 = vrot.lane.b32.xlu0 %v965, 64
  %v969 = vpop.permute.xlu0 %968
  %v971 = vmul.f32 %v964, %v969
  %973 = vrot.lane.b32.xlu0 %v971, 32
  %v974 = vpop.permute.xlu0 %973
  %v976 = vadd.f32 %v966, %v974
  %v977 = vtanh.pop %v976
  %979 = vrot.lane.b32.xlu0 %v977, 64
  %v980 = vpop.permute.xlu0 %979
  %v982 = vmul.f32 %v964, %v980
  %v983 = vld [vmem:[#allocation2 + $0x18] sm:$0xff]
  %v984 = vpack.c.bf16 %v852, %v852
  %986 = vrot.lane.b32.xlu0 %v984, 32
  %v987 = vpop.permute.xlu0 %986
  %v989 = vsel %vm407, %v987, 0
  %991 = vmatpush.bf16.msra.mxu0 0
  %992 = vmatpush.bf16.msra.mxu0 0
  %993 = vmatpush.bf16.msra.mxu0 0
  %994 = vmatpush.bf16.msra.mxu0 0
  %995 = vmatpush.bf16.msra.mxu0 0
  %996 = vmatpush.bf16.msra.mxu0 0
  %997 = vmatpush.bf16.msra.mxu0 %v404
  %998 = vmatpush.bf16.msra.mxu0 %v403
  %999 = vmatmul.bf16.gmra.mxu0 %v989
  %v1000 = vpop.f32.mrf.mxu0
  %v1001 = vadd.f32 0.0, %v1000
  %v1002 = vpop.f32.mrf.mxu0
  %1003 = vdwg.mxu0
  %v1004 = vadd.f32 %v983, %v1001
  %v1005 = vxor.u32 %v1004, 2147483648
  %v1006 = vmul.f32 %v1005, 1.442695
  %v1007 = vpow.pop %v1006
  %v1008 = vadd.f32 %v1007, 1.0
  %v1009 = vrcp.pop %v1008
  %v1010 = vmul.f32 %v1008, %v1009
  %v1011 = vsub.f32 1.0, %v1010
  %v1012 = vmul.f32 %v1009, %v1011
  %v1013 = vadd.f32 %v1009, %v1012
  %vm1014 = vweird.f32 %v1008
  %vm1015 = vweird.f32 %v1009
  %vm1016 = vmor %vm1014, %vm1015
  %v1017 = vsel %vm1016, %v1009, %v1013
  %v1018 = vand.u32 2147483647, %v1008
  %vm1019 = vcmp.eq.f32.partialorder %v1018, 8.507059e+37
  %v1020 = vand.u32 %v1008, 2147483648
  %v1021 = vor.u32 1.1754944e-38, %v1020
  %v1022 = vsel %vm1019, %v1021, %v1017
  %v1023 = vmul.f32 1.0, %v1022
  %v1024 = vtanh.pop %v1004
  %v1025 = vmul.f32 %v1023, %v846
  %1027 = vrot.lane.b32.xlu0 %v1024, 64
  %v1028 = vpop.permute.xlu0 %1027
  %v1030 = vmul.f32 %v1023, %v1028
  %1032 = vrot.lane.b32.xlu0 %v1030, 32
  %v1033 = vpop.permute.xlu0 %1032
  %v1035 = vadd.f32 %v1025, %v1033
  %v1036 = vtanh.pop %v1035
  %1038 = vrot.lane.b32.xlu0 %v1036, 64
  %v1039 = vpop.permute.xlu0 %1038
  %v1041 = vmul.f32 %v1023, %v1039
  %v1042 = vld [vmem:[#allocation3 + $0x20] sm:$0xff]
  %v1043 = vpack.c.bf16 %v911, %v911
  %1045 = vrot.lane.b32.xlu0 %v1043, 32
  %v1046 = vpop.permute.xlu0 %1045
  %v1048 = vsel %vm407, %v1046, 0
  %1050 = vmatpush.bf16.msra.mxu0 0
  %1051 = vmatpush.bf16.msra.mxu0 0
  %1052 = vmatpush.bf16.msra.mxu0 0
  %1053 = vmatpush.bf16.msra.mxu0 0
  %1054 = vmatpush.bf16.msra.mxu0 0
  %1055 = vmatpush.bf16.msra.mxu0 0
  %1056 = vmatpush.bf16.msra.mxu0 %v472
  %1057 = vmatpush.bf16.msra.mxu0 %v471
  %1058 = vmatmul.bf16.gmra.mxu0 %v1048
  %v1059 = vpop.f32.mrf.mxu0
  %v1060 = vadd.f32 0.0, %v1059
  %v1061 = vpop.f32.mrf.mxu0
  %1062 = vdwg.mxu0
  %v1063 = vadd.f32 %v1042, %v1060
  %v1064 = vxor.u32 %v1063, 2147483648
  %v1065 = vmul.f32 %v1064, 1.442695
  %v1066 = vpow.pop %v1065
  %v1067 = vadd.f32 %v1066, 1.0
  %v1068 = vrcp.pop %v1067
  %v1069 = vmul.f32 %v1067, %v1068
  %v1070 = vsub.f32 1.0, %v1069
  %v1071 = vmul.f32 %v1068, %v1070
  %v1072 = vadd.f32 %v1068, %v1071
  %vm1073 = vweird.f32 %v1067
  %vm1074 = vweird.f32 %v1068
  %vm1075 = vmor %vm1073, %vm1074
  %v1076 = vsel %vm1075, %v1068, %v1072
  %v1077 = vand.u32 2147483647, %v1067
  %vm1078 = vcmp.eq.f32.partialorder %v1077, 8.507059e+37
  %v1079 = vand.u32 %v1067, 2147483648
  %v1080 = vor.u32 1.1754944e-38, %v1079
  %v1081 = vsel %vm1078, %v1080, %v1076
  %v1082 = vmul.f32 1.0, %v1081
  %v1083 = vtanh.pop %v1063
  %v1084 = vmul.f32 %v1082, %v905
  %1086 = vrot.lane.b32.xlu0 %v1083, 64
  %v1087 = vpop.permute.xlu0 %1086
  %v1089 = vmul.f32 %v1082, %v1087
  %1091 = vrot.lane.b32.xlu0 %v1089, 32
  %v1092 = vpop.permute.xlu0 %1091
  %v1094 = vadd.f32 %v1084, %v1092
  %v1095 = vtanh.pop %v1094
  %1097 = vrot.lane.b32.xlu0 %v1095, 64
  %v1098 = vpop.permute.xlu0 %1097
  %v1100 = vmul.f32 %v1082, %v1098
  %1102 = vrot.lane.b32.xlu0 %v1041, 32
  %v1103 = vpop.permute.xlu0 %1102
  %1105 = vst.msk [vmem:[#allocation4 + $0x18] sm:$0xff] %vm407, %v1103
  %1107 = vrot.lane.b32.xlu0 %v1100, 32
  %v1108 = vpop.permute.xlu0 %1107
  %1110 = vst.msk [vmem:[#allocation5 + $0x20] sm:$0xff] %vm407, %v1108
  %v1111 = vperm.slane %v380, 3
  %v1112 = vsub.f32 %v1111, %v380
  %v1113 = vadd.f32 %v1112, %v539
  %v1114 = vpack.c.bf16 %v982, %v982
  %1116 = vrot.lane.b32.xlu0 %v1114, 32
  %v1117 = vpop.permute.xlu0 %1116
  %v1119 = vsel %vm407, %v1117, 0
  %1121 = vmatpush.bf16.msra.mxu0 0
  %1122 = vmatpush.bf16.msra.mxu0 0
  %1123 = vmatpush.bf16.msra.mxu0 0
  %1124 = vmatpush.bf16.msra.mxu0 0
  %1125 = vmatpush.bf16.msra.mxu0 0
  %1126 = vmatpush.bf16.msra.mxu0 0
  %1127 = vmatpush.bf16.msra.mxu0 %v551
  %1128 = vmatpush.bf16.msra.mxu0 %v550
  %1129 = vmatmul.bf16.gmra.mxu0 %v1119
  %v1130 = vpop.f32.mrf.mxu0
  %v1131 = vadd.f32 0.0, %v1130
  %v1132 = vpop.f32.mrf.mxu0
  %1133 = vdwg.mxu0
  %v1134 = vadd.f32 %v1113, %v1131
  %v1135 = vxor.u32 %v1134, 2147483648
  %v1136 = vmul.f32 %v1135, 1.442695
  %v1137 = vpow.pop %v1136
  %v1138 = vadd.f32 %v1137, 1.0
  %v1139 = vrcp.pop %v1138
  %v1140 = vmul.f32 %v1138, %v1139
  %v1141 = vsub.f32 1.0, %v1140
  %v1142 = vmul.f32 %v1139, %v1141
  %v1143 = vadd.f32 %v1139, %v1142
  %vm1144 = vweird.f32 %v1138
  %vm1145 = vweird.f32 %v1139
  %vm1146 = vmor %vm1144, %vm1145
  %v1147 = vsel %vm1146, %v1139, %v1143
  %v1148 = vand.u32 2147483647, %v1138
  %vm1149 = vcmp.eq.f32.partialorder %v1148, 8.507059e+37
  %v1150 = vand.u32 %v1138, 2147483648
  %v1151 = vor.u32 1.1754944e-38, %v1150
  %v1152 = vsel %vm1149, %v1151, %v1147
  %v1153 = vmul.f32 1.0, %v1152
  %v1154 = vtanh.pop %v1134
  %v1155 = vmul.f32 %v1153, %v976
  %1157 = vrot.lane.b32.xlu0 %v1154, 64
  %v1158 = vpop.permute.xlu0 %1157
  %v1160 = vmul.f32 %v1153, %v1158
  %1162 = vrot.lane.b32.xlu0 %v1160, 32
  %v1163 = vpop.permute.xlu0 %1162
  %v1165 = vadd.f32 %v1155, %v1163
  %v1166 = vtanh.pop %v1165
  %1168 = vrot.lane.b32.xlu0 %v1166, 64
  %v1169 = vpop.permute.xlu0 %1168
  %v1171 = vmul.f32 %v1153, %v1169
  %v1172 = vld [vmem:[#allocation2 + $0x20] sm:$0xff]
  %v1173 = vpack.c.bf16 %v1041, %v1041
  %1175 = vrot.lane.b32.xlu0 %v1173, 32
  %v1176 = vpop.permute.xlu0 %1175
  %v1178 = vsel %vm407, %v1176, 0
  %1180 = vmatpush.bf16.msra.mxu0 0
  %1181 = vmatpush.bf16.msra.mxu0 0
  %1182 = vmatpush.bf16.msra.mxu0 0
  %1183 = vmatpush.bf16.msra.mxu0 0
  %1184 = vmatpush.bf16.msra.mxu0 0
  %1185 = vmatpush.bf16.msra.mxu0 0
  %1186 = vmatpush.bf16.msra.mxu0 %v404
  %1187 = vmatpush.bf16.msra.mxu0 %v403
  %1188 = vmatmul.bf16.gmra.mxu0 %v1178
  %v1189 = vpop.f32.mrf.mxu0
  %v1190 = vadd.f32 0.0, %v1189
  %v1191 = vpop.f32.mrf.mxu0
  %1192 = vdwg.mxu0
  %v1193 = vadd.f32 %v1172, %v1190
  %v1194 = vxor.u32 %v1193, 2147483648
  %v1195 = vmul.f32 %v1194, 1.442695
  %v1196 = vpow.pop %v1195
  %v1197 = vadd.f32 %v1196, 1.0
  %v1198 = vrcp.pop %v1197
  %v1199 = vmul.f32 %v1197, %v1198
  %v1200 = vsub.f32 1.0, %v1199
  %v1201 = vmul.f32 %v1198, %v1200
  %v1202 = vadd.f32 %v1198, %v1201
  %vm1203 = vweird.f32 %v1197
  %vm1204 = vweird.f32 %v1198
  %vm1205 = vmor %vm1203, %vm1204
  %v1206 = vsel %vm1205, %v1198, %v1202
  %v1207 = vand.u32 2147483647, %v1197
  %vm1208 = vcmp.eq.f32.partialorder %v1207, 8.507059e+37
  %v1209 = vand.u32 %v1197, 2147483648
  %v1210 = vor.u32 1.1754944e-38, %v1209
  %v1211 = vsel %vm1208, %v1210, %v1206
  %v1212 = vmul.f32 1.0, %v1211
  %v1213 = vtanh.pop %v1193
  %v1214 = vmul.f32 %v1212, %v1035
  %1216 = vrot.lane.b32.xlu0 %v1213, 64
  %v1217 = vpop.permute.xlu0 %1216
  %v1219 = vmul.f32 %v1212, %v1217
  %1221 = vrot.lane.b32.xlu0 %v1219, 32
  %v1222 = vpop.permute.xlu0 %1221
  %v1224 = vadd.f32 %v1214, %v1222
  %v1225 = vtanh.pop %v1224
  %1227 = vrot.lane.b32.xlu0 %v1225, 64
  %v1228 = vpop.permute.xlu0 %1227
  %v1230 = vmul.f32 %v1212, %v1228
  %v1231 = vld [vmem:[#allocation3 + $0x18] sm:$0xff]
  %v1232 = vpack.c.bf16 %v1100, %v1100
  %1234 = vrot.lane.b32.xlu0 %v1232, 32
  %v1235 = vpop.permute.xlu0 %1234
  %v1237 = vsel %vm407, %v1235, 0
  %1239 = vmatpush.bf16.msra.mxu0 0
  %1240 = vmatpush.bf16.msra.mxu0 0
  %1241 = vmatpush.bf16.msra.mxu0 0
  %1242 = vmatpush.bf16.msra.mxu0 0
  %1243 = vmatpush.bf16.msra.mxu0 0
  %1244 = vmatpush.bf16.msra.mxu0 0
  %1245 = vmatpush.bf16.msra.mxu0 %v472
  %1246 = vmatpush.bf16.msra.mxu0 %v471
  %1247 = vmatmul.bf16.gmra.mxu0 %v1237
  %v1248 = vpop.f32.mrf.mxu0
  %v1249 = vadd.f32 0.0, %v1248
  %v1250 = vpop.f32.mrf.mxu0
  %1251 = vdwg.mxu0
  %v1252 = vadd.f32 %v1231, %v1249
  %v1253 = vxor.u32 %v1252, 2147483648
  %v1254 = vmul.f32 %v1253, 1.442695
  %v1255 = vpow.pop %v1254
  %v1256 = vadd.f32 %v1255, 1.0
  %v1257 = vrcp.pop %v1256
  %v1258 = vmul.f32 %v1256, %v1257
  %v1259 = vsub.f32 1.0, %v1258
  %v1260 = vmul.f32 %v1257, %v1259
  %v1261 = vadd.f32 %v1257, %v1260
  %vm1262 = vweird.f32 %v1256
  %vm1263 = vweird.f32 %v1257
  %vm1264 = vmor %vm1262, %vm1263
  %v1265 = vsel %vm1264, %v1257, %v1261
  %v1266 = vand.u32 2147483647, %v1256
  %vm1267 = vcmp.eq.f32.partialorder %v1266, 8.507059e+37
  %v1268 = vand.u32 %v1256, 2147483648
  %v1269 = vor.u32 1.1754944e-38, %v1268
  %v1270 = vsel %vm1267, %v1269, %v1265
  %v1271 = vmul.f32 1.0, %v1270
  %v1272 = vtanh.pop %v1252
  %v1273 = vmul.f32 %v1271, %v1094
  %1275 = vrot.lane.b32.xlu0 %v1272, 64
  %v1276 = vpop.permute.xlu0 %1275
  %v1278 = vmul.f32 %v1271, %v1276
  %1280 = vrot.lane.b32.xlu0 %v1278, 32
  %v1281 = vpop.permute.xlu0 %1280
  %v1283 = vadd.f32 %v1273, %v1281
  %v1284 = vtanh.pop %v1283
  %1286 = vrot.lane.b32.xlu0 %v1284, 64
  %v1287 = vpop.permute.xlu0 %1286
  %v1289 = vmul.f32 %v1271, %v1287
  %1291 = vrot.lane.b32.xlu0 %v1230, 32
  %v1292 = vpop.permute.xlu0 %1291
  %1294 = vst.msk [vmem:[#allocation4 + $0x20] sm:$0xff] %vm407, %v1292
  %1296 = vrot.lane.b32.xlu0 %v1289, 32
  %v1297 = vpop.permute.xlu0 %1296
  %1299 = vst.msk [vmem:[#allocation5 + $0x18] sm:$0xff] %vm407, %v1297
  %v1300 = vperm.slane %v380, 4
  %v1301 = vsub.f32 %v1300, %v380
  %v1302 = vadd.f32 %v1301, %v539
  %v1303 = vpack.c.bf16 %v1171, %v1171
  %1305 = vrot.lane.b32.xlu0 %v1303, 32
  %v1306 = vpop.permute.xlu0 %1305
  %v1308 = vsel %vm407, %v1306, 0
  %1310 = vmatpush.bf16.msra.mxu0 0
  %1311 = vmatpush.bf16.msra.mxu0 0
  %1312 = vmatpush.bf16.msra.mxu0 0
  %1313 = vmatpush.bf16.msra.mxu0 0
  %1314 = vmatpush.bf16.msra.mxu0 0
  %1315 = vmatpush.bf16.msra.mxu0 0
  %1316 = vmatpush.bf16.msra.mxu0 %v551
  %1317 = vmatpush.bf16.msra.mxu0 %v550
  %1318 = vmatmul.bf16.gmra.mxu0 %v1308
  %v1319 = vpop.f32.mrf.mxu0
  %v1320 = vadd.f32 0.0, %v1319
  %v1321 = vpop.f32.mrf.mxu0
  %1322 = vdwg.mxu0
  %v1323 = vadd.f32 %v1302, %v1320
  %v1324 = vxor.u32 %v1323, 2147483648
  %v1325 = vmul.f32 %v1324, 1.442695
  %v1326 = vpow.pop %v1325
  %v1327 = vadd.f32 %v1326, 1.0
  %v1328 = vrcp.pop %v1327
  %v1329 = vmul.f32 %v1327, %v1328
  %v1330 = vsub.f32 1.0, %v1329
  %v1331 = vmul.f32 %v1328, %v1330
  %v1332 = vadd.f32 %v1328, %v1331
  %vm1333 = vweird.f32 %v1327
  %vm1334 = vweird.f32 %v1328
  %vm1335 = vmor %vm1333, %vm1334
  %v1336 = vsel %vm1335, %v1328, %v1332
  %v1337 = vand.u32 2147483647, %v1327
  %vm1338 = vcmp.eq.f32.partialorder %v1337, 8.507059e+37
  %v1339 = vand.u32 %v1327, 2147483648
  %v1340 = vor.u32 1.1754944e-38, %v1339
  %v1341 = vsel %vm1338, %v1340, %v1336
  %v1342 = vmul.f32 1.0, %v1341
  %v1343 = vtanh.pop %v1323
  %v1344 = vmul.f32 %v1342, %v1165
  %1346 = vrot.lane.b32.xlu0 %v1343, 64
  %v1347 = vpop.permute.xlu0 %1346
  %v1349 = vmul.f32 %v1342, %v1347
  %1351 = vrot.lane.b32.xlu0 %v1349, 32
  %v1352 = vpop.permute.xlu0 %1351
  %v1354 = vadd.f32 %v1344, %v1352
  %v1355 = vtanh.pop %v1354
  %1357 = vrot.lane.b32.xlu0 %v1355, 64
  %v1358 = vpop.permute.xlu0 %1357
  %v1360 = vmul.f32 %v1342, %v1358
  %v1361 = vld [vmem:[#allocation2 + $0x28] sm:$0xff]
  %v1362 = vpack.c.bf16 %v1230, %v1230
  %1364 = vrot.lane.b32.xlu0 %v1362, 32
  %v1365 = vpop.permute.xlu0 %1364
  %v1367 = vsel %vm407, %v1365, 0
  %1369 = vmatpush.bf16.msra.mxu0 0
  %1370 = vmatpush.bf16.msra.mxu0 0
  %1371 = vmatpush.bf16.msra.mxu0 0
  %1372 = vmatpush.bf16.msra.mxu0 0
  %1373 = vmatpush.bf16.msra.mxu0 0
  %1374 = vmatpush.bf16.msra.mxu0 0
  %1375 = vmatpush.bf16.msra.mxu0 %v404
  %1376 = vmatpush.bf16.msra.mxu0 %v403
  %1377 = vmatmul.bf16.gmra.mxu0 %v1367
  %v1378 = vpop.f32.mrf.mxu0
  %v1379 = vadd.f32 0.0, %v1378
  %v1380 = vpop.f32.mrf.mxu0
  %1381 = vdwg.mxu0
  %v1382 = vadd.f32 %v1361, %v1379
  %v1383 = vxor.u32 %v1382, 2147483648
  %v1384 = vmul.f32 %v1383, 1.442695
  %v1385 = vpow.pop %v1384
  %v1386 = vadd.f32 %v1385, 1.0
  %v1387 = vrcp.pop %v1386
  %v1388 = vmul.f32 %v1386, %v1387
  %v1389 = vsub.f32 1.0, %v1388
  %v1390 = vmul.f32 %v1387, %v1389
  %v1391 = vadd.f32 %v1387, %v1390
  %vm1392 = vweird.f32 %v1386
  %vm1393 = vweird.f32 %v1387
  %vm1394 = vmor %vm1392, %vm1393
  %v1395 = vsel %vm1394, %v1387, %v1391
  %v1396 = vand.u32 2147483647, %v1386
  %vm1397 = vcmp.eq.f32.partialorder %v1396, 8.507059e+37
  %v1398 = vand.u32 %v1386, 2147483648
  %v1399 = vor.u32 1.1754944e-38, %v1398
  %v1400 = vsel %vm1397, %v1399, %v1395
  %v1401 = vmul.f32 1.0, %v1400
  %v1402 = vtanh.pop %v1382
  %v1403 = vmul.f32 %v1401, %v1224
  %1405 = vrot.lane.b32.xlu0 %v1402, 64
  %v1406 = vpop.permute.xlu0 %1405
  %v1408 = vmul.f32 %v1401, %v1406
  %1410 = vrot.lane.b32.xlu0 %v1408, 32
  %v1411 = vpop.permute.xlu0 %1410
  %v1413 = vadd.f32 %v1403, %v1411
  %v1414 = vtanh.pop %v1413
  %1416 = vrot.lane.b32.xlu0 %v1414, 64
  %v1417 = vpop.permute.xlu0 %1416
  %v1419 = vmul.f32 %v1401, %v1417
  %v1420 = vld [vmem:[#allocation3 + $0x10] sm:$0xff]
  %v1421 = vpack.c.bf16 %v1289, %v1289
  %1423 = vrot.lane.b32.xlu0 %v1421, 32
  %v1424 = vpop.permute.xlu0 %1423
  %v1426 = vsel %vm407, %v1424, 0
  %1428 = vmatpush.bf16.msra.mxu0 0
  %1429 = vmatpush.bf16.msra.mxu0 0
  %1430 = vmatpush.bf16.msra.mxu0 0
  %1431 = vmatpush.bf16.msra.mxu0 0
  %1432 = vmatpush.bf16.msra.mxu0 0
  %1433 = vmatpush.bf16.msra.mxu0 0
  %1434 = vmatpush.bf16.msra.mxu0 %v472
  %1435 = vmatpush.bf16.msra.mxu0 %v471
  %1436 = vmatmul.bf16.gmra.mxu0 %v1426
  %v1437 = vpop.f32.mrf.mxu0
  %v1438 = vadd.f32 0.0, %v1437
  %v1439 = vpop.f32.mrf.mxu0
  %1440 = vdwg.mxu0
  %v1441 = vadd.f32 %v1420, %v1438
  %v1442 = vxor.u32 %v1441, 2147483648
  %v1443 = vmul.f32 %v1442, 1.442695
  %v1444 = vpow.pop %v1443
  %v1445 = vadd.f32 %v1444, 1.0
  %v1446 = vrcp.pop %v1445
  %v1447 = vmul.f32 %v1445, %v1446
  %v1448 = vsub.f32 1.0, %v1447
  %v1449 = vmul.f32 %v1446, %v1448
  %v1450 = vadd.f32 %v1446, %v1449
  %vm1451 = vweird.f32 %v1445
  %vm1452 = vweird.f32 %v1446
  %vm1453 = vmor %vm1451, %vm1452
  %v1454 = vsel %vm1453, %v1446, %v1450
  %v1455 = vand.u32 2147483647, %v1445
  %vm1456 = vcmp.eq.f32.partialorder %v1455, 8.507059e+37
  %v1457 = vand.u32 %v1445, 2147483648
  %v1458 = vor.u32 1.1754944e-38, %v1457
  %v1459 = vsel %vm1456, %v1458, %v1454
  %v1460 = vmul.f32 1.0, %v1459
  %v1461 = vtanh.pop %v1441
  %v1462 = vmul.f32 %v1460, %v1283
  %1464 = vrot.lane.b32.xlu0 %v1461, 64
  %v1465 = vpop.permute.xlu0 %1464
  %v1467 = vmul.f32 %v1460, %v1465
  %1469 = vrot.lane.b32.xlu0 %v1467, 32
  %v1470 = vpop.permute.xlu0 %1469
  %v1472 = vadd.f32 %v1462, %v1470
  %v1473 = vtanh.pop %v1472
  %1475 = vrot.lane.b32.xlu0 %v1473, 64
  %v1476 = vpop.permute.xlu0 %1475
  %v1478 = vmul.f32 %v1460, %v1476
  %1480 = vrot.lane.b32.xlu0 %v1419, 32
  %v1481 = vpop.permute.xlu0 %1480
  %1483 = vst.msk [vmem:[#allocation4 + $0x28] sm:$0xff] %vm407, %v1481
  %1485 = vrot.lane.b32.xlu0 %v1478, 32
  %v1486 = vpop.permute.xlu0 %1485
  %1488 = vst.msk [vmem:[#allocation5 + $0x10] sm:$0xff] %vm407, %v1486
  %v1489 = vperm.slane %v380, 5
  %v1490 = vsub.f32 %v1489, %v380
  %v1491 = vadd.f32 %v1490, %v539
  %v1492 = vpack.c.bf16 %v1360, %v1360
  %1494 = vrot.lane.b32.xlu0 %v1492, 32
  %v1495 = vpop.permute.xlu0 %1494
  %v1497 = vsel %vm407, %v1495, 0
  %1499 = vmatpush.bf16.msra.mxu0 0
  %1500 = vmatpush.bf16.msra.mxu0 0
  %1501 = vmatpush.bf16.msra.mxu0 0
  %1502 = vmatpush.bf16.msra.mxu0 0
  %1503 = vmatpush.bf16.msra.mxu0 0
  %1504 = vmatpush.bf16.msra.mxu0 0
  %1505 = vmatpush.bf16.msra.mxu0 %v551
  %1506 = vmatpush.bf16.msra.mxu0 %v550
  %1507 = vmatmul.bf16.gmra.mxu0 %v1497
  %v1508 = vpop.f32.mrf.mxu0
  %v1509 = vadd.f32 0.0, %v1508
  %v1510 = vpop.f32.mrf.mxu0
  %1511 = vdwg.mxu0
  %v1512 = vadd.f32 %v1491, %v1509
  %v1513 = vxor.u32 %v1512, 2147483648
  %v1514 = vmul.f32 %v1513, 1.442695
  %v1515 = vpow.pop %v1514
  %v1516 = vadd.f32 %v1515, 1.0
  %v1517 = vrcp.pop %v1516
  %v1518 = vmul.f32 %v1516, %v1517
  %v1519 = vsub.f32 1.0, %v1518
  %v1520 = vmul.f32 %v1517, %v1519
  %v1521 = vadd.f32 %v1517, %v1520
  %vm1522 = vweird.f32 %v1516
  %vm1523 = vweird.f32 %v1517
  %vm1524 = vmor %vm1522, %vm1523
  %v1525 = vsel %vm1524, %v1517, %v1521
  %v1526 = vand.u32 2147483647, %v1516
  %vm1527 = vcmp.eq.f32.partialorder %v1526, 8.507059e+37
  %v1528 = vand.u32 %v1516, 2147483648
  %v1529 = vor.u32 1.1754944e-38, %v1528
  %v1530 = vsel %vm1527, %v1529, %v1525
  %v1531 = vmul.f32 1.0, %v1530
  %v1532 = vtanh.pop %v1512
  %v1533 = vmul.f32 %v1531, %v1354
  %1535 = vrot.lane.b32.xlu0 %v1532, 64
  %v1536 = vpop.permute.xlu0 %1535
  %v1538 = vmul.f32 %v1531, %v1536
  %1540 = vrot.lane.b32.xlu0 %v1538, 32
  %v1541 = vpop.permute.xlu0 %1540
  %v1543 = vadd.f32 %v1533, %v1541
  %v1544 = vtanh.pop %v1543
  %1546 = vrot.lane.b32.xlu0 %v1544, 64
  %v1547 = vpop.permute.xlu0 %1546
  %v1549 = vmul.f32 %v1531, %v1547
  %v1550 = vld [vmem:[#allocation2 + $0x30] sm:$0xff]
  %v1551 = vpack.c.bf16 %v1419, %v1419
  %1553 = vrot.lane.b32.xlu0 %v1551, 32
  %v1554 = vpop.permute.xlu0 %1553
  %v1556 = vsel %vm407, %v1554, 0
  %1558 = vmatpush.bf16.msra.mxu0 0
  %1559 = vmatpush.bf16.msra.mxu0 0
  %1560 = vmatpush.bf16.msra.mxu0 0
  %1561 = vmatpush.bf16.msra.mxu0 0
  %1562 = vmatpush.bf16.msra.mxu0 0
  %1563 = vmatpush.bf16.msra.mxu0 0
  %1564 = vmatpush.bf16.msra.mxu0 %v404
  %1565 = vmatpush.bf16.msra.mxu0 %v403
  %1566 = vmatmul.bf16.gmra.mxu0 %v1556
  %v1567 = vpop.f32.mrf.mxu0
  %v1568 = vadd.f32 0.0, %v1567
  %v1569 = vpop.f32.mrf.mxu0
  %1570 = vdwg.mxu0
  %v1571 = vadd.f32 %v1550, %v1568
  %v1572 = vxor.u32 %v1571, 2147483648
  %v1573 = vmul.f32 %v1572, 1.442695
  %v1574 = vpow.pop %v1573
  %v1575 = vadd.f32 %v1574, 1.0
  %v1576 = vrcp.pop %v1575
  %v1577 = vmul.f32 %v1575, %v1576
  %v1578 = vsub.f32 1.0, %v1577
  %v1579 = vmul.f32 %v1576, %v1578
  %v1580 = vadd.f32 %v1576, %v1579
  %vm1581 = vweird.f32 %v1575
  %vm1582 = vweird.f32 %v1576
  %vm1583 = vmor %vm1581, %vm1582
  %v1584 = vsel %vm1583, %v1576, %v1580
  %v1585 = vand.u32 2147483647, %v1575
  %vm1586 = vcmp.eq.f32.partialorder %v1585, 8.507059e+37
  %v1587 = vand.u32 %v1575, 2147483648
  %v1588 = vor.u32 1.1754944e-38, %v1587
  %v1589 = vsel %vm1586, %v1588, %v1584
  %v1590 = vmul.f32 1.0, %v1589
  %v1591 = vtanh.pop %v1571
  %v1592 = vmul.f32 %v1590, %v1413
  %1594 = vrot.lane.b32.xlu0 %v1591, 64
  %v1595 = vpop.permute.xlu0 %1594
  %v1597 = vmul.f32 %v1590, %v1595
  %1599 = vrot.lane.b32.xlu0 %v1597, 32
  %v1600 = vpop.permute.xlu0 %1599
  %v1602 = vadd.f32 %v1592, %v1600
  %v1603 = vtanh.pop %v1602
  %1605 = vrot.lane.b32.xlu0 %v1603, 64
  %v1606 = vpop.permute.xlu0 %1605
  %v1608 = vmul.f32 %v1590, %v1606
  %v1609 = vld [vmem:[#allocation3 + $0x8] sm:$0xff]
  %v1610 = vpack.c.bf16 %v1478, %v1478
  %1612 = vrot.lane.b32.xlu0 %v1610, 32
  %v1613 = vpop.permute.xlu0 %1612
  %v1615 = vsel %vm407, %v1613, 0
  %1617 = vmatpush.bf16.msra.mxu0 0
  %1618 = vmatpush.bf16.msra.mxu0 0
  %1619 = vmatpush.bf16.msra.mxu0 0
  %1620 = vmatpush.bf16.msra.mxu0 0
  %1621 = vmatpush.bf16.msra.mxu0 0
  %1622 = vmatpush.bf16.msra.mxu0 0
  %1623 = vmatpush.bf16.msra.mxu0 %v472
  %1624 = vmatpush.bf16.msra.mxu0 %v471
  %1625 = vmatmul.bf16.gmra.mxu0 %v1615
  %v1626 = vpop.f32.mrf.mxu0
  %v1627 = vadd.f32 0.0, %v1626
  %v1628 = vpop.f32.mrf.mxu0
  %1629 = vdwg.mxu0
  %v1630 = vadd.f32 %v1609, %v1627
  %v1631 = vxor.u32 %v1630, 2147483648
  %v1632 = vmul.f32 %v1631, 1.442695
  %v1633 = vpow.pop %v1632
  %v1634 = vadd.f32 %v1633, 1.0
  %v1635 = vrcp.pop %v1634
  %v1636 = vmul.f32 %v1634, %v1635
  %v1637 = vsub.f32 1.0, %v1636
  %v1638 = vmul.f32 %v1635, %v1637
  %v1639 = vadd.f32 %v1635, %v1638
  %vm1640 = vweird.f32 %v1634
  %vm1641 = vweird.f32 %v1635
  %vm1642 = vmor %vm1640, %vm1641
  %v1643 = vsel %vm1642, %v1635, %v1639
  %v1644 = vand.u32 2147483647, %v1634
  %vm1645 = vcmp.eq.f32.partialorder %v1644, 8.507059e+37
  %v1646 = vand.u32 %v1634, 2147483648
  %v1647 = vor.u32 1.1754944e-38, %v1646
  %v1648 = vsel %vm1645, %v1647, %v1643
  %v1649 = vmul.f32 1.0, %v1648
  %v1650 = vtanh.pop %v1630
  %v1651 = vmul.f32 %v1649, %v1472
  %1653 = vrot.lane.b32.xlu0 %v1650, 64
  %v1654 = vpop.permute.xlu0 %1653
  %v1656 = vmul.f32 %v1649, %v1654
  %1658 = vrot.lane.b32.xlu0 %v1656, 32
  %v1659 = vpop.permute.xlu0 %1658
  %v1661 = vadd.f32 %v1651, %v1659
  %v1662 = vtanh.pop %v1661
  %1664 = vrot.lane.b32.xlu0 %v1662, 64
  %v1665 = vpop.permute.xlu0 %1664
  %v1667 = vmul.f32 %v1649, %v1665
  %1669 = vrot.lane.b32.xlu0 %v1608, 32
  %v1670 = vpop.permute.xlu0 %1669
  %1672 = vst.msk [vmem:[#allocation4 + $0x30] sm:$0xff] %vm407, %v1670
  %1674 = vrot.lane.b32.xlu0 %v1667, 32
  %v1675 = vpop.permute.xlu0 %1674
  %1677 = vst.msk [vmem:[#allocation5 + $0x8] sm:$0xff] %vm407, %v1675
  %v1678 = vperm.slane %v380, 6
  %v1679 = vsub.f32 %v1678, %v380
  %v1680 = vadd.f32 %v1679, %v539
  %v1681 = vpack.c.bf16 %v1549, %v1549
  %1683 = vrot.lane.b32.xlu0 %v1681, 32
  %v1684 = vpop.permute.xlu0 %1683
  %v1686 = vsel %vm407, %v1684, 0
  %1688 = vmatpush.bf16.msra.mxu0 0
  %1689 = vmatpush.bf16.msra.mxu0 0
  %1690 = vmatpush.bf16.msra.mxu0 0
  %1691 = vmatpush.bf16.msra.mxu0 0
  %1692 = vmatpush.bf16.msra.mxu0 0
  %1693 = vmatpush.bf16.msra.mxu0 0
  %1694 = vmatpush.bf16.msra.mxu0 %v551
  %1695 = vmatpush.bf16.msra.mxu0 %v550
  %1696 = vmatmul.bf16.gmra.mxu0 %v1686
  %v1697 = vpop.f32.mrf.mxu0
  %v1698 = vadd.f32 0.0, %v1697
  %v1699 = vpop.f32.mrf.mxu0
  %1700 = vdwg.mxu0
  %v1701 = vadd.f32 %v1680, %v1698
  %v1702 = vxor.u32 %v1701, 2147483648
  %v1703 = vmul.f32 %v1702, 1.442695
  %v1704 = vpow.pop %v1703
  %v1705 = vadd.f32 %v1704, 1.0
  %v1706 = vrcp.pop %v1705
  %v1707 = vmul.f32 %v1705, %v1706
  %v1708 = vsub.f32 1.0, %v1707
  %v1709 = vmul.f32 %v1706, %v1708
  %v1710 = vadd.f32 %v1706, %v1709
  %vm1711 = vweird.f32 %v1705
  %vm1712 = vweird.f32 %v1706
  %vm1713 = vmor %vm1711, %vm1712
  %v1714 = vsel %vm1713, %v1706, %v1710
  %v1715 = vand.u32 2147483647, %v1705
  %vm1716 = vcmp.eq.f32.partialorder %v1715, 8.507059e+37
  %v1717 = vand.u32 %v1705, 2147483648
  %v1718 = vor.u32 1.1754944e-38, %v1717
  %v1719 = vsel %vm1716, %v1718, %v1714
  %v1720 = vmul.f32 1.0, %v1719
  %v1721 = vtanh.pop %v1701
  %v1722 = vmul.f32 %v1720, %v1543
  %1724 = vrot.lane.b32.xlu0 %v1721, 64
  %v1725 = vpop.permute.xlu0 %1724
  %v1727 = vmul.f32 %v1720, %v1725
  %1729 = vrot.lane.b32.xlu0 %v1727, 32
  %v1730 = vpop.permute.xlu0 %1729
  %v1732 = vadd.f32 %v1722, %v1730
  %v1733 = vtanh.pop %v1732
  %1735 = vrot.lane.b32.xlu0 %v1733, 64
  %v1736 = vpop.permute.xlu0 %1735
  %v1738 = vmul.f32 %v1720, %v1736
  %v1739 = vld [vmem:[#allocation2 + $0x38] sm:$0xff]
  %v1740 = vpack.c.bf16 %v1608, %v1608
  %1742 = vrot.lane.b32.xlu0 %v1740, 32
  %v1743 = vpop.permute.xlu0 %1742
  %v1745 = vsel %vm407, %v1743, 0
  %1747 = vmatpush.bf16.msra.mxu0 0
  %1748 = vmatpush.bf16.msra.mxu0 0
  %1749 = vmatpush.bf16.msra.mxu0 0
  %1750 = vmatpush.bf16.msra.mxu0 0
  %1751 = vmatpush.bf16.msra.mxu0 0
  %1752 = vmatpush.bf16.msra.mxu0 0
  %1753 = vmatpush.bf16.msra.mxu0 %v404
  %1754 = vmatpush.bf16.msra.mxu0 %v403
  %1755 = vmatmul.bf16.gmra.mxu0 %v1745
  %v1756 = vpop.f32.mrf.mxu0
  %v1757 = vadd.f32 0.0, %v1756
  %v1758 = vpop.f32.mrf.mxu0
  %1759 = vdwg.mxu0
  %v1760 = vadd.f32 %v1739, %v1757
  %v1761 = vxor.u32 %v1760, 2147483648
  %v1762 = vmul.f32 %v1761, 1.442695
  %v1763 = vpow.pop %v1762
  %v1764 = vadd.f32 %v1763, 1.0
  %v1765 = vrcp.pop %v1764
  %v1766 = vmul.f32 %v1764, %v1765
  %v1767 = vsub.f32 1.0, %v1766
  %v1768 = vmul.f32 %v1765, %v1767
  %v1769 = vadd.f32 %v1765, %v1768
  %vm1770 = vweird.f32 %v1764
  %vm1771 = vweird.f32 %v1765
  %vm1772 = vmor %vm1770, %vm1771
  %v1773 = vsel %vm1772, %v1765, %v1769
  %v1774 = vand.u32 2147483647, %v1764
  %vm1775 = vcmp.eq.f32.partialorder %v1774, 8.507059e+37
  %v1776 = vand.u32 %v1764, 2147483648
  %v1777 = vor.u32 1.1754944e-38, %v1776
  %v1778 = vsel %vm1775, %v1777, %v1773
  %v1779 = vmul.f32 1.0, %v1778
  %v1780 = vtanh.pop %v1760
  %v1781 = vmul.f32 %v1779, %v1602
  %1783 = vrot.lane.b32.xlu0 %v1780, 64
  %v1784 = vpop.permute.xlu0 %1783
  %v1786 = vmul.f32 %v1779, %v1784
  %1788 = vrot.lane.b32.xlu0 %v1786, 32
  %v1789 = vpop.permute.xlu0 %1788
  %v1791 = vadd.f32 %v1781, %v1789
  %v1792 = vtanh.pop %v1791
  %1794 = vrot.lane.b32.xlu0 %v1792, 64
  %v1795 = vpop.permute.xlu0 %1794
  %v1797 = vmul.f32 %v1779, %v1795
  %v1798 = vld [vmem:[#allocation3] sm:$0xff]
  %v1799 = vpack.c.bf16 %v1667, %v1667
  %1801 = vrot.lane.b32.xlu0 %v1799, 32
  %v1802 = vpop.permute.xlu0 %1801
  %v1804 = vsel %vm407, %v1802, 0
  %1806 = vmatpush.bf16.msra.mxu0 0
  %1807 = vmatpush.bf16.msra.mxu0 0
  %1808 = vmatpush.bf16.msra.mxu0 0
  %1809 = vmatpush.bf16.msra.mxu0 0
  %1810 = vmatpush.bf16.msra.mxu0 0
  %1811 = vmatpush.bf16.msra.mxu0 0
  %1812 = vmatpush.bf16.msra.mxu0 %v472
  %1813 = vmatpush.bf16.msra.mxu0 %v471
  %1814 = vmatmul.bf16.gmra.mxu0 %v1804
  %v1815 = vpop.f32.mrf.mxu0
  %v1816 = vadd.f32 0.0, %v1815
  %v1817 = vpop.f32.mrf.mxu0
  %1818 = vdwg.mxu0
  %v1819 = vadd.f32 %v1798, %v1816
  %v1820 = vxor.u32 %v1819, 2147483648
  %v1821 = vmul.f32 %v1820, 1.442695
  %v1822 = vpow.pop %v1821
  %v1823 = vadd.f32 %v1822, 1.0
  %v1824 = vrcp.pop %v1823
  %v1825 = vmul.f32 %v1823, %v1824
  %v1826 = vsub.f32 1.0, %v1825
  %v1827 = vmul.f32 %v1824, %v1826
  %v1828 = vadd.f32 %v1824, %v1827
  %vm1829 = vweird.f32 %v1823
  %vm1830 = vweird.f32 %v1824
  %vm1831 = vmor %vm1829, %vm1830
  %v1832 = vsel %vm1831, %v1824, %v1828
  %v1833 = vand.u32 2147483647, %v1823
  %vm1834 = vcmp.eq.f32.partialorder %v1833, 8.507059e+37
  %v1835 = vand.u32 %v1823, 2147483648
  %v1836 = vor.u32 1.1754944e-38, %v1835
  %v1837 = vsel %vm1834, %v1836, %v1832
  %v1838 = vmul.f32 1.0, %v1837
  %v1839 = vtanh.pop %v1819
  %v1840 = vmul.f32 %v1838, %v1661
  %1842 = vrot.lane.b32.xlu0 %v1839, 64
  %v1843 = vpop.permute.xlu0 %1842
  %v1845 = vmul.f32 %v1838, %v1843
  %1847 = vrot.lane.b32.xlu0 %v1845, 32
  %v1848 = vpop.permute.xlu0 %1847
  %v1850 = vadd.f32 %v1840, %v1848
  %v1851 = vtanh.pop %v1850
  %1853 = vrot.lane.b32.xlu0 %v1851, 64
  %v1854 = vpop.permute.xlu0 %1853
  %v1856 = vmul.f32 %v1838, %v1854
  %1858 = vrot.lane.b32.xlu0 %v1797, 32
  %v1859 = vpop.permute.xlu0 %1858
  %1861 = vst.msk [vmem:[#allocation4 + $0x38] sm:$0xff] %vm407, %v1859
  %1863 = vrot.lane.b32.xlu0 %v1856, 32
  %v1864 = vpop.permute.xlu0 %1863
  %1866 = vst.msk [vmem:[#allocation5] sm:$0xff] %vm407, %v1864
  %v1867 = vperm.slane %v380, 7
  %v1868 = vsub.f32 %v1867, %v380
  %v1869 = vadd.f32 %v1868, %v539
  %v1870 = vpack.c.bf16 %v1738, %v1738
  %1872 = vrot.lane.b32.xlu0 %v1870, 32
  %v1873 = vpop.permute.xlu0 %1872
  %v1875 = vsel %vm407, %v1873, 0
  %1877 = vmatpush.bf16.msra.mxu0 0
  %1878 = vmatpush.bf16.msra.mxu0 0
  %1879 = vmatpush.bf16.msra.mxu0 0
  %1880 = vmatpush.bf16.msra.mxu0 0
  %1881 = vmatpush.bf16.msra.mxu0 0
  %1882 = vmatpush.bf16.msra.mxu0 0
  %1883 = vmatpush.bf16.msra.mxu0 %v551
  %1884 = vmatpush.bf16.msra.mxu0 %v550
  %1885 = vmatmul.bf16.gmra.mxu0 %v1875
  %v1886 = vpop.f32.mrf.mxu0
  %v1887 = vadd.f32 0.0, %v1886
  %v1888 = vpop.f32.mrf.mxu0
  %1889 = vdwg.mxu0
  %v1890 = vadd.f32 %v1869, %v1887
  %v1891 = vxor.u32 %v1890, 2147483648
  %v1892 = vmul.f32 %v1891, 1.442695
  %v1893 = vpow.pop %v1892
  %v1894 = vadd.f32 %v1893, 1.0
  %v1895 = vrcp.pop %v1894
  %v1896 = vmul.f32 %v1894, %v1895
  %v1897 = vsub.f32 1.0, %v1896
  %v1898 = vmul.f32 %v1895, %v1897
  %v1899 = vadd.f32 %v1895, %v1898
  %vm1900 = vweird.f32 %v1894
  %vm1901 = vweird.f32 %v1895
  %vm1902 = vmor %vm1900, %vm1901
  %v1903 = vsel %vm1902, %v1895, %v1899
  %v1904 = vand.u32 2147483647, %v1894
  %vm1905 = vcmp.eq.f32.partialorder %v1904, 8.507059e+37
  %v1906 = vand.u32 %v1894, 2147483648
  %v1907 = vor.u32 1.1754944e-38, %v1906
  %v1908 = vsel %vm1905, %v1907, %v1903
  %v1909 = vmul.f32 1.0, %v1908
  %v1910 = vtanh.pop %v1890
  %v1911 = vmul.f32 %v1909, %v1732
  %1913 = vrot.lane.b32.xlu0 %v1910, 64
  %v1914 = vpop.permute.xlu0 %1913
  %v1916 = vmul.f32 %v1909, %v1914
  %1918 = vrot.lane.b32.xlu0 %v1916, 32
  %v1919 = vpop.permute.xlu0 %1918
  %v1921 = vadd.f32 %v1911, %v1919
  %v1922 = vtanh.pop %v1921
  %1924 = vrot.lane.b32.xlu0 %v1922, 64
  %v1925 = vpop.permute.xlu0 %1924
  %v1927 = vmul.f32 %v1909, %v1925
  %v1928 = vld [vmem:[%s10] sm:$0xf]
  %v1929 = vperm.slane %v1928, 0
  %v1930 = vmul.f32 %v110, %v1929
  %v1931 = vperm.slane %v1928, 1
  %v1932 = vmul.f32 %v151, %v1931
  %v1933 = vadd.f32 %v1930, %v1932
  %v1934 = vperm.slane %v1928, 2
  %v1935 = vmul.f32 %v200, %v1934
  %v1936 = vadd.f32 %v1933, %v1935
  %v1937 = vperm.slane %v1928, 3
  %v1938 = vmul.f32 %v249, %v1937
  %v1939 = vadd.f32 %v1936, %v1938
  %v1940 = vperm.slane %v1939, 7
  %v1941 = vsub.f32 %v1940, %v1939
  %v1942 = vld [vmem:[%s12] sm:$0x1]
  %v1944 = vperm.slane %v1942, 0
  %v1946 = vadd.f32 %v1941, %v1944
  %v1947 = vld [vmem:[%s11] sm:$0xf]
  %v1948 = vld [vmem:[%s11 + $0x4] sm:$0xf]
  %v1949 = vld [vmem:[%s11 + $0x8] sm:$0xf]
  %v1950 = vld [vmem:[%s11 + $0xc] sm:$0xf]
  %v1955 = vunpack.c.l.b16 %v1947
  %v1956 = vunpack.c.l.b16 %v1948
  %v1957 = vunpack.c.l.b16 %v1949
  %v1958 = vunpack.c.l.b16 %v1950
  %v1959 = vpack.c.b16 %v1956, %v1955
  %v1960 = vpack.c.b16 %v1958, %v1957
  %1963 = vmatpush.bf16.msra.mxu0 0
  %1964 = vmatpush.bf16.msra.mxu0 0
  %1965 = vmatpush.bf16.msra.mxu0 0
  %1966 = vmatpush.bf16.msra.mxu0 0
  %1967 = vmatpush.bf16.msra.mxu0 0
  %1968 = vmatpush.bf16.msra.mxu0 0
  %1969 = vmatpush.bf16.msra.mxu0 %v1960
  %1970 = vmatpush.bf16.msra.mxu0 %v1959
  %1971 = vmatmul.bf16.gmra.mxu0 %v409
  %v1972 = vpop.f32.mrf.mxu0
  %v1973 = vadd.f32 0.0, %v1972
  %v1974 = vpop.f32.mrf.mxu0
  %1975 = vdwg.mxu0
  %v1976 = vadd.f32 %v1946, %v1973
  %v1977 = vxor.u32 %v1976, 2147483648
  %v1978 = vmul.f32 %v1977, 1.442695
  %v1979 = vpow.pop %v1978
  %v1980 = vadd.f32 %v1979, 1.0
  %v1981 = vrcp.pop %v1980
  %v1982 = vmul.f32 %v1980, %v1981
  %v1983 = vsub.f32 1.0, %v1982
  %v1984 = vmul.f32 %v1981, %v1983
  %v1985 = vadd.f32 %v1981, %v1984
  %vm1986 = vweird.f32 %v1980
  %vm1987 = vweird.f32 %v1981
  %vm1988 = vmor %vm1986, %vm1987
  %v1989 = vsel %vm1988, %v1981, %v1985
  %v1990 = vand.u32 2147483647, %v1980
  %vm1991 = vcmp.eq.f32.partialorder %v1990, 8.507059e+37
  %v1992 = vand.u32 %v1980, 2147483648
  %v1993 = vor.u32 1.1754944e-38, %v1992
  %v1994 = vsel %vm1991, %v1993, %v1989
  %v1995 = vmul.f32 1.0, %v1994
  %v1996 = vtanh.pop %v1976
  %v1997 = vmul.f32 %v1995, 0.0
  %1999 = vrot.lane.b32.xlu0 %v1996, 64
  %v2000 = vpop.permute.xlu0 %1999
  %v2002 = vmul.f32 %v1995, %v2000
  %2004 = vrot.lane.b32.xlu0 %v2002, 32
  %v2005 = vpop.permute.xlu0 %2004
  %v2007 = vadd.f32 %v1997, %v2005
  %v2008 = vtanh.pop %v2007
  %2010 = vrot.lane.b32.xlu0 %v2008, 64
  %v2011 = vpop.permute.xlu0 %2010
  %v2013 = vmul.f32 %v1995, %v2011
  %2015 = vrot.lane.b32.xlu0 %v1927, 32
  %v2016 = vpop.permute.xlu0 %2015
  %2018 = vst.msk [vmem:[#allocation4 + $0x40] sm:$0xff] %vm407, %v2016
  %2020 = vrot.lane.b32.xlu0 %v2013, 32
  %v2021 = vpop.permute.xlu0 %2020
  %2023 = vst.msk [vmem:[#allocation5 + $0x40] sm:$0xff] %vm407, %v2021
  %v2024 = vld [vmem:[#allocation4] sm:$0xff]
  %v2025 = vld [vmem:[#allocation4 + $0x8] sm:$0xff]
  %v2026 = vld [vmem:[#allocation4 + $0x10] sm:$0xff]
  %v2027 = vld [vmem:[#allocation4 + $0x18] sm:$0xff]
  %v2028 = vld [vmem:[#allocation4 + $0x20] sm:$0xff]
  %v2029 = vld [vmem:[#allocation4 + $0x28] sm:$0xff]
  %v2030 = vld [vmem:[#allocation4 + $0x30] sm:$0xff]
  %v2031 = vld [vmem:[#allocation4 + $0x38] sm:$0xff]
  %v2032 = vld [vmem:[#allocation4 + $0x40] sm:$0xff]
  %v2033 = vpack.c.bf16 %v2025, %v2024
  %v2034 = vpack.c.bf16 %v2027, %v2026
  %v2035 = vpack.c.bf16 %v2029, %v2028
  %v2036 = vpack.c.bf16 %v2031, %v2030
  %v2037 = vpack.c.bf16 %v2032, %v2032
  %v2038 = vld [vmem:[#allocation5] sm:$0xff]
  %v2039 = vld [vmem:[#allocation5 + $0x8] sm:$0xff]
  %v2040 = vld [vmem:[#allocation5 + $0x10] sm:$0xff]
  %v2041 = vld [vmem:[#allocation5 + $0x18] sm:$0xff]
  %v2042 = vld [vmem:[#allocation5 + $0x20] sm:$0xff]
  %v2043 = vld [vmem:[#allocation5 + $0x28] sm:$0xff]
  %v2044 = vld [vmem:[#allocation5 + $0x30] sm:$0xff]
  %v2045 = vld [vmem:[#allocation5 + $0x38] sm:$0xff]
  %v2046 = vld [vmem:[#allocation5 + $0x40] sm:$0xff]
  %v2047 = vpack.c.bf16 %v2039, %v2038
  %v2048 = vpack.c.bf16 %v2041, %v2040
  %v2049 = vpack.c.bf16 %v2043, %v2042
  %v2050 = vpack.c.bf16 %v2045, %v2044
  %v2051 = vpack.c.bf16 %v2046, %v2046
  %v2052 = vld [vmem:[%s13] sm:$0xff]
  %v2053 = vld [vmem:[%s13 + $0x8] sm:$0xff]
  %v2054 = vld [vmem:[%s13 + $0x10] sm:$0xff]
  %v2055 = vld [vmem:[%s13 + $0x18] sm:$0xff]
  %v2056 = vld [vmem:[%s13 + $0x20] sm:$0xff]
  %v2057 = vld [vmem:[%s13 + $0x28] sm:$0xff]
  %v2058 = vld [vmem:[%s13 + $0x30] sm:$0xff]
  %v2059 = vld [vmem:[%s13 + $0x38] sm:$0xff]
  %v2064 = vunpack.c.l.b16 %v2056
  %v2065 = vunpack.c.h.b16 %v2056
  %v2066 = vunpack.c.l.b16 %v2057
  %v2067 = vunpack.c.h.b16 %v2057
  %v2068 = vunpack.c.l.b16 %v2058
  %v2069 = vunpack.c.h.b16 %v2058
  %v2070 = vunpack.c.l.b16 %v2059
  %v2071 = vunpack.c.h.b16 %v2059
  %v2072 = vpack.c.b16 %v2066, %v2064
  %v2073 = vpack.c.b16 %v2067, %v2065
  %v2074 = vpack.c.b16 %v2070, %v2068
  %v2075 = vpack.c.b16 %v2071, %v2069
  %v2081 = vsel %vm407, %v2047, 0
  %v2084 = vsel %vm407, %v2048, 0
  %v2087 = vsel %vm407, %v2049, 0
  %v2090 = vsel %vm407, %v2050, 0
  %v2093 = vsel %vm407, %v2051, 0
  %2095 = vmatpush.bf16.msra.mxu0 0
  %2096 = vmatpush.bf16.msra.mxu0 0
  %2097 = vmatpush.bf16.msra.mxu0 0
  %2098 = vmatpush.bf16.msra.mxu0 0
  %2099 = vmatpush.bf16.msra.mxu0 0
  %2100 = vmatpush.bf16.msra.mxu0 0
  %2101 = vmatpush.bf16.msra.mxu0 %v2074
  %2102 = vmatpush.bf16.msra.mxu0 %v2072
  %2103 = vmatmul.bf16.gmra.mxu0 %v2081
  %v2104 = vpop.f32.mrf.mxu0
  %v2105 = vadd.f32 0.0, %v2104
  %v2106 = vpop.f32.mrf.mxu0
  %v2107 = vadd.f32 0.0, %v2106
  %2108 = vmatmul.bf16.gmra.mxu0 %v2084
  %v2109 = vpop.f32.mrf.mxu0
  %v2110 = vadd.f32 0.0, %v2109
  %v2111 = vpop.f32.mrf.mxu0
  %v2112 = vadd.f32 0.0, %v2111
  %2113 = vmatmul.bf16.gmra.mxu0 %v2087
  %v2114 = vpop.f32.mrf.mxu0
  %v2115 = vadd.f32 0.0, %v2114
  %v2116 = vpop.f32.mrf.mxu0
  %v2117 = vadd.f32 0.0, %v2116
  %2118 = vmatmul.bf16.gmra.mxu0 %v2090
  %v2119 = vpop.f32.mrf.mxu0
  %v2120 = vadd.f32 0.0, %v2119
  %v2121 = vpop.f32.mrf.mxu0
  %v2122 = vadd.f32 0.0, %v2121
  %2123 = vmatmul.bf16.gmra.mxu0 %v2093
  %v2124 = vpop.f32.mrf.mxu0
  %v2125 = vadd.f32 0.0, %v2124
  %v2126 = vpop.f32.mrf.mxu0
  %2127 = vdwg.mxu0
  %2128 = vmatpush.bf16.msra.mxu0 0
  %2129 = vmatpush.bf16.msra.mxu0 0
  %2130 = vmatpush.bf16.msra.mxu0 0
  %2131 = vmatpush.bf16.msra.mxu0 0
  %2132 = vmatpush.bf16.msra.mxu0 0
  %2133 = vmatpush.bf16.msra.mxu0 0
  %2134 = vmatpush.bf16.msra.mxu0 %v2075
  %2135 = vmatpush.bf16.msra.mxu0 %v2073
  %2136 = vmatmul.bf16.gmra.mxu0 %v2081
  %v2137 = vpop.f32.mrf.mxu0
  %v2138 = vadd.f32 0.0, %v2137
  %v2139 = vpop.f32.mrf.mxu0
  %v2140 = vadd.f32 0.0, %v2139
  %2141 = vmatmul.bf16.gmra.mxu0 %v2084
  %v2142 = vpop.f32.mrf.mxu0
  %v2143 = vadd.f32 0.0, %v2142
  %v2144 = vpop.f32.mrf.mxu0
  %v2145 = vadd.f32 0.0, %v2144
  %2146 = vmatmul.bf16.gmra.mxu0 %v2087
  %v2147 = vpop.f32.mrf.mxu0
  %v2148 = vadd.f32 0.0, %v2147
  %v2149 = vpop.f32.mrf.mxu0
  %v2150 = vadd.f32 0.0, %v2149
  %2151 = vmatmul.bf16.gmra.mxu0 %v2090
  %v2152 = vpop.f32.mrf.mxu0
  %v2153 = vadd.f32 0.0, %v2152
  %v2154 = vpop.f32.mrf.mxu0
  %v2155 = vadd.f32 0.0, %v2154
  %2156 = vmatmul.bf16.gmra.mxu0 %v2093
  %v2157 = vpop.f32.mrf.mxu0
  %v2158 = vadd.f32 0.0, %v2157
  %v2159 = vpop.f32.mrf.mxu0
  %2160 = vdwg.mxu0
  %v2165 = vunpack.c.l.b16 %v2052
  %v2166 = vunpack.c.h.b16 %v2052
  %v2167 = vunpack.c.l.b16 %v2053
  %v2168 = vunpack.c.h.b16 %v2053
  %v2169 = vunpack.c.l.b16 %v2054
  %v2170 = vunpack.c.h.b16 %v2054
  %v2171 = vunpack.c.l.b16 %v2055
  %v2172 = vunpack.c.h.b16 %v2055
  %v2173 = vpack.c.b16 %v2167, %v2165
  %v2174 = vpack.c.b16 %v2168, %v2166
  %v2175 = vpack.c.b16 %v2171, %v2169
  %v2176 = vpack.c.b16 %v2172, %v2170
  %v2182 = vsel %vm407, %v2033, 0
  %v2185 = vsel %vm407, %v2034, 0
  %v2188 = vsel %vm407, %v2035, 0
  %v2191 = vsel %vm407, %v2036, 0
  %v2194 = vsel %vm407, %v2037, 0
  %2196 = vmatpush.bf16.msra.mxu0 0
  %2197 = vmatpush.bf16.msra.mxu0 0
  %2198 = vmatpush.bf16.msra.mxu0 0
  %2199 = vmatpush.bf16.msra.mxu0 0
  %2200 = vmatpush.bf16.msra.mxu0 0
  %2201 = vmatpush.bf16.msra.mxu0 0
  %2202 = vmatpush.bf16.msra.mxu0 %v2175
  %2203 = vmatpush.bf16.msra.mxu0 %v2173
  %2204 = vmatmul.bf16.gmra.mxu0 %v2182
  %v2205 = vpop.f32.mrf.mxu0
  %v2206 = vadd.f32 %v2105, %v2205
  %v2207 = vpop.f32.mrf.mxu0
  %v2208 = vadd.f32 %v2107, %v2207
  %2209 = vmatmul.bf16.gmra.mxu0 %v2185
  %v2210 = vpop.f32.mrf.mxu0
  %v2211 = vadd.f32 %v2110, %v2210
  %v2212 = vpop.f32.mrf.mxu0
  %v2213 = vadd.f32 %v2112, %v2212
  %2214 = vmatmul.bf16.gmra.mxu0 %v2188
  %v2215 = vpop.f32.mrf.mxu0
  %v2216 = vadd.f32 %v2115, %v2215
  %v2217 = vpop.f32.mrf.mxu0
  %v2218 = vadd.f32 %v2117, %v2217
  %2219 = vmatmul.bf16.gmra.mxu0 %v2191
  %v2220 = vpop.f32.mrf.mxu0
  %v2221 = vadd.f32 %v2120, %v2220
  %v2222 = vpop.f32.mrf.mxu0
  %v2223 = vadd.f32 %v2122, %v2222
  %2224 = vmatmul.bf16.gmra.mxu0 %v2194
  %v2225 = vpop.f32.mrf.mxu0
  %v2226 = vadd.f32 %v2125, %v2225
  %v2227 = vpop.f32.mrf.mxu0
  %2228 = vdwg.mxu0
  %2229 = vmatpush.bf16.msra.mxu0 0
  %2230 = vmatpush.bf16.msra.mxu0 0
  %2231 = vmatpush.bf16.msra.mxu0 0
  %2232 = vmatpush.bf16.msra.mxu0 0
  %2233 = vmatpush.bf16.msra.mxu0 0
  %2234 = vmatpush.bf16.msra.mxu0 0
  %2235 = vmatpush.bf16.msra.mxu0 %v2176
  %2236 = vmatpush.bf16.msra.mxu0 %v2174
  %2237 = vmatmul.bf16.gmra.mxu0 %v2182
  %v2238 = vpop.f32.mrf.mxu0
  %v2239 = vadd.f32 %v2138, %v2238
  %v2240 = vpop.f32.mrf.mxu0
  %v2241 = vadd.f32 %v2140, %v2240
  %2242 = vmatmul.bf16.gmra.mxu0 %v2185
  %v2243 = vpop.f32.mrf.mxu0
  %v2244 = vadd.f32 %v2143, %v2243
  %v2245 = vpop.f32.mrf.mxu0
  %v2246 = vadd.f32 %v2145, %v2245
  %2247 = vmatmul.bf16.gmra.mxu0 %v2188
  %v2248 = vpop.f32.mrf.mxu0
  %v2249 = vadd.f32 %v2148, %v2248
  %v2250 = vpop.f32.mrf.mxu0
  %v2251 = vadd.f32 %v2150, %v2250
  %2252 = vmatmul.bf16.gmra.mxu0 %v2191
  %v2253 = vpop.f32.mrf.mxu0
  %v2254 = vadd.f32 %v2153, %v2253
  %v2255 = vpop.f32.mrf.mxu0
  %v2256 = vadd.f32 %v2155, %v2255
  %2257 = vmatmul.bf16.gmra.mxu0 %v2194
  %v2258 = vpop.f32.mrf.mxu0
  %v2259 = vadd.f32 %v2158, %v2258
  %v2260 = vpop.f32.mrf.mxu0
  %2261 = vdwg.mxu0
  %v2262 = vld [vmem:[%s16] sm:$0x3]
  %v2264 = vperm.slane %v2262, 0
  %v2265 = vperm.slane %v2262, 1
  %v2268 = vadd.f32 %v2206, %v2264
  %v2269 = vadd.f32 %v2239, %v2265
  %v2270 = vadd.f32 %v2208, %v2264
  %v2271 = vadd.f32 %v2241, %v2265
  %v2272 = vadd.f32 %v2211, %v2264
  %v2273 = vadd.f32 %v2244, %v2265
  %v2274 = vadd.f32 %v2213, %v2264
  %v2275 = vadd.f32 %v2246, %v2265
  %v2276 = vadd.f32 %v2216, %v2264
  %v2277 = vadd.f32 %v2249, %v2265
  %v2278 = vadd.f32 %v2218, %v2264
  %v2279 = vadd.f32 %v2251, %v2265
  %v2280 = vadd.f32 %v2221, %v2264
  %v2281 = vadd.f32 %v2254, %v2265
  %v2282 = vadd.f32 %v2223, %v2264
  %v2283 = vadd.f32 %v2256, %v2265
  %v2284 = vadd.f32 %v2226, %v2264
  %v2285 = vadd.f32 %v2259, %v2265
  %v2286 = vld [vmem:[%s14] sm:$0xf]
  %v2287 = vld [vmem:[%s14 + $0x4] sm:$0xf]
  %v2288 = vld [vmem:[%s14 + $0x8] sm:$0xf]
  %v2289 = vld [vmem:[%s14 + $0xc] sm:$0xf]
  %v2290 = vld [vmem:[%s15] sm:$0xf]
  %v2291 = vld [vmem:[%s15 + $0x4] sm:$0xf]
  %v2292 = vld [vmem:[%s15 + $0x8] sm:$0xf]
  %v2293 = vld [vmem:[%s15 + $0xc] sm:$0xf]
  %v2294 = vld [vmem:[%s18] sm:$0x1]
  %v2296 = vperm.slane %v2294, 0
  %v2298 = vadd.f32 %v2296, %v70
  %v2303 = vunpack.c.l.b16 %v2286
  %v2304 = vunpack.c.l.b16 %v2287
  %v2305 = vunpack.c.l.b16 %v2288
  %v2306 = vunpack.c.l.b16 %v2289
  %v2307 = vpack.c.b16 %v2304, %v2303
  %v2308 = vpack.c.b16 %v2306, %v2305
  %2311 = vmatpush.bf16.msra.mxu0 0
  %2312 = vmatpush.bf16.msra.mxu0 0
  %2313 = vmatpush.bf16.msra.mxu0 0
  %2314 = vmatpush.bf16.msra.mxu0 0
  %2315 = vmatpush.bf16.msra.mxu0 0
  %2316 = vmatpush.bf16.msra.mxu0 0
  %2317 = vmatpush.bf16.msra.mxu0 %v2308
  %2318 = vmatpush.bf16.msra.mxu0 %v2307
  %2319 = vmatmul.bf16.gmra.mxu0 %v409
  %v2320 = vpop.f32.mrf.mxu0
  %v2321 = vadd.f32 0.0, %v2320
  %v2322 = vpop.f32.mrf.mxu0
  %2323 = vdwg.mxu0
  %v2324 = vadd.f32 %v2268, %v2321
  %v2325 = vxor.u32 %v2324, 2147483648
  %v2326 = vmul.f32 %v2325, 1.442695
  %v2327 = vpow.pop %v2326
  %v2328 = vadd.f32 %v2327, 1.0
  %v2329 = vrcp.pop %v2328
  %v2330 = vmul.f32 %v2328, %v2329
  %v2331 = vsub.f32 1.0, %v2330
  %v2332 = vmul.f32 %v2329, %v2331
  %v2333 = vadd.f32 %v2329, %v2332
  %vm2334 = vweird.f32 %v2328
  %vm2335 = vweird.f32 %v2329
  %vm2336 = vmor %vm2334, %vm2335
  %v2337 = vsel %vm2336, %v2329, %v2333
  %v2338 = vand.u32 2147483647, %v2328
  %vm2339 = vcmp.eq.f32.partialorder %v2338, 8.507059e+37
  %v2340 = vand.u32 %v2328, 2147483648
  %v2341 = vor.u32 1.1754944e-38, %v2340
  %v2342 = vsel %vm2339, %v2341, %v2337
  %v2343 = vmul.f32 1.0, %v2342
  %v2344 = vtanh.pop %v2324
  %v2345 = vmul.f32 %v2343, 0.0
  %2347 = vrot.lane.b32.xlu0 %v2344, 64
  %v2348 = vpop.permute.xlu0 %2347
  %v2350 = vmul.f32 %v2343, %v2348
  %2352 = vrot.lane.b32.xlu0 %v2350, 32
  %v2353 = vpop.permute.xlu0 %2352
  %v2355 = vadd.f32 %v2345, %v2353
  %v2356 = vtanh.pop %v2355
  %2358 = vrot.lane.b32.xlu0 %v2356, 64
  %v2359 = vpop.permute.xlu0 %2358
  %v2361 = vmul.f32 %v2343, %v2359
  %v2366 = vunpack.c.l.b16 %v2290
  %v2367 = vunpack.c.l.b16 %v2291
  %v2368 = vunpack.c.l.b16 %v2292
  %v2369 = vunpack.c.l.b16 %v2293
  %v2370 = vpack.c.b16 %v2367, %v2366
  %v2371 = vpack.c.b16 %v2369, %v2368
  %2374 = vmatpush.bf16.msra.mxu0 0
  %2375 = vmatpush.bf16.msra.mxu0 0
  %2376 = vmatpush.bf16.msra.mxu0 0
  %2377 = vmatpush.bf16.msra.mxu0 0
  %2378 = vmatpush.bf16.msra.mxu0 0
  %2379 = vmatpush.bf16.msra.mxu0 0
  %2380 = vmatpush.bf16.msra.mxu0 %v2371
  %2381 = vmatpush.bf16.msra.mxu0 %v2370
  %2382 = vmatmul.bf16.gmra.mxu0 %v409
  %v2383 = vpop.f32.mrf.mxu0
  %v2384 = vadd.f32 0.0, %v2383
  %v2385 = vpop.f32.mrf.mxu0
  %2386 = vdwg.mxu0
  %v2387 = vadd.f32 %v2285, %v2384
  %v2388 = vxor.u32 %v2387, 2147483648
  %v2389 = vmul.f32 %v2388, 1.442695
  %v2390 = vpow.pop %v2389
  %v2391 = vadd.f32 %v2390, 1.0
  %v2392 = vrcp.pop %v2391
  %v2393 = vmul.f32 %v2391, %v2392
  %v2394 = vsub.f32 1.0, %v2393
  %v2395 = vmul.f32 %v2392, %v2394
  %v2396 = vadd.f32 %v2392, %v2395
  %vm2397 = vweird.f32 %v2391
  %vm2398 = vweird.f32 %v2392
  %vm2399 = vmor %vm2397, %vm2398
  %v2400 = vsel %vm2399, %v2392, %v2396
  %v2401 = vand.u32 2147483647, %v2391
  %vm2402 = vcmp.eq.f32.partialorder %v2401, 8.507059e+37
  %v2403 = vand.u32 %v2391, 2147483648
  %v2404 = vor.u32 1.1754944e-38, %v2403
  %v2405 = vsel %vm2402, %v2404, %v2400
  %v2406 = vmul.f32 1.0, %v2405
  %v2407 = vtanh.pop %v2387
  %v2408 = vmul.f32 %v2406, 0.0
  %2410 = vrot.lane.b32.xlu0 %v2407, 64
  %v2411 = vpop.permute.xlu0 %2410
  %v2413 = vmul.f32 %v2406, %v2411
  %2415 = vrot.lane.b32.xlu0 %v2413, 32
  %v2416 = vpop.permute.xlu0 %2415
  %v2418 = vadd.f32 %v2408, %v2416
  %v2419 = vtanh.pop %v2418
  %2421 = vrot.lane.b32.xlu0 %v2419, 64
  %v2422 = vpop.permute.xlu0 %2421
  %v2424 = vmul.f32 %v2406, %v2422
  %v2425 = vpack.c.bf16 %v2361, %v2361
  %v2426 = vld [vmem:[%s17] sm:$0xf]
  %v2427 = vld [vmem:[%s17 + $0x4] sm:$0xf]
  %v2428 = vld [vmem:[%s17 + $0x8] sm:$0xf]
  %v2429 = vld [vmem:[%s17 + $0xc] sm:$0xf]
  %2431 = vrot.lane.b32.xlu0 %v2425, 32
  %v2432 = vpop.permute.xlu0 %2431
  %v2437 = vunpack.c.l.b16 %v2426
  %v2438 = vunpack.c.l.b16 %v2427
  %v2439 = vunpack.c.l.b16 %v2428
  %v2440 = vunpack.c.l.b16 %v2429
  %v2441 = vpack.c.b16 %v2438, %v2437
  %v2442 = vpack.c.b16 %v2440, %v2439
  %v2446 = vsel %vm407, %v2432, 0
  %2448 = vmatpush.bf16.msra.mxu0 0
  %2449 = vmatpush.bf16.msra.mxu0 0
  %2450 = vmatpush.bf16.msra.mxu0 0
  %2451 = vmatpush.bf16.msra.mxu0 0
  %2452 = vmatpush.bf16.msra.mxu0 0
  %2453 = vmatpush.bf16.msra.mxu0 0
  %2454 = vmatpush.bf16.msra.mxu0 %v2442
  %2455 = vmatpush.bf16.msra.mxu0 %v2441
  %2456 = vmatmul.bf16.gmra.mxu0 %v2446
  %v2457 = vpop.f32.mrf.mxu0
  %v2458 = vadd.f32 0.0, %v2457
  %v2459 = vpop.f32.mrf.mxu0
  %2460 = vdwg.mxu0
  %v2461 = vadd.f32 %v2298, %v2458
  %v2462 = vpack.c.bf16 %v2424, %v2424
  %s2463 = scalar_lea.vmem %s17, 272
  %v2464 = vld [vmem:[%s2463] sm:$0xf]
  %v2465 = vld [vmem:[%s2463 + $0x4] sm:$0xf]
  %v2466 = vld [vmem:[%s2463 + $0x8] sm:$0xf]
  %v2467 = vld [vmem:[%s2463 + $0xc] sm:$0xf]
  %2469 = vrot.lane.b32.xlu0 %v2462, 32
  %v2470 = vpop.permute.xlu0 %2469
  %v2475 = vunpack.c.l.b16 %v2464
  %v2476 = vunpack.c.l.b16 %v2465
  %v2477 = vunpack.c.l.b16 %v2466
  %v2478 = vunpack.c.l.b16 %v2467
  %v2479 = vpack.c.b16 %v2476, %v2475
  %v2480 = vpack.c.b16 %v2478, %v2477
  %v2484 = vsel %vm407, %v2470, 0
  %2486 = vmatpush.bf16.msra.mxu0 0
  %2487 = vmatpush.bf16.msra.mxu0 0
  %2488 = vmatpush.bf16.msra.mxu0 0
  %2489 = vmatpush.bf16.msra.mxu0 0
  %2490 = vmatpush.bf16.msra.mxu0 0
  %2491 = vmatpush.bf16.msra.mxu0 0
  %2492 = vmatpush.bf16.msra.mxu0 %v2480
  %2493 = vmatpush.bf16.msra.mxu0 %v2479
  %2494 = vmatmul.bf16.gmra.mxu0 %v2484
  %v2495 = vpop.f32.mrf.mxu0
  %v2496 = vadd.f32 0.0, %v2495
  %v2497 = vpop.f32.mrf.mxu0
  %2498 = vdwg.mxu0
  %v2499 = vadd.f32 %v2461, %v2496
  %2500 = vmatpush.bf16.msra.mxu0 0
  %2501 = vmatpush.bf16.msra.mxu0 0
  %2502 = vmatpush.bf16.msra.mxu0 0
  %2503 = vmatpush.bf16.msra.mxu0 0
  %2504 = vmatpush.bf16.msra.mxu0 0
  %2505 = vmatpush.bf16.msra.mxu0 0
  %2506 = vmatpush.bf16.msra.mxu0 %v2308
  %2507 = vmatpush.bf16.msra.mxu0 %v2307
  %2508 = vmatmul.bf16.gmra.mxu0 %v2446
  %v2509 = vpop.f32.mrf.mxu0
  %v2510 = vadd.f32 0.0, %v2509
  %v2511 = vpop.f32.mrf.mxu0
  %2512 = vdwg.mxu0
  %v2513 = vadd.f32 %v2270, %v2510
  %v2514 = vxor.u32 %v2513, 2147483648
  %v2515 = vmul.f32 %v2514, 1.442695
  %v2516 = vpow.pop %v2515
  %v2517 = vadd.f32 %v2516, 1.0
  %v2518 = vrcp.pop %v2517
  %v2519 = vmul.f32 %v2517, %v2518
  %v2520 = vsub.f32 1.0, %v2519
  %v2521 = vmul.f32 %v2518, %v2520
  %v2522 = vadd.f32 %v2518, %v2521
  %vm2523 = vweird.f32 %v2517
  %vm2524 = vweird.f32 %v2518
  %vm2525 = vmor %vm2523, %vm2524
  %v2526 = vsel %vm2525, %v2518, %v2522
  %v2527 = vand.u32 2147483647, %v2517
  %vm2528 = vcmp.eq.f32.partialorder %v2527, 8.507059e+37
  %v2529 = vand.u32 %v2517, 2147483648
  %v2530 = vor.u32 1.1754944e-38, %v2529
  %v2531 = vsel %vm2528, %v2530, %v2526
  %v2532 = vmul.f32 1.0, %v2531
  %v2533 = vtanh.pop %v2513
  %v2534 = vmul.f32 %v2532, %v2355
  %2536 = vrot.lane.b32.xlu0 %v2533, 64
  %v2537 = vpop.permute.xlu0 %2536
  %v2539 = vmul.f32 %v2532, %v2537
  %2541 = vrot.lane.b32.xlu0 %v2539, 32
  %v2542 = vpop.permute.xlu0 %2541
  %v2544 = vadd.f32 %v2534, %v2542
  %v2545 = vtanh.pop %v2544
  %2547 = vrot.lane.b32.xlu0 %v2545, 64
  %v2548 = vpop.permute.xlu0 %2547
  %v2550 = vmul.f32 %v2532, %v2548
  %2551 = vmatpush.bf16.msra.mxu0 0
  %2552 = vmatpush.bf16.msra.mxu0 0
  %2553 = vmatpush.bf16.msra.mxu0 0
  %2554 = vmatpush.bf16.msra.mxu0 0
  %2555 = vmatpush.bf16.msra.mxu0 0
  %2556 = vmatpush.bf16.msra.mxu0 0
  %2557 = vmatpush.bf16.msra.mxu0 %v2371
  %2558 = vmatpush.bf16.msra.mxu0 %v2370
  %2559 = vmatmul.bf16.gmra.mxu0 %v2484
  %v2560 = vpop.f32.mrf.mxu0
  %v2561 = vadd.f32 0.0, %v2560
  %v2562 = vpop.f32.mrf.mxu0
  %2563 = vdwg.mxu0
  %v2564 = vadd.f32 %v2283, %v2561
  %v2565 = vxor.u32 %v2564, 2147483648
  %v2566 = vmul.f32 %v2565, 1.442695
  %v2567 = vpow.pop %v2566
  %v2568 = vadd.f32 %v2567, 1.0
  %v2569 = vrcp.pop %v2568
  %v2570 = vmul.f32 %v2568, %v2569
  %v2571 = vsub.f32 1.0, %v2570
  %v2572 = vmul.f32 %v2569, %v2571
  %v2573 = vadd.f32 %v2569, %v2572
  %vm2574 = vweird.f32 %v2568
  %vm2575 = vweird.f32 %v2569
  %vm2576 = vmor %vm2574, %vm2575
  %v2577 = vsel %vm2576, %v2569, %v2573
  %v2578 = vand.u32 2147483647, %v2568
  %vm2579 = vcmp.eq.f32.partialorder %v2578, 8.507059e+37
  %v2580 = vand.u32 %v2568, 2147483648
  %v2581 = vor.u32 1.1754944e-38, %v2580
  %v2582 = vsel %vm2579, %v2581, %v2577
  %v2583 = vmul.f32 1.0, %v2582
  %v2584 = vtanh.pop %v2564
  %v2585 = vmul.f32 %v2583, %v2418
  %2587 = vrot.lane.b32.xlu0 %v2584, 64
  %v2588 = vpop.permute.xlu0 %2587
  %v2590 = vmul.f32 %v2583, %v2588
  %2592 = vrot.lane.b32.xlu0 %v2590, 32
  %v2593 = vpop.permute.xlu0 %2592
  %v2595 = vadd.f32 %v2585, %v2593
  %v2596 = vtanh.pop %v2595
  %2598 = vrot.lane.b32.xlu0 %v2596, 64
  %v2599 = vpop.permute.xlu0 %2598
  %v2601 = vmul.f32 %v2583, %v2599
  %v2602 = vpack.c.bf16 %v2550, %v2550
  %s2603 = scalar_lea.vmem %s17, 32
  %v2604 = vld [vmem:[%s2603] sm:$0xf]
  %v2605 = vld [vmem:[%s2603 + $0x4] sm:$0xf]
  %v2606 = vld [vmem:[%s2603 + $0x8] sm:$0xf]
  %v2607 = vld [vmem:[%s2603 + $0xc] sm:$0xf]
  %2609 = vrot.lane.b32.xlu0 %v2602, 32
  %v2610 = vpop.permute.xlu0 %2609
  %v2615 = vunpack.c.l.b16 %v2604
  %v2616 = vunpack.c.l.b16 %v2605
  %v2617 = vunpack.c.l.b16 %v2606
  %v2618 = vunpack.c.l.b16 %v2607
  %v2619 = vpack.c.b16 %v2616, %v2615
  %v2620 = vpack.c.b16 %v2618, %v2617
  %v2624 = vsel %vm407, %v2610, 0
  %2626 = vmatpush.bf16.msra.mxu0 0
  %2627 = vmatpush.bf16.msra.mxu0 0
  %2628 = vmatpush.bf16.msra.mxu0 0
  %2629 = vmatpush.bf16.msra.mxu0 0
  %2630 = vmatpush.bf16.msra.mxu0 0
  %2631 = vmatpush.bf16.msra.mxu0 0
  %2632 = vmatpush.bf16.msra.mxu0 %v2620
  %2633 = vmatpush.bf16.msra.mxu0 %v2619
  %2634 = vmatmul.bf16.gmra.mxu0 %v2624
  %v2635 = vpop.f32.mrf.mxu0
  %v2636 = vadd.f32 0.0, %v2635
  %v2637 = vpop.f32.mrf.mxu0
  %2638 = vdwg.mxu0
  %v2639 = vadd.f32 %v2499, %v2636
  %v2640 = vpack.c.bf16 %v2601, %v2601
  %s2641 = scalar_lea.vmem %s17, 240
  %v2642 = vld [vmem:[%s2641] sm:$0xf]
  %v2643 = vld [vmem:[%s2641 + $0x4] sm:$0xf]
  %v2644 = vld [vmem:[%s2641 + $0x8] sm:$0xf]
  %v2645 = vld [vmem:[%s2641 + $0xc] sm:$0xf]
  %2647 = vrot.lane.b32.xlu0 %v2640, 32
  %v2648 = vpop.permute.xlu0 %2647
  %v2653 = vunpack.c.l.b16 %v2642
  %v2654 = vunpack.c.l.b16 %v2643
  %v2655 = vunpack.c.l.b16 %v2644
  %v2656 = vunpack.c.l.b16 %v2645
  %v2657 = vpack.c.b16 %v2654, %v2653
  %v2658 = vpack.c.b16 %v2656, %v2655
  %v2662 = vsel %vm407, %v2648, 0
  %2664 = vmatpush.bf16.msra.mxu0 0
  %2665 = vmatpush.bf16.msra.mxu0 0
  %2666 = vmatpush.bf16.msra.mxu0 0
  %2667 = vmatpush.bf16.msra.mxu0 0
  %2668 = vmatpush.bf16.msra.mxu0 0
  %2669 = vmatpush.bf16.msra.mxu0 0
  %2670 = vmatpush.bf16.msra.mxu0 %v2658
  %2671 = vmatpush.bf16.msra.mxu0 %v2657
  %2672 = vmatmul.bf16.gmra.mxu0 %v2662
  %v2673 = vpop.f32.mrf.mxu0
  %v2674 = vadd.f32 0.0, %v2673
  %v2675 = vpop.f32.mrf.mxu0
  %2676 = vdwg.mxu0
  %v2677 = vadd.f32 %v2639, %v2674
  %2678 = vmatpush.bf16.msra.mxu0 0
  %2679 = vmatpush.bf16.msra.mxu0 0
  %2680 = vmatpush.bf16.msra.mxu0 0
  %2681 = vmatpush.bf16.msra.mxu0 0
  %2682 = vmatpush.bf16.msra.mxu0 0
  %2683 = vmatpush.bf16.msra.mxu0 0
  %2684 = vmatpush.bf16.msra.mxu0 %v2308
  %2685 = vmatpush.bf16.msra.mxu0 %v2307
  %2686 = vmatmul.bf16.gmra.mxu0 %v2624
  %v2687 = vpop.f32.mrf.mxu0
  %v2688 = vadd.f32 0.0, %v2687
  %v2689 = vpop.f32.mrf.mxu0
  %2690 = vdwg.mxu0
  %v2691 = vadd.f32 %v2272, %v2688
  %v2692 = vxor.u32 %v2691, 2147483648
  %v2693 = vmul.f32 %v2692, 1.442695
  %v2694 = vpow.pop %v2693
  %v2695 = vadd.f32 %v2694, 1.0
  %v2696 = vrcp.pop %v2695
  %v2697 = vmul.f32 %v2695, %v2696
  %v2698 = vsub.f32 1.0, %v2697
  %v2699 = vmul.f32 %v2696, %v2698
  %v2700 = vadd.f32 %v2696, %v2699
  %vm2701 = vweird.f32 %v2695
  %vm2702 = vweird.f32 %v2696
  %vm2703 = vmor %vm2701, %vm2702
  %v2704 = vsel %vm2703, %v2696, %v2700
  %v2705 = vand.u32 2147483647, %v2695
  %vm2706 = vcmp.eq.f32.partialorder %v2705, 8.507059e+37
  %v2707 = vand.u32 %v2695, 2147483648
  %v2708 = vor.u32 1.1754944e-38, %v2707
  %v2709 = vsel %vm2706, %v2708, %v2704
  %v2710 = vmul.f32 1.0, %v2709
  %v2711 = vtanh.pop %v2691
  %v2712 = vmul.f32 %v2710, %v2544
  %2714 = vrot.lane.b32.xlu0 %v2711, 64
  %v2715 = vpop.permute.xlu0 %2714
  %v2717 = vmul.f32 %v2710, %v2715
  %2719 = vrot.lane.b32.xlu0 %v2717, 32
  %v2720 = vpop.permute.xlu0 %2719
  %v2722 = vadd.f32 %v2712, %v2720
  %v2723 = vtanh.pop %v2722
  %2725 = vrot.lane.b32.xlu0 %v2723, 64
  %v2726 = vpop.permute.xlu0 %2725
  %v2728 = vmul.f32 %v2710, %v2726
  %2729 = vmatpush.bf16.msra.mxu0 0
  %2730 = vmatpush.bf16.msra.mxu0 0
  %2731 = vmatpush.bf16.msra.mxu0 0
  %2732 = vmatpush.bf16.msra.mxu0 0
  %2733 = vmatpush.bf16.msra.mxu0 0
  %2734 = vmatpush.bf16.msra.mxu0 0
  %2735 = vmatpush.bf16.msra.mxu0 %v2371
  %2736 = vmatpush.bf16.msra.mxu0 %v2370
  %2737 = vmatmul.bf16.gmra.mxu0 %v2662
  %v2738 = vpop.f32.mrf.mxu0
  %v2739 = vadd.f32 0.0, %v2738
  %v2740 = vpop.f32.mrf.mxu0
  %2741 = vdwg.mxu0
  %v2742 = vadd.f32 %v2281, %v2739
  %v2743 = vxor.u32 %v2742, 2147483648
  %v2744 = vmul.f32 %v2743, 1.442695
  %v2745 = vpow.pop %v2744
  %v2746 = vadd.f32 %v2745, 1.0
  %v2747 = vrcp.pop %v2746
  %v2748 = vmul.f32 %v2746, %v2747
  %v2749 = vsub.f32 1.0, %v2748
  %v2750 = vmul.f32 %v2747, %v2749
  %v2751 = vadd.f32 %v2747, %v2750
  %vm2752 = vweird.f32 %v2746
  %vm2753 = vweird.f32 %v2747
  %vm2754 = vmor %vm2752, %vm2753
  %v2755 = vsel %vm2754, %v2747, %v2751
  %v2756 = vand.u32 2147483647, %v2746
  %vm2757 = vcmp.eq.f32.partialorder %v2756, 8.507059e+37
  %v2758 = vand.u32 %v2746, 2147483648
  %v2759 = vor.u32 1.1754944e-38, %v2758
  %v2760 = vsel %vm2757, %v2759, %v2755
  %v2761 = vmul.f32 1.0, %v2760
  %v2762 = vtanh.pop %v2742
  %v2763 = vmul.f32 %v2761, %v2595
  %2765 = vrot.lane.b32.xlu0 %v2762, 64
  %v2766 = vpop.permute.xlu0 %2765
  %v2768 = vmul.f32 %v2761, %v2766
  %2770 = vrot.lane.b32.xlu0 %v2768, 32
  %v2771 = vpop.permute.xlu0 %2770
  %v2773 = vadd.f32 %v2763, %v2771
  %v2774 = vtanh.pop %v2773
  %2776 = vrot.lane.b32.xlu0 %v2774, 64
  %v2777 = vpop.permute.xlu0 %2776
  %v2779 = vmul.f32 %v2761, %v2777
  %v2780 = vpack.c.bf16 %v2728, %v2728
  %s2781 = scalar_lea.vmem %s17, 64
  %v2782 = vld [vmem:[%s2781] sm:$0xf]
  %v2783 = vld [vmem:[%s2781 + $0x4] sm:$0xf]
  %v2784 = vld [vmem:[%s2781 + $0x8] sm:$0xf]
  %v2785 = vld [vmem:[%s2781 + $0xc] sm:$0xf]
  %2787 = vrot.lane.b32.xlu0 %v2780, 32
  %v2788 = vpop.permute.xlu0 %2787
  %v2793 = vunpack.c.l.b16 %v2782
  %v2794 = vunpack.c.l.b16 %v2783
  %v2795 = vunpack.c.l.b16 %v2784
  %v2796 = vunpack.c.l.b16 %v2785
  %v2797 = vpack.c.b16 %v2794, %v2793
  %v2798 = vpack.c.b16 %v2796, %v2795
  %v2802 = vsel %vm407, %v2788, 0
  %2804 = vmatpush.bf16.msra.mxu0 0
  %2805 = vmatpush.bf16.msra.mxu0 0
  %2806 = vmatpush.bf16.msra.mxu0 0
  %2807 = vmatpush.bf16.msra.mxu0 0
  %2808 = vmatpush.bf16.msra.mxu0 0
  %2809 = vmatpush.bf16.msra.mxu0 0
  %2810 = vmatpush.bf16.msra.mxu0 %v2798
  %2811 = vmatpush.bf16.msra.mxu0 %v2797
  %2812 = vmatmul.bf16.gmra.mxu0 %v2802
  %v2813 = vpop.f32.mrf.mxu0
  %v2814 = vadd.f32 0.0, %v2813
  %v2815 = vpop.f32.mrf.mxu0
  %2816 = vdwg.mxu0
  %v2817 = vadd.f32 %v2677, %v2814
  %v2818 = vpack.c.bf16 %v2779, %v2779
  %s2819 = scalar_lea.vmem %s17, 208
  %v2820 = vld [vmem:[%s2819] sm:$0xf]
  %v2821 = vld [vmem:[%s2819 + $0x4] sm:$0xf]
  %v2822 = vld [vmem:[%s2819 + $0x8] sm:$0xf]
  %v2823 = vld [vmem:[%s2819 + $0xc] sm:$0xf]
  %2825 = vrot.lane.b32.xlu0 %v2818, 32
  %v2826 = vpop.permute.xlu0 %2825
  %v2831 = vunpack.c.l.b16 %v2820
  %v2832 = vunpack.c.l.b16 %v2821
  %v2833 = vunpack.c.l.b16 %v2822
  %v2834 = vunpack.c.l.b16 %v2823
  %v2835 = vpack.c.b16 %v2832, %v2831
  %v2836 = vpack.c.b16 %v2834, %v2833
  %v2840 = vsel %vm407, %v2826, 0
  %2842 = vmatpush.bf16.msra.mxu0 0
  %2843 = vmatpush.bf16.msra.mxu0 0
  %2844 = vmatpush.bf16.msra.mxu0 0
  %2845 = vmatpush.bf16.msra.mxu0 0
  %2846 = vmatpush.bf16.msra.mxu0 0
  %2847 = vmatpush.bf16.msra.mxu0 0
  %2848 = vmatpush.bf16.msra.mxu0 %v2836
  %2849 = vmatpush.bf16.msra.mxu0 %v2835
  %2850 = vmatmul.bf16.gmra.mxu0 %v2840
  %v2851 = vpop.f32.mrf.mxu0
  %v2852 = vadd.f32 0.0, %v2851
  %v2853 = vpop.f32.mrf.mxu0
  %2854 = vdwg.mxu0
  %v2855 = vadd.f32 %v2817, %v2852
  %2856 = vmatpush.bf16.msra.mxu0 0
  %2857 = vmatpush.bf16.msra.mxu0 0
  %2858 = vmatpush.bf16.msra.mxu0 0
  %2859 = vmatpush.bf16.msra.mxu0 0
  %2860 = vmatpush.bf16.msra.mxu0 0
  %2861 = vmatpush.bf16.msra.mxu0 0
  %2862 = vmatpush.bf16.msra.mxu0 %v2308
  %2863 = vmatpush.bf16.msra.mxu0 %v2307
  %2864 = vmatmul.bf16.gmra.mxu0 %v2802
  %v2865 = vpop.f32.mrf.mxu0
  %v2866 = vadd.f32 0.0, %v2865
  %v2867 = vpop.f32.mrf.mxu0
  %2868 = vdwg.mxu0
  %v2869 = vadd.f32 %v2274, %v2866
  %v2870 = vxor.u32 %v2869, 2147483648
  %v2871 = vmul.f32 %v2870, 1.442695
  %v2872 = vpow.pop %v2871
  %v2873 = vadd.f32 %v2872, 1.0
  %v2874 = vrcp.pop %v2873
  %v2875 = vmul.f32 %v2873, %v2874
  %v2876 = vsub.f32 1.0, %v2875
  %v2877 = vmul.f32 %v2874, %v2876
  %v2878 = vadd.f32 %v2874, %v2877
  %vm2879 = vweird.f32 %v2873
  %vm2880 = vweird.f32 %v2874
  %vm2881 = vmor %vm2879, %vm2880
  %v2882 = vsel %vm2881, %v2874, %v2878
  %v2883 = vand.u32 2147483647, %v2873
  %vm2884 = vcmp.eq.f32.partialorder %v2883, 8.507059e+37
  %v2885 = vand.u32 %v2873, 2147483648
  %v2886 = vor.u32 1.1754944e-38, %v2885
  %v2887 = vsel %vm2884, %v2886, %v2882
  %v2888 = vmul.f32 1.0, %v2887
  %v2889 = vtanh.pop %v2869
  %v2890 = vmul.f32 %v2888, %v2722
  %2892 = vrot.lane.b32.xlu0 %v2889, 64
  %v2893 = vpop.permute.xlu0 %2892
  %v2895 = vmul.f32 %v2888, %v2893
  %2897 = vrot.lane.b32.xlu0 %v2895, 32
  %v2898 = vpop.permute.xlu0 %2897
  %v2900 = vadd.f32 %v2890, %v2898
  %v2901 = vtanh.pop %v2900
  %2903 = vrot.lane.b32.xlu0 %v2901, 64
  %v2904 = vpop.permute.xlu0 %2903
  %v2906 = vmul.f32 %v2888, %v2904
  %2907 = vmatpush.bf16.msra.mxu0 0
  %2908 = vmatpush.bf16.msra.mxu0 0
  %2909 = vmatpush.bf16.msra.mxu0 0
  %2910 = vmatpush.bf16.msra.mxu0 0
  %2911 = vmatpush.bf16.msra.mxu0 0
  %2912 = vmatpush.bf16.msra.mxu0 0
  %2913 = vmatpush.bf16.msra.mxu0 %v2371
  %2914 = vmatpush.bf16.msra.mxu0 %v2370
  %2915 = vmatmul.bf16.gmra.mxu0 %v2840
  %v2916 = vpop.f32.mrf.mxu0
  %v2917 = vadd.f32 0.0, %v2916
  %v2918 = vpop.f32.mrf.mxu0
  %2919 = vdwg.mxu0
  %v2920 = vadd.f32 %v2279, %v2917
  %v2921 = vxor.u32 %v2920, 2147483648
  %v2922 = vmul.f32 %v2921, 1.442695
  %v2923 = vpow.pop %v2922
  %v2924 = vadd.f32 %v2923, 1.0
  %v2925 = vrcp.pop %v2924
  %v2926 = vmul.f32 %v2924, %v2925
  %v2927 = vsub.f32 1.0, %v2926
  %v2928 = vmul.f32 %v2925, %v2927
  %v2929 = vadd.f32 %v2925, %v2928
  %vm2930 = vweird.f32 %v2924
  %vm2931 = vweird.f32 %v2925
  %vm2932 = vmor %vm2930, %vm2931
  %v2933 = vsel %vm2932, %v2925, %v2929
  %v2934 = vand.u32 2147483647, %v2924
  %vm2935 = vcmp.eq.f32.partialorder %v2934, 8.507059e+37
  %v2936 = vand.u32 %v2924, 2147483648
  %v2937 = vor.u32 1.1754944e-38, %v2936
  %v2938 = vsel %vm2935, %v2937, %v2933
  %v2939 = vmul.f32 1.0, %v2938
  %v2940 = vtanh.pop %v2920
  %v2941 = vmul.f32 %v2939, %v2773
  %2943 = vrot.lane.b32.xlu0 %v2940, 64
  %v2944 = vpop.permute.xlu0 %2943
  %v2946 = vmul.f32 %v2939, %v2944
  %2948 = vrot.lane.b32.xlu0 %v2946, 32
  %v2949 = vpop.permute.xlu0 %2948
  %v2951 = vadd.f32 %v2941, %v2949
  %v2952 = vtanh.pop %v2951
  %2954 = vrot.lane.b32.xlu0 %v2952, 64
  %v2955 = vpop.permute.xlu0 %2954
  %v2957 = vmul.f32 %v2939, %v2955
  %v2958 = vpack.c.bf16 %v2906, %v2906
  %s2959 = scalar_lea.vmem %s17, 96
  %v2960 = vld [vmem:[%s2959] sm:$0xf]
  %v2961 = vld [vmem:[%s2959 + $0x4] sm:$0xf]
  %v2962 = vld [vmem:[%s2959 + $0x8] sm:$0xf]
  %v2963 = vld [vmem:[%s2959 + $0xc] sm:$0xf]
  %2965 = vrot.lane.b32.xlu0 %v2958, 32
  %v2966 = vpop.permute.xlu0 %2965
  %v2971 = vunpack.c.l.b16 %v2960
  %v2972 = vunpack.c.l.b16 %v2961
  %v2973 = vunpack.c.l.b16 %v2962
  %v2974 = vunpack.c.l.b16 %v2963
  %v2975 = vpack.c.b16 %v2972, %v2971
  %v2976 = vpack.c.b16 %v2974, %v2973
  %v2980 = vsel %vm407, %v2966, 0
  %2982 = vmatpush.bf16.msra.mxu0 0
  %2983 = vmatpush.bf16.msra.mxu0 0
  %2984 = vmatpush.bf16.msra.mxu0 0
  %2985 = vmatpush.bf16.msra.mxu0 0
  %2986 = vmatpush.bf16.msra.mxu0 0
  %2987 = vmatpush.bf16.msra.mxu0 0
  %2988 = vmatpush.bf16.msra.mxu0 %v2976
  %2989 = vmatpush.bf16.msra.mxu0 %v2975
  %2990 = vmatmul.bf16.gmra.mxu0 %v2980
  %v2991 = vpop.f32.mrf.mxu0
  %v2992 = vadd.f32 0.0, %v2991
  %v2993 = vpop.f32.mrf.mxu0
  %2994 = vdwg.mxu0
  %v2995 = vadd.f32 %v2855, %v2992
  %v2996 = vpack.c.bf16 %v2957, %v2957
  %s2997 = scalar_lea.vmem %s17, 176
  %v2998 = vld [vmem:[%s2997] sm:$0xf]
  %v2999 = vld [vmem:[%s2997 + $0x4] sm:$0xf]
  %v3000 = vld [vmem:[%s2997 + $0x8] sm:$0xf]
  %v3001 = vld [vmem:[%s2997 + $0xc] sm:$0xf]
  %3003 = vrot.lane.b32.xlu0 %v2996, 32
  %v3004 = vpop.permute.xlu0 %3003
  %v3009 = vunpack.c.l.b16 %v2998
  %v3010 = vunpack.c.l.b16 %v2999
  %v3011 = vunpack.c.l.b16 %v3000
  %v3012 = vunpack.c.l.b16 %v3001
  %v3013 = vpack.c.b16 %v3010, %v3009
  %v3014 = vpack.c.b16 %v3012, %v3011
  %v3018 = vsel %vm407, %v3004, 0
  %3020 = vmatpush.bf16.msra.mxu0 0
  %3021 = vmatpush.bf16.msra.mxu0 0
  %3022 = vmatpush.bf16.msra.mxu0 0
  %3023 = vmatpush.bf16.msra.mxu0 0
  %3024 = vmatpush.bf16.msra.mxu0 0
  %3025 = vmatpush.bf16.msra.mxu0 0
  %3026 = vmatpush.bf16.msra.mxu0 %v3014
  %3027 = vmatpush.bf16.msra.mxu0 %v3013
  %3028 = vmatmul.bf16.gmra.mxu0 %v3018
  %v3029 = vpop.f32.mrf.mxu0
  %v3030 = vadd.f32 0.0, %v3029
  %v3031 = vpop.f32.mrf.mxu0
  %3032 = vdwg.mxu0
  %v3033 = vadd.f32 %v2995, %v3030
  %3034 = vmatpush.bf16.msra.mxu0 0
  %3035 = vmatpush.bf16.msra.mxu0 0
  %3036 = vmatpush.bf16.msra.mxu0 0
  %3037 = vmatpush.bf16.msra.mxu0 0
  %3038 = vmatpush.bf16.msra.mxu0 0
  %3039 = vmatpush.bf16.msra.mxu0 0
  %3040 = vmatpush.bf16.msra.mxu0 %v2308
  %3041 = vmatpush.bf16.msra.mxu0 %v2307
  %3042 = vmatmul.bf16.gmra.mxu0 %v2980
  %v3043 = vpop.f32.mrf.mxu0
  %v3044 = vadd.f32 0.0, %v3043
  %v3045 = vpop.f32.mrf.mxu0
  %3046 = vdwg.mxu0
  %v3047 = vadd.f32 %v2276, %v3044
  %v3048 = vxor.u32 %v3047, 2147483648
  %v3049 = vmul.f32 %v3048, 1.442695
  %v3050 = vpow.pop %v3049
  %v3051 = vadd.f32 %v3050, 1.0
  %v3052 = vrcp.pop %v3051
  %v3053 = vmul.f32 %v3051, %v3052
  %v3054 = vsub.f32 1.0, %v3053
  %v3055 = vmul.f32 %v3052, %v3054
  %v3056 = vadd.f32 %v3052, %v3055
  %vm3057 = vweird.f32 %v3051
  %vm3058 = vweird.f32 %v3052
  %vm3059 = vmor %vm3057, %vm3058
  %v3060 = vsel %vm3059, %v3052, %v3056
  %v3061 = vand.u32 2147483647, %v3051
  %vm3062 = vcmp.eq.f32.partialorder %v3061, 8.507059e+37
  %v3063 = vand.u32 %v3051, 2147483648
  %v3064 = vor.u32 1.1754944e-38, %v3063
  %v3065 = vsel %vm3062, %v3064, %v3060
  %v3066 = vmul.f32 1.0, %v3065
  %v3067 = vtanh.pop %v3047
  %v3068 = vmul.f32 %v3066, %v2900
  %3070 = vrot.lane.b32.xlu0 %v3067, 64
  %v3071 = vpop.permute.xlu0 %3070
  %v3073 = vmul.f32 %v3066, %v3071
  %3075 = vrot.lane.b32.xlu0 %v3073, 32
  %v3076 = vpop.permute.xlu0 %3075
  %v3078 = vadd.f32 %v3068, %v3076
  %v3079 = vtanh.pop %v3078
  %3081 = vrot.lane.b32.xlu0 %v3079, 64
  %v3082 = vpop.permute.xlu0 %3081
  %v3084 = vmul.f32 %v3066, %v3082
  %3085 = vmatpush.bf16.msra.mxu0 0
  %3086 = vmatpush.bf16.msra.mxu0 0
  %3087 = vmatpush.bf16.msra.mxu0 0
  %3088 = vmatpush.bf16.msra.mxu0 0
  %3089 = vmatpush.bf16.msra.mxu0 0
  %3090 = vmatpush.bf16.msra.mxu0 0
  %3091 = vmatpush.bf16.msra.mxu0 %v2371
  %3092 = vmatpush.bf16.msra.mxu0 %v2370
  %3093 = vmatmul.bf16.gmra.mxu0 %v3018
  %v3094 = vpop.f32.mrf.mxu0
  %v3095 = vadd.f32 0.0, %v3094
  %v3096 = vpop.f32.mrf.mxu0
  %3097 = vdwg.mxu0
  %v3098 = vadd.f32 %v2277, %v3095
  %v3099 = vxor.u32 %v3098, 2147483648
  %v3100 = vmul.f32 %v3099, 1.442695
  %v3101 = vpow.pop %v3100
  %v3102 = vadd.f32 %v3101, 1.0
  %v3103 = vrcp.pop %v3102
  %v3104 = vmul.f32 %v3102, %v3103
  %v3105 = vsub.f32 1.0, %v3104
  %v3106 = vmul.f32 %v3103, %v3105
  %v3107 = vadd.f32 %v3103, %v3106
  %vm3108 = vweird.f32 %v3102
  %vm3109 = vweird.f32 %v3103
  %vm3110 = vmor %vm3108, %vm3109
  %v3111 = vsel %vm3110, %v3103, %v3107
  %v3112 = vand.u32 2147483647, %v3102
  %vm3113 = vcmp.eq.f32.partialorder %v3112, 8.507059e+37
  %v3114 = vand.u32 %v3102, 2147483648
  %v3115 = vor.u32 1.1754944e-38, %v3114
  %v3116 = vsel %vm3113, %v3115, %v3111
  %v3117 = vmul.f32 1.0, %v3116
  %v3118 = vtanh.pop %v3098
  %v3119 = vmul.f32 %v3117, %v2951
  %3121 = vrot.lane.b32.xlu0 %v3118, 64
  %v3122 = vpop.permute.xlu0 %3121
  %v3124 = vmul.f32 %v3117, %v3122
  %3126 = vrot.lane.b32.xlu0 %v3124, 32
  %v3127 = vpop.permute.xlu0 %3126
  %v3129 = vadd.f32 %v3119, %v3127
  %v3130 = vtanh.pop %v3129
  %3132 = vrot.lane.b32.xlu0 %v3130, 64
  %v3133 = vpop.permute.xlu0 %3132
  %v3135 = vmul.f32 %v3117, %v3133
  %v3136 = vpack.c.bf16 %v3084, %v3084
  %s3137 = scalar_lea.vmem %s17, 128
  %v3138 = vld [vmem:[%s3137] sm:$0xf]
  %v3139 = vld [vmem:[%s3137 + $0x4] sm:$0xf]
  %v3140 = vld [vmem:[%s3137 + $0x8] sm:$0xf]
  %v3141 = vld [vmem:[%s3137 + $0xc] sm:$0xf]
  %3143 = vrot.lane.b32.xlu0 %v3136, 32
  %v3144 = vpop.permute.xlu0 %3143
  %v3149 = vunpack.c.l.b16 %v3138
  %v3150 = vunpack.c.l.b16 %v3139
  %v3151 = vunpack.c.l.b16 %v3140
  %v3152 = vunpack.c.l.b16 %v3141
  %v3153 = vpack.c.b16 %v3150, %v3149
  %v3154 = vpack.c.b16 %v3152, %v3151
  %v3158 = vsel %vm407, %v3144, 0
  %3160 = vmatpush.bf16.msra.mxu0 0
  %3161 = vmatpush.bf16.msra.mxu0 0
  %3162 = vmatpush.bf16.msra.mxu0 0
  %3163 = vmatpush.bf16.msra.mxu0 0
  %3164 = vmatpush.bf16.msra.mxu0 0
  %3165 = vmatpush.bf16.msra.mxu0 0
  %3166 = vmatpush.bf16.msra.mxu0 %v3154
  %3167 = vmatpush.bf16.msra.mxu0 %v3153
  %3168 = vmatmul.bf16.gmra.mxu0 %v3158
  %v3169 = vpop.f32.mrf.mxu0
  %v3170 = vadd.f32 0.0, %v3169
  %v3171 = vpop.f32.mrf.mxu0
  %3172 = vdwg.mxu0
  %v3173 = vadd.f32 %v3033, %v3170
  %v3174 = vpack.c.bf16 %v3135, %v3135
  %s3175 = scalar_lea.vmem %s17, 144
  %v3176 = vld [vmem:[%s3175] sm:$0xf]
  %v3177 = vld [vmem:[%s3175 + $0x4] sm:$0xf]
  %v3178 = vld [vmem:[%s3175 + $0x8] sm:$0xf]
  %v3179 = vld [vmem:[%s3175 + $0xc] sm:$0xf]
  %3181 = vrot.lane.b32.xlu0 %v3174, 32
  %v3182 = vpop.permute.xlu0 %3181
  %v3187 = vunpack.c.l.b16 %v3176
  %v3188 = vunpack.c.l.b16 %v3177
  %v3189 = vunpack.c.l.b16 %v3178
  %v3190 = vunpack.c.l.b16 %v3179
  %v3191 = vpack.c.b16 %v3188, %v3187
  %v3192 = vpack.c.b16 %v3190, %v3189
  %v3196 = vsel %vm407, %v3182, 0
  %3198 = vmatpush.bf16.msra.mxu0 0
  %3199 = vmatpush.bf16.msra.mxu0 0
  %3200 = vmatpush.bf16.msra.mxu0 0
  %3201 = vmatpush.bf16.msra.mxu0 0
  %3202 = vmatpush.bf16.msra.mxu0 0
  %3203 = vmatpush.bf16.msra.mxu0 0
  %3204 = vmatpush.bf16.msra.mxu0 %v3192
  %3205 = vmatpush.bf16.msra.mxu0 %v3191
  %3206 = vmatmul.bf16.gmra.mxu0 %v3196
  %v3207 = vpop.f32.mrf.mxu0
  %v3208 = vadd.f32 0.0, %v3207
  %v3209 = vpop.f32.mrf.mxu0
  %3210 = vdwg.mxu0
  %v3211 = vadd.f32 %v3173, %v3208
  %3212 = vmatpush.bf16.msra.mxu0 0
  %3213 = vmatpush.bf16.msra.mxu0 0
  %3214 = vmatpush.bf16.msra.mxu0 0
  %3215 = vmatpush.bf16.msra.mxu0 0
  %3216 = vmatpush.bf16.msra.mxu0 0
  %3217 = vmatpush.bf16.msra.mxu0 0
  %3218 = vmatpush.bf16.msra.mxu0 %v2308
  %3219 = vmatpush.bf16.msra.mxu0 %v2307
  %3220 = vmatmul.bf16.gmra.mxu0 %v3158
  %v3221 = vpop.f32.mrf.mxu0
  %v3222 = vadd.f32 0.0, %v3221
  %v3223 = vpop.f32.mrf.mxu0
  %3224 = vdwg.mxu0
  %v3225 = vadd.f32 %v2278, %v3222
  %v3226 = vxor.u32 %v3225, 2147483648
  %v3227 = vmul.f32 %v3226, 1.442695
  %v3228 = vpow.pop %v3227
  %v3229 = vadd.f32 %v3228, 1.0
  %v3230 = vrcp.pop %v3229
  %v3231 = vmul.f32 %v3229, %v3230
  %v3232 = vsub.f32 1.0, %v3231
  %v3233 = vmul.f32 %v3230, %v3232
  %v3234 = vadd.f32 %v3230, %v3233
  %vm3235 = vweird.f32 %v3229
  %vm3236 = vweird.f32 %v3230
  %vm3237 = vmor %vm3235, %vm3236
  %v3238 = vsel %vm3237, %v3230, %v3234
  %v3239 = vand.u32 2147483647, %v3229
  %vm3240 = vcmp.eq.f32.partialorder %v3239, 8.507059e+37
  %v3241 = vand.u32 %v3229, 2147483648
  %v3242 = vor.u32 1.1754944e-38, %v3241
  %v3243 = vsel %vm3240, %v3242, %v3238
  %v3244 = vmul.f32 1.0, %v3243
  %v3245 = vtanh.pop %v3225
  %v3246 = vmul.f32 %v3244, %v3078
  %3248 = vrot.lane.b32.xlu0 %v3245, 64
  %v3249 = vpop.permute.xlu0 %3248
  %v3251 = vmul.f32 %v3244, %v3249
  %3253 = vrot.lane.b32.xlu0 %v3251, 32
  %v3254 = vpop.permute.xlu0 %3253
  %v3256 = vadd.f32 %v3246, %v3254
  %v3257 = vtanh.pop %v3256
  %3259 = vrot.lane.b32.xlu0 %v3257, 64
  %v3260 = vpop.permute.xlu0 %3259
  %v3262 = vmul.f32 %v3244, %v3260
  %3263 = vmatpush.bf16.msra.mxu0 0
  %3264 = vmatpush.bf16.msra.mxu0 0
  %3265 = vmatpush.bf16.msra.mxu0 0
  %3266 = vmatpush.bf16.msra.mxu0 0
  %3267 = vmatpush.bf16.msra.mxu0 0
  %3268 = vmatpush.bf16.msra.mxu0 0
  %3269 = vmatpush.bf16.msra.mxu0 %v2371
  %3270 = vmatpush.bf16.msra.mxu0 %v2370
  %3271 = vmatmul.bf16.gmra.mxu0 %v3196
  %v3272 = vpop.f32.mrf.mxu0
  %v3273 = vadd.f32 0.0, %v3272
  %v3274 = vpop.f32.mrf.mxu0
  %3275 = vdwg.mxu0
  %v3276 = vadd.f32 %v2275, %v3273
  %v3277 = vxor.u32 %v3276, 2147483648
  %v3278 = vmul.f32 %v3277, 1.442695
  %v3279 = vpow.pop %v3278
  %v3280 = vadd.f32 %v3279, 1.0
  %v3281 = vrcp.pop %v3280
  %v3282 = vmul.f32 %v3280, %v3281
  %v3283 = vsub.f32 1.0, %v3282
  %v3284 = vmul.f32 %v3281, %v3283
  %v3285 = vadd.f32 %v3281, %v3284
  %vm3286 = vweird.f32 %v3280
  %vm3287 = vweird.f32 %v3281
  %vm3288 = vmor %vm3286, %vm3287
  %v3289 = vsel %vm3288, %v3281, %v3285
  %v3290 = vand.u32 2147483647, %v3280
  %vm3291 = vcmp.eq.f32.partialorder %v3290, 8.507059e+37
  %v3292 = vand.u32 %v3280, 2147483648
  %v3293 = vor.u32 1.1754944e-38, %v3292
  %v3294 = vsel %vm3291, %v3293, %v3289
  %v3295 = vmul.f32 1.0, %v3294
  %v3296 = vtanh.pop %v3276
  %v3297 = vmul.f32 %v3295, %v3129
  %3299 = vrot.lane.b32.xlu0 %v3296, 64
  %v3300 = vpop.permute.xlu0 %3299
  %v3302 = vmul.f32 %v3295, %v3300
  %3304 = vrot.lane.b32.xlu0 %v3302, 32
  %v3305 = vpop.permute.xlu0 %3304
  %v3307 = vadd.f32 %v3297, %v3305
  %v3308 = vtanh.pop %v3307
  %3310 = vrot.lane.b32.xlu0 %v3308, 64
  %v3311 = vpop.permute.xlu0 %3310
  %v3313 = vmul.f32 %v3295, %v3311
  %v3314 = vpack.c.bf16 %v3262, %v3262
  %s3315 = scalar_lea.vmem %s17, 160
  %v3316 = vld [vmem:[%s3315] sm:$0xf]
  %v3317 = vld [vmem:[%s3315 + $0x4] sm:$0xf]
  %v3318 = vld [vmem:[%s3315 + $0x8] sm:$0xf]
  %v3319 = vld [vmem:[%s3315 + $0xc] sm:$0xf]
  %3321 = vrot.lane.b32.xlu0 %v3314, 32
  %v3322 = vpop.permute.xlu0 %3321
  %v3327 = vunpack.c.l.b16 %v3316
  %v3328 = vunpack.c.l.b16 %v3317
  %v3329 = vunpack.c.l.b16 %v3318
  %v3330 = vunpack.c.l.b16 %v3319
  %v3331 = vpack.c.b16 %v3328, %v3327
  %v3332 = vpack.c.b16 %v3330, %v3329
  %v3336 = vsel %vm407, %v3322, 0
  %3338 = vmatpush.bf16.msra.mxu0 0
  %3339 = vmatpush.bf16.msra.mxu0 0
  %3340 = vmatpush.bf16.msra.mxu0 0
  %3341 = vmatpush.bf16.msra.mxu0 0
  %3342 = vmatpush.bf16.msra.mxu0 0
  %3343 = vmatpush.bf16.msra.mxu0 0
  %3344 = vmatpush.bf16.msra.mxu0 %v3332
  %3345 = vmatpush.bf16.msra.mxu0 %v3331
  %3346 = vmatmul.bf16.gmra.mxu0 %v3336
  %v3347 = vpop.f32.mrf.mxu0
  %v3348 = vadd.f32 0.0, %v3347
  %v3349 = vpop.f32.mrf.mxu0
  %3350 = vdwg.mxu0
  %v3351 = vadd.f32 %v3211, %v3348
  %v3352 = vpack.c.bf16 %v3313, %v3313
  %s3353 = scalar_lea.vmem %s17, 112
  %v3354 = vld [vmem:[%s3353] sm:$0xf]
  %v3355 = vld [vmem:[%s3353 + $0x4] sm:$0xf]
  %v3356 = vld [vmem:[%s3353 + $0x8] sm:$0xf]
  %v3357 = vld [vmem:[%s3353 + $0xc] sm:$0xf]
  %3359 = vrot.lane.b32.xlu0 %v3352, 32
  %v3360 = vpop.permute.xlu0 %3359
  %v3365 = vunpack.c.l.b16 %v3354
  %v3366 = vunpack.c.l.b16 %v3355
  %v3367 = vunpack.c.l.b16 %v3356
  %v3368 = vunpack.c.l.b16 %v3357
  %v3369 = vpack.c.b16 %v3366, %v3365
  %v3370 = vpack.c.b16 %v3368, %v3367
  %v3374 = vsel %vm407, %v3360, 0
  %3376 = vmatpush.bf16.msra.mxu0 0
  %3377 = vmatpush.bf16.msra.mxu0 0
  %3378 = vmatpush.bf16.msra.mxu0 0
  %3379 = vmatpush.bf16.msra.mxu0 0
  %3380 = vmatpush.bf16.msra.mxu0 0
  %3381 = vmatpush.bf16.msra.mxu0 0
  %3382 = vmatpush.bf16.msra.mxu0 %v3370
  %3383 = vmatpush.bf16.msra.mxu0 %v3369
  %3384 = vmatmul.bf16.gmra.mxu0 %v3374
  %v3385 = vpop.f32.mrf.mxu0
  %v3386 = vadd.f32 0.0, %v3385
  %v3387 = vpop.f32.mrf.mxu0
  %3388 = vdwg.mxu0
  %v3389 = vadd.f32 %v3351, %v3386
  %3390 = vmatpush.bf16.msra.mxu0 0
  %3391 = vmatpush.bf16.msra.mxu0 0
  %3392 = vmatpush.bf16.msra.mxu0 0
  %3393 = vmatpush.bf16.msra.mxu0 0
  %3394 = vmatpush.bf16.msra.mxu0 0
  %3395 = vmatpush.bf16.msra.mxu0 0
  %3396 = vmatpush.bf16.msra.mxu0 %v2308
  %3397 = vmatpush.bf16.msra.mxu0 %v2307
  %3398 = vmatmul.bf16.gmra.mxu0 %v3336
  %v3399 = vpop.f32.mrf.mxu0
  %v3400 = vadd.f32 0.0, %v3399
  %v3401 = vpop.f32.mrf.mxu0
  %3402 = vdwg.mxu0
  %v3403 = vadd.f32 %v2280, %v3400
  %v3404 = vxor.u32 %v3403, 2147483648
  %v3405 = vmul.f32 %v3404, 1.442695
  %v3406 = vpow.pop %v3405
  %v3407 = vadd.f32 %v3406, 1.0
  %v3408 = vrcp.pop %v3407
  %v3409 = vmul.f32 %v3407, %v3408
  %v3410 = vsub.f32 1.0, %v3409
  %v3411 = vmul.f32 %v3408, %v3410
  %v3412 = vadd.f32 %v3408, %v3411
  %vm3413 = vweird.f32 %v3407
  %vm3414 = vweird.f32 %v3408
  %vm3415 = vmor %vm3413, %vm3414
  %v3416 = vsel %vm3415, %v3408, %v3412
  %v3417 = vand.u32 2147483647, %v3407
  %vm3418 = vcmp.eq.f32.partialorder %v3417, 8.507059e+37
  %v3419 = vand.u32 %v3407, 2147483648
  %v3420 = vor.u32 1.1754944e-38, %v3419
  %v3421 = vsel %vm3418, %v3420, %v3416
  %v3422 = vmul.f32 1.0, %v3421
  %v3423 = vtanh.pop %v3403
  %v3424 = vmul.f32 %v3422, %v3256
  %3426 = vrot.lane.b32.xlu0 %v3423, 64
  %v3427 = vpop.permute.xlu0 %3426
  %v3429 = vmul.f32 %v3422, %v3427
  %3431 = vrot.lane.b32.xlu0 %v3429, 32
  %v3432 = vpop.permute.xlu0 %3431
  %v3434 = vadd.f32 %v3424, %v3432
  %v3435 = vtanh.pop %v3434
  %3437 = vrot.lane.b32.xlu0 %v3435, 64
  %v3438 = vpop.permute.xlu0 %3437
  %v3440 = vmul.f32 %v3422, %v3438
  %3441 = vmatpush.bf16.msra.mxu0 0
  %3442 = vmatpush.bf16.msra.mxu0 0
  %3443 = vmatpush.bf16.msra.mxu0 0
  %3444 = vmatpush.bf16.msra.mxu0 0
  %3445 = vmatpush.bf16.msra.mxu0 0
  %3446 = vmatpush.bf16.msra.mxu0 0
  %3447 = vmatpush.bf16.msra.mxu0 %v2371
  %3448 = vmatpush.bf16.msra.mxu0 %v2370
  %3449 = vmatmul.bf16.gmra.mxu0 %v3374
  %v3450 = vpop.f32.mrf.mxu0
  %v3451 = vadd.f32 0.0, %v3450
  %v3452 = vpop.f32.mrf.mxu0
  %3453 = vdwg.mxu0
  %v3454 = vadd.f32 %v2273, %v3451
  %v3455 = vxor.u32 %v3454, 2147483648
  %v3456 = vmul.f32 %v3455, 1.442695
  %v3457 = vpow.pop %v3456
  %v3458 = vadd.f32 %v3457, 1.0
  %v3459 = vrcp.pop %v3458
  %v3460 = vmul.f32 %v3458, %v3459
  %v3461 = vsub.f32 1.0, %v3460
  %v3462 = vmul.f32 %v3459, %v3461
  %v3463 = vadd.f32 %v3459, %v3462
  %vm3464 = vweird.f32 %v3458
  %vm3465 = vweird.f32 %v3459
  %vm3466 = vmor %vm3464, %vm3465
  %v3467 = vsel %vm3466, %v3459, %v3463
  %v3468 = vand.u32 2147483647, %v3458
  %vm3469 = vcmp.eq.f32.partialorder %v3468, 8.507059e+37
  %v3470 = vand.u32 %v3458, 2147483648
  %v3471 = vor.u32 1.1754944e-38, %v3470
  %v3472 = vsel %vm3469, %v3471, %v3467
  %v3473 = vmul.f32 1.0, %v3472
  %v3474 = vtanh.pop %v3454
  %v3475 = vmul.f32 %v3473, %v3307
  %3477 = vrot.lane.b32.xlu0 %v3474, 64
  %v3478 = vpop.permute.xlu0 %3477
  %v3480 = vmul.f32 %v3473, %v3478
  %3482 = vrot.lane.b32.xlu0 %v3480, 32
  %v3483 = vpop.permute.xlu0 %3482
  %v3485 = vadd.f32 %v3475, %v3483
  %v3486 = vtanh.pop %v3485
  %3488 = vrot.lane.b32.xlu0 %v3486, 64
  %v3489 = vpop.permute.xlu0 %3488
  %v3491 = vmul.f32 %v3473, %v3489
  %v3492 = vpack.c.bf16 %v3440, %v3440
  %s3493 = scalar_lea.vmem %s17, 192
  %v3494 = vld [vmem:[%s3493] sm:$0xf]
  %v3495 = vld [vmem:[%s3493 + $0x4] sm:$0xf]
  %v3496 = vld [vmem:[%s3493 + $0x8] sm:$0xf]
  %v3497 = vld [vmem:[%s3493 + $0xc] sm:$0xf]
  %3499 = vrot.lane.b32.xlu0 %v3492, 32
  %v3500 = vpop.permute.xlu0 %3499
  %v3505 = vunpack.c.l.b16 %v3494
  %v3506 = vunpack.c.l.b16 %v3495
  %v3507 = vunpack.c.l.b16 %v3496
  %v3508 = vunpack.c.l.b16 %v3497
  %v3509 = vpack.c.b16 %v3506, %v3505
  %v3510 = vpack.c.b16 %v3508, %v3507
  %v3514 = vsel %vm407, %v3500, 0
  %3516 = vmatpush.bf16.msra.mxu0 0
  %3517 = vmatpush.bf16.msra.mxu0 0
  %3518 = vmatpush.bf16.msra.mxu0 0
  %3519 = vmatpush.bf16.msra.mxu0 0
  %3520 = vmatpush.bf16.msra.mxu0 0
  %3521 = vmatpush.bf16.msra.mxu0 0
  %3522 = vmatpush.bf16.msra.mxu0 %v3510
  %3523 = vmatpush.bf16.msra.mxu0 %v3509
  %3524 = vmatmul.bf16.gmra.mxu0 %v3514
  %v3525 = vpop.f32.mrf.mxu0
  %v3526 = vadd.f32 0.0, %v3525
  %v3527 = vpop.f32.mrf.mxu0
  %3528 = vdwg.mxu0
  %v3529 = vadd.f32 %v3389, %v3526
  %v3530 = vpack.c.bf16 %v3491, %v3491
  %s3531 = scalar_lea.vmem %s17, 80
  %v3532 = vld [vmem:[%s3531] sm:$0xf]
  %v3533 = vld [vmem:[%s3531 + $0x4] sm:$0xf]
  %v3534 = vld [vmem:[%s3531 + $0x8] sm:$0xf]
  %v3535 = vld [vmem:[%s3531 + $0xc] sm:$0xf]
  %3537 = vrot.lane.b32.xlu0 %v3530, 32
  %v3538 = vpop.permute.xlu0 %3537
  %v3543 = vunpack.c.l.b16 %v3532
  %v3544 = vunpack.c.l.b16 %v3533
  %v3545 = vunpack.c.l.b16 %v3534
  %v3546 = vunpack.c.l.b16 %v3535
  %v3547 = vpack.c.b16 %v3544, %v3543
  %v3548 = vpack.c.b16 %v3546, %v3545
  %v3552 = vsel %vm407, %v3538, 0
  %3554 = vmatpush.bf16.msra.mxu0 0
  %3555 = vmatpush.bf16.msra.mxu0 0
  %3556 = vmatpush.bf16.msra.mxu0 0
  %3557 = vmatpush.bf16.msra.mxu0 0
  %3558 = vmatpush.bf16.msra.mxu0 0
  %3559 = vmatpush.bf16.msra.mxu0 0
  %3560 = vmatpush.bf16.msra.mxu0 %v3548
  %3561 = vmatpush.bf16.msra.mxu0 %v3547
  %3562 = vmatmul.bf16.gmra.mxu0 %v3552
  %v3563 = vpop.f32.mrf.mxu0
  %v3564 = vadd.f32 0.0, %v3563
  %v3565 = vpop.f32.mrf.mxu0
  %3566 = vdwg.mxu0
  %v3567 = vadd.f32 %v3529, %v3564
  %3568 = vmatpush.bf16.msra.mxu0 0
  %3569 = vmatpush.bf16.msra.mxu0 0
  %3570 = vmatpush.bf16.msra.mxu0 0
  %3571 = vmatpush.bf16.msra.mxu0 0
  %3572 = vmatpush.bf16.msra.mxu0 0
  %3573 = vmatpush.bf16.msra.mxu0 0
  %3574 = vmatpush.bf16.msra.mxu0 %v2308
  %3575 = vmatpush.bf16.msra.mxu0 %v2307
  %3576 = vmatmul.bf16.gmra.mxu0 %v3514
  %v3577 = vpop.f32.mrf.mxu0
  %v3578 = vadd.f32 0.0, %v3577
  %v3579 = vpop.f32.mrf.mxu0
  %3580 = vdwg.mxu0
  %v3581 = vadd.f32 %v2282, %v3578
  %v3582 = vxor.u32 %v3581, 2147483648
  %v3583 = vmul.f32 %v3582, 1.442695
  %v3584 = vpow.pop %v3583
  %v3585 = vadd.f32 %v3584, 1.0
  %v3586 = vrcp.pop %v3585
  %v3587 = vmul.f32 %v3585, %v3586
  %v3588 = vsub.f32 1.0, %v3587
  %v3589 = vmul.f32 %v3586, %v3588
  %v3590 = vadd.f32 %v3586, %v3589
  %vm3591 = vweird.f32 %v3585
  %vm3592 = vweird.f32 %v3586
  %vm3593 = vmor %vm3591, %vm3592
  %v3594 = vsel %vm3593, %v3586, %v3590
  %v3595 = vand.u32 2147483647, %v3585
  %vm3596 = vcmp.eq.f32.partialorder %v3595, 8.507059e+37
  %v3597 = vand.u32 %v3585, 2147483648
  %v3598 = vor.u32 1.1754944e-38, %v3597
  %v3599 = vsel %vm3596, %v3598, %v3594
  %v3600 = vmul.f32 1.0, %v3599
  %v3601 = vtanh.pop %v3581
  %v3602 = vmul.f32 %v3600, %v3434
  %3604 = vrot.lane.b32.xlu0 %v3601, 64
  %v3605 = vpop.permute.xlu0 %3604
  %v3607 = vmul.f32 %v3600, %v3605
  %3609 = vrot.lane.b32.xlu0 %v3607, 32
  %v3610 = vpop.permute.xlu0 %3609
  %v3612 = vadd.f32 %v3602, %v3610
  %v3613 = vtanh.pop %v3612
  %3615 = vrot.lane.b32.xlu0 %v3613, 64
  %v3616 = vpop.permute.xlu0 %3615
  %v3618 = vmul.f32 %v3600, %v3616
  %3619 = vmatpush.bf16.msra.mxu0 0
  %3620 = vmatpush.bf16.msra.mxu0 0
  %3621 = vmatpush.bf16.msra.mxu0 0
  %3622 = vmatpush.bf16.msra.mxu0 0
  %3623 = vmatpush.bf16.msra.mxu0 0
  %3624 = vmatpush.bf16.msra.mxu0 0
  %3625 = vmatpush.bf16.msra.mxu0 %v2371
  %3626 = vmatpush.bf16.msra.mxu0 %v2370
  %3627 = vmatmul.bf16.gmra.mxu0 %v3552
  %v3628 = vpop.f32.mrf.mxu0
  %v3629 = vadd.f32 0.0, %v3628
  %v3630 = vpop.f32.mrf.mxu0
  %3631 = vdwg.mxu0
  %v3632 = vadd.f32 %v2271, %v3629
  %v3633 = vxor.u32 %v3632, 2147483648
  %v3634 = vmul.f32 %v3633, 1.442695
  %v3635 = vpow.pop %v3634
  %v3636 = vadd.f32 %v3635, 1.0
  %v3637 = vrcp.pop %v3636
  %v3638 = vmul.f32 %v3636, %v3637
  %v3639 = vsub.f32 1.0, %v3638
  %v3640 = vmul.f32 %v3637, %v3639
  %v3641 = vadd.f32 %v3637, %v3640
  %vm3642 = vweird.f32 %v3636
  %vm3643 = vweird.f32 %v3637
  %vm3644 = vmor %vm3642, %vm3643
  %v3645 = vsel %vm3644, %v3637, %v3641
  %v3646 = vand.u32 2147483647, %v3636
  %vm3647 = vcmp.eq.f32.partialorder %v3646, 8.507059e+37
  %v3648 = vand.u32 %v3636, 2147483648
  %v3649 = vor.u32 1.1754944e-38, %v3648
  %v3650 = vsel %vm3647, %v3649, %v3645
  %v3651 = vmul.f32 1.0, %v3650
  %v3652 = vtanh.pop %v3632
  %v3653 = vmul.f32 %v3651, %v3485
  %3655 = vrot.lane.b32.xlu0 %v3652, 64
  %v3656 = vpop.permute.xlu0 %3655
  %v3658 = vmul.f32 %v3651, %v3656
  %3660 = vrot.lane.b32.xlu0 %v3658, 32
  %v3661 = vpop.permute.xlu0 %3660
  %v3663 = vadd.f32 %v3653, %v3661
  %v3664 = vtanh.pop %v3663
  %3666 = vrot.lane.b32.xlu0 %v3664, 64
  %v3667 = vpop.permute.xlu0 %3666
  %v3669 = vmul.f32 %v3651, %v3667
  %v3670 = vpack.c.bf16 %v3618, %v3618
  %s3671 = scalar_lea.vmem %s17, 224
  %v3672 = vld [vmem:[%s3671] sm:$0xf]
  %v3673 = vld [vmem:[%s3671 + $0x4] sm:$0xf]
  %v3674 = vld [vmem:[%s3671 + $0x8] sm:$0xf]
  %v3675 = vld [vmem:[%s3671 + $0xc] sm:$0xf]
  %3677 = vrot.lane.b32.xlu0 %v3670, 32
  %v3678 = vpop.permute.xlu0 %3677
  %v3683 = vunpack.c.l.b16 %v3672
  %v3684 = vunpack.c.l.b16 %v3673
  %v3685 = vunpack.c.l.b16 %v3674
  %v3686 = vunpack.c.l.b16 %v3675
  %v3687 = vpack.c.b16 %v3684, %v3683
  %v3688 = vpack.c.b16 %v3686, %v3685
  %v3692 = vsel %vm407, %v3678, 0
  %3694 = vmatpush.bf16.msra.mxu0 0
  %3695 = vmatpush.bf16.msra.mxu0 0
  %3696 = vmatpush.bf16.msra.mxu0 0
  %3697 = vmatpush.bf16.msra.mxu0 0
  %3698 = vmatpush.bf16.msra.mxu0 0
  %3699 = vmatpush.bf16.msra.mxu0 0
  %3700 = vmatpush.bf16.msra.mxu0 %v3688
  %3701 = vmatpush.bf16.msra.mxu0 %v3687
  %3702 = vmatmul.bf16.gmra.mxu0 %v3692
  %v3703 = vpop.f32.mrf.mxu0
  %v3704 = vadd.f32 0.0, %v3703
  %v3705 = vpop.f32.mrf.mxu0
  %3706 = vdwg.mxu0
  %v3707 = vadd.f32 %v3567, %v3704
  %v3708 = vpack.c.bf16 %v3669, %v3669
  %s3709 = scalar_lea.vmem %s17, 48
  %v3710 = vld [vmem:[%s3709] sm:$0xf]
  %v3711 = vld [vmem:[%s3709 + $0x4] sm:$0xf]
  %v3712 = vld [vmem:[%s3709 + $0x8] sm:$0xf]
  %v3713 = vld [vmem:[%s3709 + $0xc] sm:$0xf]
  %3715 = vrot.lane.b32.xlu0 %v3708, 32
  %v3716 = vpop.permute.xlu0 %3715
  %v3721 = vunpack.c.l.b16 %v3710
  %v3722 = vunpack.c.l.b16 %v3711
  %v3723 = vunpack.c.l.b16 %v3712
  %v3724 = vunpack.c.l.b16 %v3713
  %v3725 = vpack.c.b16 %v3722, %v3721
  %v3726 = vpack.c.b16 %v3724, %v3723
  %v3730 = vsel %vm407, %v3716, 0
  %3732 = vmatpush.bf16.msra.mxu0 0
  %3733 = vmatpush.bf16.msra.mxu0 0
  %3734 = vmatpush.bf16.msra.mxu0 0
  %3735 = vmatpush.bf16.msra.mxu0 0
  %3736 = vmatpush.bf16.msra.mxu0 0
  %3737 = vmatpush.bf16.msra.mxu0 0
  %3738 = vmatpush.bf16.msra.mxu0 %v3726
  %3739 = vmatpush.bf16.msra.mxu0 %v3725
  %3740 = vmatmul.bf16.gmra.mxu0 %v3730
  %v3741 = vpop.f32.mrf.mxu0
  %v3742 = vadd.f32 0.0, %v3741
  %v3743 = vpop.f32.mrf.mxu0
  %3744 = vdwg.mxu0
  %v3745 = vadd.f32 %v3707, %v3742
  %3746 = vmatpush.bf16.msra.mxu0 0
  %3747 = vmatpush.bf16.msra.mxu0 0
  %3748 = vmatpush.bf16.msra.mxu0 0
  %3749 = vmatpush.bf16.msra.mxu0 0
  %3750 = vmatpush.bf16.msra.mxu0 0
  %3751 = vmatpush.bf16.msra.mxu0 0
  %3752 = vmatpush.bf16.msra.mxu0 %v2308
  %3753 = vmatpush.bf16.msra.mxu0 %v2307
  %3754 = vmatmul.bf16.gmra.mxu0 %v3692
  %v3755 = vpop.f32.mrf.mxu0
  %v3756 = vadd.f32 0.0, %v3755
  %v3757 = vpop.f32.mrf.mxu0
  %3758 = vdwg.mxu0
  %v3759 = vadd.f32 %v2284, %v3756
  %v3760 = vxor.u32 %v3759, 2147483648
  %v3761 = vmul.f32 %v3760, 1.442695
  %v3762 = vpow.pop %v3761
  %v3763 = vadd.f32 %v3762, 1.0
  %v3764 = vrcp.pop %v3763
  %v3765 = vmul.f32 %v3763, %v3764
  %v3766 = vsub.f32 1.0, %v3765
  %v3767 = vmul.f32 %v3764, %v3766
  %v3768 = vadd.f32 %v3764, %v3767
  %vm3769 = vweird.f32 %v3763
  %vm3770 = vweird.f32 %v3764
  %vm3771 = vmor %vm3769, %vm3770
  %v3772 = vsel %vm3771, %v3764, %v3768
  %v3773 = vand.u32 2147483647, %v3763
  %vm3774 = vcmp.eq.f32.partialorder %v3773, 8.507059e+37
  %v3775 = vand.u32 %v3763, 2147483648
  %v3776 = vor.u32 1.1754944e-38, %v3775
  %v3777 = vsel %vm3774, %v3776, %v3772
  %v3778 = vmul.f32 1.0, %v3777
  %v3779 = vtanh.pop %v3759
  %v3780 = vmul.f32 %v3778, %v3612
  %3782 = vrot.lane.b32.xlu0 %v3779, 64
  %v3783 = vpop.permute.xlu0 %3782
  %v3785 = vmul.f32 %v3778, %v3783
  %3787 = vrot.lane.b32.xlu0 %v3785, 32
  %v3788 = vpop.permute.xlu0 %3787
  %v3790 = vadd.f32 %v3780, %v3788
  %v3791 = vtanh.pop %v3790
  %3793 = vrot.lane.b32.xlu0 %v3791, 64
  %v3794 = vpop.permute.xlu0 %3793
  %v3796 = vmul.f32 %v3778, %v3794
  %3797 = vmatpush.bf16.msra.mxu0 0
  %3798 = vmatpush.bf16.msra.mxu0 0
  %3799 = vmatpush.bf16.msra.mxu0 0
  %3800 = vmatpush.bf16.msra.mxu0 0
  %3801 = vmatpush.bf16.msra.mxu0 0
  %3802 = vmatpush.bf16.msra.mxu0 0
  %3803 = vmatpush.bf16.msra.mxu0 %v2371
  %3804 = vmatpush.bf16.msra.mxu0 %v2370
  %3805 = vmatmul.bf16.gmra.mxu0 %v3730
  %v3806 = vpop.f32.mrf.mxu0
  %v3807 = vadd.f32 0.0, %v3806
  %v3808 = vpop.f32.mrf.mxu0
  %3809 = vdwg.mxu0
  %v3810 = vadd.f32 %v2269, %v3807
  %v3811 = vxor.u32 %v3810, 2147483648
  %v3812 = vmul.f32 %v3811, 1.442695
  %v3813 = vpow.pop %v3812
  %v3814 = vadd.f32 %v3813, 1.0
  %v3815 = vrcp.pop %v3814
  %v3816 = vmul.f32 %v3814, %v3815
  %v3817 = vsub.f32 1.0, %v3816
  %v3818 = vmul.f32 %v3815, %v3817
  %v3819 = vadd.f32 %v3815, %v3818
  %vm3820 = vweird.f32 %v3814
  %vm3821 = vweird.f32 %v3815
  %vm3822 = vmor %vm3820, %vm3821
  %v3823 = vsel %vm3822, %v3815, %v3819
  %v3824 = vand.u32 2147483647, %v3814
  %vm3825 = vcmp.eq.f32.partialorder %v3824, 8.507059e+37
  %v3826 = vand.u32 %v3814, 2147483648
  %v3827 = vor.u32 1.1754944e-38, %v3826
  %v3828 = vsel %vm3825, %v3827, %v3823
  %v3829 = vmul.f32 1.0, %v3828
  %v3830 = vtanh.pop %v3810
  %v3831 = vmul.f32 %v3829, %v3663
  %3833 = vrot.lane.b32.xlu0 %v3830, 64
  %v3834 = vpop.permute.xlu0 %3833
  %v3836 = vmul.f32 %v3829, %v3834
  %3838 = vrot.lane.b32.xlu0 %v3836, 32
  %v3839 = vpop.permute.xlu0 %3838
  %v3841 = vadd.f32 %v3831, %v3839
  %v3842 = vtanh.pop %v3841
  %3844 = vrot.lane.b32.xlu0 %v3842, 64
  %v3845 = vpop.permute.xlu0 %3844
  %v3847 = vmul.f32 %v3829, %v3845
  %v3848 = vpack.c.bf16 %v3796, %v3796
  %s3849 = scalar_lea.vmem %s17, 256
  %v3850 = vld [vmem:[%s3849] sm:$0xf]
  %v3851 = vld [vmem:[%s3849 + $0x4] sm:$0xf]
  %v3852 = vld [vmem:[%s3849 + $0x8] sm:$0xf]
  %v3853 = vld [vmem:[%s3849 + $0xc] sm:$0xf]
  %3855 = vrot.lane.b32.xlu0 %v3848, 32
  %v3856 = vpop.permute.xlu0 %3855
  %v3861 = vunpack.c.l.b16 %v3850
  %v3862 = vunpack.c.l.b16 %v3851
  %v3863 = vunpack.c.l.b16 %v3852
  %v3864 = vunpack.c.l.b16 %v3853
  %v3865 = vpack.c.b16 %v3862, %v3861
  %v3866 = vpack.c.b16 %v3864, %v3863
  %v3870 = vsel %vm407, %v3856, 0
  %3872 = vmatpush.bf16.msra.mxu0 0
  %3873 = vmatpush.bf16.msra.mxu0 0
  %3874 = vmatpush.bf16.msra.mxu0 0
  %3875 = vmatpush.bf16.msra.mxu0 0
  %3876 = vmatpush.bf16.msra.mxu0 0
  %3877 = vmatpush.bf16.msra.mxu0 0
  %3878 = vmatpush.bf16.msra.mxu0 %v3866
  %3879 = vmatpush.bf16.msra.mxu0 %v3865
  %3880 = vmatmul.bf16.gmra.mxu0 %v3870
  %v3881 = vpop.f32.mrf.mxu0
  %v3882 = vadd.f32 0.0, %v3881
  %v3883 = vpop.f32.mrf.mxu0
  %3884 = vdwg.mxu0
  %v3885 = vadd.f32 %v3745, %v3882
  %v3886 = vpack.c.bf16 %v3847, %v3847
  %s3887 = scalar_lea.vmem %s17, 16
  %v3888 = vld [vmem:[%s3887] sm:$0xf]
  %v3889 = vld [vmem:[%s3887 + $0x4] sm:$0xf]
  %v3890 = vld [vmem:[%s3887 + $0x8] sm:$0xf]
  %v3891 = vld [vmem:[%s3887 + $0xc] sm:$0xf]
  %3893 = vrot.lane.b32.xlu0 %v3886, 32
  %v3894 = vpop.permute.xlu0 %3893
  %v3899 = vunpack.c.l.b16 %v3888
  %v3900 = vunpack.c.l.b16 %v3889
  %v3901 = vunpack.c.l.b16 %v3890
  %v3902 = vunpack.c.l.b16 %v3891
  %v3903 = vpack.c.b16 %v3900, %v3899
  %v3904 = vpack.c.b16 %v3902, %v3901
  %v3908 = vsel %vm407, %v3894, 0
  %3910 = vmatpush.bf16.msra.mxu0 0
  %3911 = vmatpush.bf16.msra.mxu0 0
  %3912 = vmatpush.bf16.msra.mxu0 0
  %3913 = vmatpush.bf16.msra.mxu0 0
  %3914 = vmatpush.bf16.msra.mxu0 0
  %3915 = vmatpush.bf16.msra.mxu0 0
  %3916 = vmatpush.bf16.msra.mxu0 %v3904
  %3917 = vmatpush.bf16.msra.mxu0 %v3903
  %3918 = vmatmul.bf16.gmra.mxu0 %v3908
  %v3919 = vpop.f32.mrf.mxu0
  %v3920 = vadd.f32 0.0, %v3919
  %v3921 = vpop.f32.mrf.mxu0
  %3922 = vdwg.mxu0
  %v3923 = vadd.f32 %v3885, %v3920
  %vm3924 = vcmask 15360
  %3925 = vst.msk [vmem:[%s19] sm:$0xff] %vm3924, %v3923
  // Predicated region
  $region78: #{forward.1} parent=0 // pred_check
    _
  $region79: #{forward.1} parent=0 // pred_check_branch
    %3927 = sbr.rel (0) target = $region81
  $region80: #{forward.1} parent=0 // pred_region
    _
  $region81: #{forward.1} parent=0 // pred_fallthru
    _
  // Predicated region
  $region82: #{forward.1} parent=0 // pred_check
    _
  $region83: #{forward.1} parent=0 // pred_check_branch
    %3929 = sbr.rel (0) target = $region85
  $region84: #{forward.1} parent=0 // pred_region
    _
  $region85: #{forward.1} parent=0 // pred_fallthru
    _

</llo_original>
